<compile_context>
chip_gen: v7x
topology: tpu7x:2x2x1
jax: 0.10.0
libtpu: 0.0.40
codegen_flags: <defaults>
</compile_context>

<pallas_src>
import jax
import jax.numpy as jnp
from jax import lax
from jax.experimental import pallas as pl
from jax.experimental.pallas import tpu as pltpu  # noqa: F401  (kept for TPU params if needed)

# ----------------------------- configuration --------------------------------
DIM = 32          # model dim
HEADS = 4
DIM_HEAD = DIM // HEADS      # 8
INNER_DIM = HEADS * DIM_HEAD # 32
AGENT_NUM = 8
SEQ = 16
BATCH = 2
SCALE = DIM_HEAD ** -0.5

# dot_general dimension_numbers: contract last dim of both operands (== a @ b.T)
_CONTRACT_LAST = (((1,), (1,)), ((), ()))


# ----------------------------- Pallas kernel ---------------------------------
def _softmax_lastdim(x):
    m = jnp.max(x, axis=-1, keepdims=True)
    e = jnp.exp(x - m)
    return e * pl.reciprocal(jnp.sum(e, axis=-1, keepdims=True), approx=False)


def _fused_agent_attention_kernel(x_ref, wq_ref, wk_ref, wv_ref, agent_ref,
                                  wout_ref, bout_ref, o_ref):
    """Whole AgentAttention forward in a single program (everything in VMEM).

    x:      (B*N, DIM)
    wq/k/v: (DIM, H*D)       (already transposed / column-split in the wrapper)
    agent:  (H*A, D)
    w_out:  (H*D, DIM)
    b_out:  (1, DIM)
    out:    (B*N, DIM)
    """
    x = x_ref[...]                                                     # (B*N, DIM)
    q = jnp.dot(x, wq_ref[...], preferred_element_type=jnp.float32)   # (B*N, H*D)
    k = jnp.dot(x, wk_ref[...], preferred_element_type=jnp.float32)
    v = jnp.dot(x, wv_ref[...], preferred_element_type=jnp.float32)
    agent = agent_ref[...]                                             # (H*A, D)
    w_out = wout_ref[...]                                              # (H*D, DIM)
    bias = bout_ref[...]                                               # (1, DIM)

    # Residual mask (token n == 0 gets no +v), hoisted out of all loops.
    n_idx = lax.broadcasted_iota(jnp.int32, (SEQ, 1), 0)
    res_mask = (n_idx > 0).astype(jnp.float32)                         # (N, 1)

    for b in range(BATCH):                     # static unroll (2)
        r0 = b * SEQ
        y_b = None
        for h in range(HEADS):                 # static unroll (4)
            c0 = h * DIM_HEAD
            q_bh = q[r0:r0 + SEQ, c0:c0 + DIM_HEAD]                    # (N, D)
            k_bh = k[r0:r0 + SEQ, c0:c0 + DIM_HEAD]                    # (N, D)
            v_bh = v[r0:r0 + SEQ, c0:c0 + DIM_HEAD]                    # (N, D)
            ag = agent[h * AGENT_NUM:(h + 1) * AGENT_NUM, :]           # (A, D)

            # agent_attn = softmax(agent @ k^T * scale)                (A, N)
            agent_attn = _softmax_lastdim(
                lax.dot_general(ag, k_bh, _CONTRACT_LAST,
                                preferred_element_type=jnp.float32) * SCALE)
            # agent_v = agent_attn @ v                                 (A, D)
            agent_v = jnp.dot(agent_attn, v_bh,
                              preferred_element_type=jnp.float32)
            # q_attn = softmax(q @ agent^T * scale)                    (N, A)
            q_attn = _softmax_lastdim(
                lax.dot_general(q_bh, ag, _CONTRACT_LAST,
                                preferred_element_type=jnp.float32) * SCALE)
            # out = q_attn @ agent_v                                   (N, D)
            out_bh = jnp.dot(q_attn, agent_v,
                             preferred_element_type=jnp.float32)
            # Residual on tokens n >= 1 (equivalent to the merged-layout add).
            out_bh = out_bh + res_mask * v_bh

            # Head merge + output projection fused: per-head K-slice of W_out.
            y_bh = jnp.dot(out_bh, w_out[c0:c0 + DIM_HEAD, :],
                           preferred_element_type=jnp.float32)         # (N, DIM)
            y_b = y_bh if y_b is None else y_b + y_bh

        # Lane-dense store: full (N, DIM) rows for this batch.
        o_ref[r0:r0 + SEQ, :] = (y_b + bias).astype(o_ref.dtype)


# ----------------------------- wrapper ----------------------------------------
@jax.jit
def agent_attention_forward(x, params):
    """Equivalent of AgentAttention.forward(x, register_hook=False), eval mode.

    Returns (out, attn_matrix) with attn_matrix = None.
    """
    B, N, dim = x.shape
    x2d = x.reshape(B * N, dim)

    wqkv_t = params["w_qkv"].T                            # (DIM, 3*INNER)
    wq_t = wqkv_t[:, :INNER_DIM]
    wk_t = wqkv_t[:, INNER_DIM:2 * INNER_DIM]
    wv_t = wqkv_t[:, 2 * INNER_DIM:]
    agent = params["agent_token"].reshape(HEADS * AGENT_NUM, DIM_HEAD)
    wout_t = params["w_out"].T                            # (INNER, DIM)
    bout = params["b_out"].reshape(1, dim)

    y2d = pl.pallas_call(
        _fused_agent_attention_kernel,
        out_shape=jax.ShapeDtypeStruct((B * N, dim), jnp.float32),
    )(x2d, wq_t, wk_t, wv_t, agent, wout_t, bout)

    # TODO(synk): Dropout in to_out is inference-mode identity here.
    return y2d.reshape(B, N, dim), None


# ----------------------------- pure-JAX reference -----------------------------
def _reference_forward(x, params):
    B, N, dim = x.shape
    qkv = x @ params["w_qkv"].T
    q, k, v = jnp.split(qkv, 3, axis=-1)

    def to_heads(t):
        return t.reshape(B, N, HEADS, DIM_HEAD).transpose(0, 2, 1, 3)

    q, k, v = map(to_heads, (q, k, v))
    agent = jnp.broadcast_to(params["agent_token"],
                             (B, HEADS, AGENT_NUM, DIM_HEAD))

    agent_attn = jax.nn.softmax(
        jnp.einsum("bhad,bhnd->bhan", agent, k) * SCALE, axis=-1)
    agent_v = jnp.einsum("bhan,bhnd->bhad", agent_attn, v)
    q_attn = jax.nn.softmax(
        jnp.einsum("bhnd,bhad->bhna", q, agent) * SCALE, axis=-1)
    out = jnp.einsum("bhna,bhad->bhnd", q_attn, agent_v)

    out = out.transpose(0, 2, 1, 3).reshape(B, N, INNER_DIM)
    v_flat = v.transpose(0, 2, 1, 3).reshape(B, N, INNER_DIM)
    out = out.at[:, 1:, :].add(v_flat[:, 1:, :])

    y = out @ params["w_out"].T + params["b_out"]
    return y, None


# ----------------------------- main -------------------------------------------
def _init_params(key):
    k1, k2, k3, k4 = jax.random.split(key, 4)
    return {
        # nn.Linear(dim, inner_dim*3, bias=False): weight (3*inner, dim)
        "w_qkv": (jax.random.normal(k1, (3 * INNER_DIM, DIM), jnp.float32)
                  * (1.0 / jnp.sqrt(DIM))),
        # nn.Parameter(torch.randn(1, heads, agent_num, dim_head))
        "agent_token": jax.random.normal(
            k2, (1, HEADS, AGENT_NUM, DIM_HEAD), jnp.float32),
        # nn.Linear(inner_dim, dim): weight (dim, inner_dim), bias (dim,)
        "w_out": (jax.random.normal(k3, (DIM, INNER_DIM), jnp.float32)
                  * (1.0 / jnp.sqrt(INNER_DIM))),
        "b_out": jax.random.normal(k4, (DIM,), jnp.float32) * 0.01,
    }


if __name__ == "__main__":
    key = jax.random.PRNGKey(0)
    kp, kx = jax.random.split(key)
    params = _init_params(kp)
    x = jax.random.normal(kx, (BATCH, SEQ, DIM), jnp.float32)

    out, attn_matrix = agent_attention_forward(x, params)
    out = jax.block_until_ready(out)
    assert attn_matrix is None

    ref, _ = _reference_forward(x, params)
    assert out.shape == (BATCH, SEQ, DIM)
    assert jnp.allclose(out, ref, rtol=1e-4, atol=1e-4), (
        float(jnp.max(jnp.abs(out - ref))))

    print("KERNEL_OK")
</pallas_src>

<mosaic_0001>
module attributes {stable_mosaic.version = 11 : i64} {
  func.func @_fused_agent_attention_kernel(%arg0: memref<32x32xf32, #tpu.memory_space<vmem>>, %arg1: memref<32x32xf32, #tpu.memory_space<vmem>>, %arg2: memref<32x32xf32, #tpu.memory_space<vmem>>, %arg3: memref<32x32xf32, #tpu.memory_space<vmem>>, %arg4: memref<32x8xf32, #tpu.memory_space<vmem>>, %arg5: memref<32x32xf32, #tpu.memory_space<vmem>>, %arg6: memref<1x32xf32, #tpu.memory_space<vmem>>, %arg7: memref<32x32xf32, #tpu.memory_space<vmem>>) attributes {dimension_semantics = [], scalar_prefetch = 0 : i64, scratch_operands = 0 : i64, tpu.core_type = #tpu.core_type<tc>} {
    %c0 = arith.constant 0 : index
    %c0_0 = arith.constant 0 : index
    %0 = vector.load %arg0[%c0, %c0_0] : memref<32x32xf32, #tpu.memory_space<vmem>>, vector<32x32xf32>
    %c0_1 = arith.constant 0 : index
    %c0_2 = arith.constant 0 : index
    %1 = vector.load %arg1[%c0_1, %c0_2] : memref<32x32xf32, #tpu.memory_space<vmem>>, vector<32x32xf32>
    %cst = arith.constant dense<0.000000e+00> : vector<32x32xf32>
    %2 = tpu.matmul %0, %1, %cst {dimension_numbers = #tpu.dot_dimension_numbers<[1], [0], [0], [1], [0, 0, 1, 1], [], []>} : vector<32x32xf32>, vector<32x32xf32>, vector<32x32xf32> -> vector<32x32xf32>
    %c0_3 = arith.constant 0 : index
    %c0_4 = arith.constant 0 : index
    %3 = vector.load %arg2[%c0_3, %c0_4] : memref<32x32xf32, #tpu.memory_space<vmem>>, vector<32x32xf32>
    %cst_5 = arith.constant dense<0.000000e+00> : vector<32x32xf32>
    %4 = tpu.matmul %0, %3, %cst_5 {dimension_numbers = #tpu.dot_dimension_numbers<[1], [0], [0], [1], [0, 0, 1, 1], [], []>} : vector<32x32xf32>, vector<32x32xf32>, vector<32x32xf32> -> vector<32x32xf32>
    %c0_6 = arith.constant 0 : index
    %c0_7 = arith.constant 0 : index
    %5 = vector.load %arg3[%c0_6, %c0_7] : memref<32x32xf32, #tpu.memory_space<vmem>>, vector<32x32xf32>
    %cst_8 = arith.constant dense<0.000000e+00> : vector<32x32xf32>
    %6 = tpu.matmul %0, %5, %cst_8 {dimension_numbers = #tpu.dot_dimension_numbers<[1], [0], [0], [1], [0, 0, 1, 1], [], []>} : vector<32x32xf32>, vector<32x32xf32>, vector<32x32xf32> -> vector<32x32xf32>
    %c0_9 = arith.constant 0 : index
    %c0_10 = arith.constant 0 : index
    %7 = vector.load %arg4[%c0_9, %c0_10] : memref<32x8xf32, #tpu.memory_space<vmem>>, vector<32x8xf32>
    %c0_11 = arith.constant 0 : index
    %c0_12 = arith.constant 0 : index
    %8 = vector.load %arg5[%c0_11, %c0_12] : memref<32x32xf32, #tpu.memory_space<vmem>>, vector<32x32xf32>
    %c0_13 = arith.constant 0 : index
    %c0_14 = arith.constant 0 : index
    %9 = vector.load %arg6[%c0_13, %c0_14] : memref<1x32xf32, #tpu.memory_space<vmem>>, vector<1x32xf32>
    %10 = tpu.iota {dimensions = array<i32: 0>} : vector<16x1xi32>
    %c0_i32 = arith.constant 0 : i32
    %11 = vector.broadcast %c0_i32 : i32 to vector<16x1xi32>
    %12 = arith.cmpi sgt, %10, %11 : vector<16x1xi32>
    %13 = arith.extui %12 : vector<16x1xi1> to vector<16x1xi32>
    %14 = arith.sitofp %13 : vector<16x1xi32> to vector<16x1xf32>
    %15 = vector.extract_strided_slice %2 {offsets = [0, 0], sizes = [16, 8], strides = [1, 1]} : vector<32x32xf32> to vector<16x8xf32>
    %16 = vector.extract_strided_slice %4 {offsets = [0, 0], sizes = [16, 8], strides = [1, 1]} : vector<32x32xf32> to vector<16x8xf32>
    %17 = vector.extract_strided_slice %6 {offsets = [0, 0], sizes = [16, 8], strides = [1, 1]} : vector<32x32xf32> to vector<16x8xf32>
    %18 = vector.extract_strided_slice %7 {offsets = [0, 0], sizes = [8, 8], strides = [1, 1]} : vector<32x8xf32> to vector<8x8xf32>
    %cst_15 = arith.constant dense<0.000000e+00> : vector<8x16xf32>
    %19 = tpu.matmul %18, %16, %cst_15 {dimension_numbers = #tpu.dot_dimension_numbers<[1], [1], [0], [0], [0, 0, 1, 0], [], []>} : vector<8x8xf32>, vector<16x8xf32>, vector<8x16xf32> -> vector<8x16xf32>
    %cst_16 = arith.constant 0.353553385 : f32
    %20 = vector.broadcast %cst_16 : f32 to vector<8x16xf32>
    %21 = arith.mulf %19, %20 : vector<8x16xf32>
    %cst_17 = arith.constant dense<0xFF800000> : vector<8xf32>
    %22 = vector.multi_reduction <maximumf>, %21, %cst_17 [1] : vector<8x16xf32> to vector<8xf32>
    %23 = vector.shape_cast %22 : vector<8xf32> to vector<8x1xf32>
    %24 = vector.broadcast %23 : vector<8x1xf32> to vector<8x16xf32>
    %25 = arith.subf %21, %24 : vector<8x16xf32>
    %26 = math.exp %25 : vector<8x16xf32>
    %cst_18 = arith.constant dense<0.000000e+00> : vector<8xf32>
    %27 = vector.multi_reduction <add>, %26, %cst_18 [1] : vector<8x16xf32> to vector<8xf32>
    %28 = vector.shape_cast %27 : vector<8xf32> to vector<8x1xf32>
    %29 = tpu.reciprocal %28 : vector<8x1xf32> -> vector<8x1xf32>
    %30 = vector.broadcast %29 : vector<8x1xf32> to vector<8x16xf32>
    %31 = arith.mulf %26, %30 : vector<8x16xf32>
    %cst_19 = arith.constant dense<0.000000e+00> : vector<8x8xf32>
    %32 = tpu.matmul %31, %17, %cst_19 {dimension_numbers = #tpu.dot_dimension_numbers<[1], [0], [0], [1], [0, 0, 1, 1], [], []>} : vector<8x16xf32>, vector<16x8xf32>, vector<8x8xf32> -> vector<8x8xf32>
    %cst_20 = arith.constant dense<0.000000e+00> : vector<16x8xf32>
    %33 = tpu.matmul %15, %18, %cst_20 {dimension_numbers = #tpu.dot_dimension_numbers<[1], [1], [0], [0], [0, 0, 1, 0], [], []>} : vector<16x8xf32>, vector<8x8xf32>, vector<16x8xf32> -> vector<16x8xf32>
    %cst_21 = arith.constant 0.353553385 : f32
    %34 = vector.broadcast %cst_21 : f32 to vector<16x8xf32>
    %35 = arith.mulf %33, %34 : vector<16x8xf32>
    %cst_22 = arith.constant dense<0xFF800000> : vector<16xf32>
    %36 = vector.multi_reduction <maximumf>, %35, %cst_22 [1] : vector<16x8xf32> to vector<16xf32>
    %37 = vector.shape_cast %36 : vector<16xf32> to vector<16x1xf32>
    %38 = vector.broadcast %37 : vector<16x1xf32> to vector<16x8xf32>
    %39 = arith.subf %35, %38 : vector<16x8xf32>
    %40 = math.exp %39 : vector<16x8xf32>
    %cst_23 = arith.constant dense<0.000000e+00> : vector<16xf32>
    %41 = vector.multi_reduction <add>, %40, %cst_23 [1] : vector<16x8xf32> to vector<16xf32>
    %42 = vector.shape_cast %41 : vector<16xf32> to vector<16x1xf32>
    %43 = tpu.reciprocal %42 : vector<16x1xf32> -> vector<16x1xf32>
    %44 = vector.broadcast %43 : vector<16x1xf32> to vector<16x8xf32>
    %45 = arith.mulf %40, %44 : vector<16x8xf32>
    %cst_24 = arith.constant dense<0.000000e+00> : vector<16x8xf32>
    %46 = tpu.matmul %45, %32, %cst_24 {dimension_numbers = #tpu.dot_dimension_numbers<[1], [0], [0], [1], [0, 0, 1, 1], [], []>} : vector<16x8xf32>, vector<8x8xf32>, vector<16x8xf32> -> vector<16x8xf32>
    %47 = vector.broadcast %14 : vector<16x1xf32> to vector<16x8xf32>
    %48 = arith.mulf %47, %17 : vector<16x8xf32>
    %49 = arith.addf %46, %48 : vector<16x8xf32>
    %50 = vector.extract_strided_slice %8 {offsets = [0, 0], sizes = [8, 32], strides = [1, 1]} : vector<32x32xf32> to vector<8x32xf32>
    %cst_25 = arith.constant dense<0.000000e+00> : vector<16x32xf32>
    %51 = tpu.matmul %49, %50, %cst_25 {dimension_numbers = #tpu.dot_dimension_numbers<[1], [0], [0], [1], [0, 0, 1, 1], [], []>} : vector<16x8xf32>, vector<8x32xf32>, vector<16x32xf32> -> vector<16x32xf32>
    %52 = vector.extract_strided_slice %2 {offsets = [0, 8], sizes = [16, 8], strides = [1, 1]} : vector<32x32xf32> to vector<16x8xf32>
    %53 = vector.extract_strided_slice %4 {offsets = [0, 8], sizes = [16, 8], strides = [1, 1]} : vector<32x32xf32> to vector<16x8xf32>
    %54 = vector.extract_strided_slice %6 {offsets = [0, 8], sizes = [16, 8], strides = [1, 1]} : vector<32x32xf32> to vector<16x8xf32>
    %55 = vector.extract_strided_slice %7 {offsets = [8, 0], sizes = [8, 8], strides = [1, 1]} : vector<32x8xf32> to vector<8x8xf32>
    %cst_26 = arith.constant dense<0.000000e+00> : vector<8x16xf32>
    %56 = tpu.matmul %55, %53, %cst_26 {dimension_numbers = #tpu.dot_dimension_numbers<[1], [1], [0], [0], [0, 0, 1, 0], [], []>} : vector<8x8xf32>, vector<16x8xf32>, vector<8x16xf32> -> vector<8x16xf32>
    %cst_27 = arith.constant 0.353553385 : f32
    %57 = vector.broadcast %cst_27 : f32 to vector<8x16xf32>
    %58 = arith.mulf %56, %57 : vector<8x16xf32>
    %cst_28 = arith.constant dense<0xFF800000> : vector<8xf32>
    %59 = vector.multi_reduction <maximumf>, %58, %cst_28 [1] : vector<8x16xf32> to vector<8xf32>
    %60 = vector.shape_cast %59 : vector<8xf32> to vector<8x1xf32>
    %61 = vector.broadcast %60 : vector<8x1xf32> to vector<8x16xf32>
    %62 = arith.subf %58, %61 : vector<8x16xf32>
    %63 = math.exp %62 : vector<8x16xf32>
    %cst_29 = arith.constant dense<0.000000e+00> : vector<8xf32>
    %64 = vector.multi_reduction <add>, %63, %cst_29 [1] : vector<8x16xf32> to vector<8xf32>
    %65 = vector.shape_cast %64 : vector<8xf32> to vector<8x1xf32>
    %66 = tpu.reciprocal %65 : vector<8x1xf32> -> vector<8x1xf32>
    %67 = vector.broadcast %66 : vector<8x1xf32> to vector<8x16xf32>
    %68 = arith.mulf %63, %67 : vector<8x16xf32>
    %cst_30 = arith.constant dense<0.000000e+00> : vector<8x8xf32>
    %69 = tpu.matmul %68, %54, %cst_30 {dimension_numbers = #tpu.dot_dimension_numbers<[1], [0], [0], [1], [0, 0, 1, 1], [], []>} : vector<8x16xf32>, vector<16x8xf32>, vector<8x8xf32> -> vector<8x8xf32>
    %cst_31 = arith.constant dense<0.000000e+00> : vector<16x8xf32>
    %70 = tpu.matmul %52, %55, %cst_31 {dimension_numbers = #tpu.dot_dimension_numbers<[1], [1], [0], [0], [0, 0, 1, 0], [], []>} : vector<16x8xf32>, vector<8x8xf32>, vector<16x8xf32> -> vector<16x8xf32>
    %cst_32 = arith.constant 0.353553385 : f32
    %71 = vector.broadcast %cst_32 : f32 to vector<16x8xf32>
    %72 = arith.mulf %70, %71 : vector<16x8xf32>
    %cst_33 = arith.constant dense<0xFF800000> : vector<16xf32>
    %73 = vector.multi_reduction <maximumf>, %72, %cst_33 [1] : vector<16x8xf32> to vector<16xf32>
    %74 = vector.shape_cast %73 : vector<16xf32> to vector<16x1xf32>
    %75 = vector.broadcast %74 : vector<16x1xf32> to vector<16x8xf32>
    %76 = arith.subf %72, %75 : vector<16x8xf32>
    %77 = math.exp %76 : vector<16x8xf32>
    %cst_34 = arith.constant dense<0.000000e+00> : vector<16xf32>
    %78 = vector.multi_reduction <add>, %77, %cst_34 [1] : vector<16x8xf32> to vector<16xf32>
    %79 = vector.shape_cast %78 : vector<16xf32> to vector<16x1xf32>
    %80 = tpu.reciprocal %79 : vector<16x1xf32> -> vector<16x1xf32>
    %81 = vector.broadcast %80 : vector<16x1xf32> to vector<16x8xf32>
    %82 = arith.mulf %77, %81 : vector<16x8xf32>
    %cst_35 = arith.constant dense<0.000000e+00> : vector<16x8xf32>
    %83 = tpu.matmul %82, %69, %cst_35 {dimension_numbers = #tpu.dot_dimension_numbers<[1], [0], [0], [1], [0, 0, 1, 1], [], []>} : vector<16x8xf32>, vector<8x8xf32>, vector<16x8xf32> -> vector<16x8xf32>
    %84 = vector.broadcast %14 : vector<16x1xf32> to vector<16x8xf32>
    %85 = arith.mulf %84, %54 : vector<16x8xf32>
    %86 = arith.addf %83, %85 : vector<16x8xf32>
    %87 = vector.extract_strided_slice %8 {offsets = [8, 0], sizes = [8, 32], strides = [1, 1]} : vector<32x32xf32> to vector<8x32xf32>
    %cst_36 = arith.constant dense<0.000000e+00> : vector<16x32xf32>
    %88 = tpu.matmul %86, %87, %cst_36 {dimension_numbers = #tpu.dot_dimension_numbers<[1], [0], [0], [1], [0, 0, 1, 1], [], []>} : vector<16x8xf32>, vector<8x32xf32>, vector<16x32xf32> -> vector<16x32xf32>
    %89 = arith.addf %51, %88 : vector<16x32xf32>
    %90 = vector.extract_strided_slice %2 {offsets = [0, 16], sizes = [16, 8], strides = [1, 1]} : vector<32x32xf32> to vector<16x8xf32>
    %91 = vector.extract_strided_slice %4 {offsets = [0, 16], sizes = [16, 8], strides = [1, 1]} : vector<32x32xf32> to vector<16x8xf32>
    %92 = vector.extract_strided_slice %6 {offsets = [0, 16], sizes = [16, 8], strides = [1, 1]} : vector<32x32xf32> to vector<16x8xf32>
    %93 = vector.extract_strided_slice %7 {offsets = [16, 0], sizes = [8, 8], strides = [1, 1]} : vector<32x8xf32> to vector<8x8xf32>
    %cst_37 = arith.constant dense<0.000000e+00> : vector<8x16xf32>
    %94 = tpu.matmul %93, %91, %cst_37 {dimension_numbers = #tpu.dot_dimension_numbers<[1], [1], [0], [0], [0, 0, 1, 0], [], []>} : vector<8x8xf32>, vector<16x8xf32>, vector<8x16xf32> -> vector<8x16xf32>
    %cst_38 = arith.constant 0.353553385 : f32
    %95 = vector.broadcast %cst_38 : f32 to vector<8x16xf32>
    %96 = arith.mulf %94, %95 : vector<8x16xf32>
    %cst_39 = arith.constant dense<0xFF800000> : vector<8xf32>
    %97 = vector.multi_reduction <maximumf>, %96, %cst_39 [1] : vector<8x16xf32> to vector<8xf32>
    %98 = vector.shape_cast %97 : vector<8xf32> to vector<8x1xf32>
    %99 = vector.broadcast %98 : vector<8x1xf32> to vector<8x16xf32>
    %100 = arith.subf %96, %99 : vector<8x16xf32>
    %101 = math.exp %100 : vector<8x16xf32>
    %cst_40 = arith.constant dense<0.000000e+00> : vector<8xf32>
    %102 = vector.multi_reduction <add>, %101, %cst_40 [1] : vector<8x16xf32> to vector<8xf32>
    %103 = vector.shape_cast %102 : vector<8xf32> to vector<8x1xf32>
    %104 = tpu.reciprocal %103 : vector<8x1xf32> -> vector<8x1xf32>
    %105 = vector.broadcast %104 : vector<8x1xf32> to vector<8x16xf32>
    %106 = arith.mulf %101, %105 : vector<8x16xf32>
    %cst_41 = arith.constant dense<0.000000e+00> : vector<8x8xf32>
    %107 = tpu.matmul %106, %92, %cst_41 {dimension_numbers = #tpu.dot_dimension_numbers<[1], [0], [0], [1], [0, 0, 1, 1], [], []>} : vector<8x16xf32>, vector<16x8xf32>, vector<8x8xf32> -> vector<8x8xf32>
    %cst_42 = arith.constant dense<0.000000e+00> : vector<16x8xf32>
    %108 = tpu.matmul %90, %93, %cst_42 {dimension_numbers = #tpu.dot_dimension_numbers<[1], [1], [0], [0], [0, 0, 1, 0], [], []>} : vector<16x8xf32>, vector<8x8xf32>, vector<16x8xf32> -> vector<16x8xf32>
    %cst_43 = arith.constant 0.353553385 : f32
    %109 = vector.broadcast %cst_43 : f32 to vector<16x8xf32>
    %110 = arith.mulf %108, %109 : vector<16x8xf32>
    %cst_44 = arith.constant dense<0xFF800000> : vector<16xf32>
    %111 = vector.multi_reduction <maximumf>, %110, %cst_44 [1] : vector<16x8xf32> to vector<16xf32>
    %112 = vector.shape_cast %111 : vector<16xf32> to vector<16x1xf32>
    %113 = vector.broadcast %112 : vector<16x1xf32> to vector<16x8xf32>
    %114 = arith.subf %110, %113 : vector<16x8xf32>
    %115 = math.exp %114 : vector<16x8xf32>
    %cst_45 = arith.constant dense<0.000000e+00> : vector<16xf32>
    %116 = vector.multi_reduction <add>, %115, %cst_45 [1] : vector<16x8xf32> to vector<16xf32>
    %117 = vector.shape_cast %116 : vector<16xf32> to vector<16x1xf32>
    %118 = tpu.reciprocal %117 : vector<16x1xf32> -> vector<16x1xf32>
    %119 = vector.broadcast %118 : vector<16x1xf32> to vector<16x8xf32>
    %120 = arith.mulf %115, %119 : vector<16x8xf32>
    %cst_46 = arith.constant dense<0.000000e+00> : vector<16x8xf32>
    %121 = tpu.matmul %120, %107, %cst_46 {dimension_numbers = #tpu.dot_dimension_numbers<[1], [0], [0], [1], [0, 0, 1, 1], [], []>} : vector<16x8xf32>, vector<8x8xf32>, vector<16x8xf32> -> vector<16x8xf32>
    %122 = vector.broadcast %14 : vector<16x1xf32> to vector<16x8xf32>
    %123 = arith.mulf %122, %92 : vector<16x8xf32>
    %124 = arith.addf %121, %123 : vector<16x8xf32>
    %125 = vector.extract_strided_slice %8 {offsets = [16, 0], sizes = [8, 32], strides = [1, 1]} : vector<32x32xf32> to vector<8x32xf32>
    %cst_47 = arith.constant dense<0.000000e+00> : vector<16x32xf32>
    %126 = tpu.matmul %124, %125, %cst_47 {dimension_numbers = #tpu.dot_dimension_numbers<[1], [0], [0], [1], [0, 0, 1, 1], [], []>} : vector<16x8xf32>, vector<8x32xf32>, vector<16x32xf32> -> vector<16x32xf32>
    %127 = arith.addf %89, %126 : vector<16x32xf32>
    %128 = vector.extract_strided_slice %2 {offsets = [0, 24], sizes = [16, 8], strides = [1, 1]} : vector<32x32xf32> to vector<16x8xf32>
    %129 = vector.extract_strided_slice %4 {offsets = [0, 24], sizes = [16, 8], strides = [1, 1]} : vector<32x32xf32> to vector<16x8xf32>
    %130 = vector.extract_strided_slice %6 {offsets = [0, 24], sizes = [16, 8], strides = [1, 1]} : vector<32x32xf32> to vector<16x8xf32>
    %131 = vector.extract_strided_slice %7 {offsets = [24, 0], sizes = [8, 8], strides = [1, 1]} : vector<32x8xf32> to vector<8x8xf32>
    %cst_48 = arith.constant dense<0.000000e+00> : vector<8x16xf32>
    %132 = tpu.matmul %131, %129, %cst_48 {dimension_numbers = #tpu.dot_dimension_numbers<[1], [1], [0], [0], [0, 0, 1, 0], [], []>} : vector<8x8xf32>, vector<16x8xf32>, vector<8x16xf32> -> vector<8x16xf32>
    %cst_49 = arith.constant 0.353553385 : f32
    %133 = vector.broadcast %cst_49 : f32 to vector<8x16xf32>
    %134 = arith.mulf %132, %133 : vector<8x16xf32>
    %cst_50 = arith.constant dense<0xFF800000> : vector<8xf32>
    %135 = vector.multi_reduction <maximumf>, %134, %cst_50 [1] : vector<8x16xf32> to vector<8xf32>
    %136 = vector.shape_cast %135 : vector<8xf32> to vector<8x1xf32>
    %137 = vector.broadcast %136 : vector<8x1xf32> to vector<8x16xf32>
    %138 = arith.subf %134, %137 : vector<8x16xf32>
    %139 = math.exp %138 : vector<8x16xf32>
    %cst_51 = arith.constant dense<0.000000e+00> : vector<8xf32>
    %140 = vector.multi_reduction <add>, %139, %cst_51 [1] : vector<8x16xf32> to vector<8xf32>
    %141 = vector.shape_cast %140 : vector<8xf32> to vector<8x1xf32>
    %142 = tpu.reciprocal %141 : vector<8x1xf32> -> vector<8x1xf32>
    %143 = vector.broadcast %142 : vector<8x1xf32> to vector<8x16xf32>
    %144 = arith.mulf %139, %143 : vector<8x16xf32>
    %cst_52 = arith.constant dense<0.000000e+00> : vector<8x8xf32>
    %145 = tpu.matmul %144, %130, %cst_52 {dimension_numbers = #tpu.dot_dimension_numbers<[1], [0], [0], [1], [0, 0, 1, 1], [], []>} : vector<8x16xf32>, vector<16x8xf32>, vector<8x8xf32> -> vector<8x8xf32>
    %cst_53 = arith.constant dense<0.000000e+00> : vector<16x8xf32>
    %146 = tpu.matmul %128, %131, %cst_53 {dimension_numbers = #tpu.dot_dimension_numbers<[1], [1], [0], [0], [0, 0, 1, 0], [], []>} : vector<16x8xf32>, vector<8x8xf32>, vector<16x8xf32> -> vector<16x8xf32>
    %cst_54 = arith.constant 0.353553385 : f32
    %147 = vector.broadcast %cst_54 : f32 to vector<16x8xf32>
    %148 = arith.mulf %146, %147 : vector<16x8xf32>
    %cst_55 = arith.constant dense<0xFF800000> : vector<16xf32>
    %149 = vector.multi_reduction <maximumf>, %148, %cst_55 [1] : vector<16x8xf32> to vector<16xf32>
    %150 = vector.shape_cast %149 : vector<16xf32> to vector<16x1xf32>
    %151 = vector.broadcast %150 : vector<16x1xf32> to vector<16x8xf32>
    %152 = arith.subf %148, %151 : vector<16x8xf32>
    %153 = math.exp %152 : vector<16x8xf32>
    %cst_56 = arith.constant dense<0.000000e+00> : vector<16xf32>
    %154 = vector.multi_reduction <add>, %153, %cst_56 [1] : vector<16x8xf32> to vector<16xf32>
    %155 = vector.shape_cast %154 : vector<16xf32> to vector<16x1xf32>
    %156 = tpu.reciprocal %155 : vector<16x1xf32> -> vector<16x1xf32>
    %157 = vector.broadcast %156 : vector<16x1xf32> to vector<16x8xf32>
    %158 = arith.mulf %153, %157 : vector<16x8xf32>
    %cst_57 = arith.constant dense<0.000000e+00> : vector<16x8xf32>
    %159 = tpu.matmul %158, %145, %cst_57 {dimension_numbers = #tpu.dot_dimension_numbers<[1], [0], [0], [1], [0, 0, 1, 1], [], []>} : vector<16x8xf32>, vector<8x8xf32>, vector<16x8xf32> -> vector<16x8xf32>
    %160 = vector.broadcast %14 : vector<16x1xf32> to vector<16x8xf32>
    %161 = arith.mulf %160, %130 : vector<16x8xf32>
    %162 = arith.addf %159, %161 : vector<16x8xf32>
    %163 = vector.extract_strided_slice %8 {offsets = [24, 0], sizes = [8, 32], strides = [1, 1]} : vector<32x32xf32> to vector<8x32xf32>
    %cst_58 = arith.constant dense<0.000000e+00> : vector<16x32xf32>
    %164 = tpu.matmul %162, %163, %cst_58 {dimension_numbers = #tpu.dot_dimension_numbers<[1], [0], [0], [1], [0, 0, 1, 1], [], []>} : vector<16x8xf32>, vector<8x32xf32>, vector<16x32xf32> -> vector<16x32xf32>
    %165 = arith.addf %127, %164 : vector<16x32xf32>
    %166 = vector.broadcast %9 : vector<1x32xf32> to vector<16x32xf32>
    %167 = arith.addf %165, %166 : vector<16x32xf32>
    %c0_59 = arith.constant 0 : index
    %c0_60 = arith.constant 0 : index
    %168 = vector.load %arg7[%c0_59, %c0_60] : memref<32x32xf32, #tpu.memory_space<vmem>>, vector<16x32xf32>
    tpu.vector_store %arg7[%c0_59, %c0_60], %167 {strides = array<i32>} : memref<32x32xf32, #tpu.memory_space<vmem>>, vector<16x32xf32>,
    %169 = vector.extract_strided_slice %2 {offsets = [16, 0], sizes = [16, 8], strides = [1, 1]} : vector<32x32xf32> to vector<16x8xf32>
    %170 = vector.extract_strided_slice %4 {offsets = [16, 0], sizes = [16, 8], strides = [1, 1]} : vector<32x32xf32> to vector<16x8xf32>
    %171 = vector.extract_strided_slice %6 {offsets = [16, 0], sizes = [16, 8], strides = [1, 1]} : vector<32x32xf32> to vector<16x8xf32>
    %172 = vector.extract_strided_slice %7 {offsets = [0, 0], sizes = [8, 8], strides = [1, 1]} : vector<32x8xf32> to vector<8x8xf32>
    %cst_61 = arith.constant dense<0.000000e+00> : vector<8x16xf32>
    %173 = tpu.matmul %172, %170, %cst_61 {dimension_numbers = #tpu.dot_dimension_numbers<[1], [1], [0], [0], [0, 0, 1, 0], [], []>} : vector<8x8xf32>, vector<16x8xf32>, vector<8x16xf32> -> vector<8x16xf32>
    %cst_62 = arith.constant 0.353553385 : f32
    %174 = vector.broadcast %cst_62 : f32 to vector<8x16xf32>
    %175 = arith.mulf %173, %174 : vector<8x16xf32>
    %cst_63 = arith.constant dense<0xFF800000> : vector<8xf32>
    %176 = vector.multi_reduction <maximumf>, %175, %cst_63 [1] : vector<8x16xf32> to vector<8xf32>
    %177 = vector.shape_cast %176 : vector<8xf32> to vector<8x1xf32>
    %178 = vector.broadcast %177 : vector<8x1xf32> to vector<8x16xf32>
    %179 = arith.subf %175, %178 : vector<8x16xf32>
    %180 = math.exp %179 : vector<8x16xf32>
    %cst_64 = arith.constant dense<0.000000e+00> : vector<8xf32>
    %181 = vector.multi_reduction <add>, %180, %cst_64 [1] : vector<8x16xf32> to vector<8xf32>
    %182 = vector.shape_cast %181 : vector<8xf32> to vector<8x1xf32>
    %183 = tpu.reciprocal %182 : vector<8x1xf32> -> vector<8x1xf32>
    %184 = vector.broadcast %183 : vector<8x1xf32> to vector<8x16xf32>
    %185 = arith.mulf %180, %184 : vector<8x16xf32>
    %cst_65 = arith.constant dense<0.000000e+00> : vector<8x8xf32>
    %186 = tpu.matmul %185, %171, %cst_65 {dimension_numbers = #tpu.dot_dimension_numbers<[1], [0], [0], [1], [0, 0, 1, 1], [], []>} : vector<8x16xf32>, vector<16x8xf32>, vector<8x8xf32> -> vector<8x8xf32>
    %cst_66 = arith.constant dense<0.000000e+00> : vector<16x8xf32>
    %187 = tpu.matmul %169, %172, %cst_66 {dimension_numbers = #tpu.dot_dimension_numbers<[1], [1], [0], [0], [0, 0, 1, 0], [], []>} : vector<16x8xf32>, vector<8x8xf32>, vector<16x8xf32> -> vector<16x8xf32>
    %cst_67 = arith.constant 0.353553385 : f32
    %188 = vector.broadcast %cst_67 : f32 to vector<16x8xf32>
    %189 = arith.mulf %187, %188 : vector<16x8xf32>
    %cst_68 = arith.constant dense<0xFF800000> : vector<16xf32>
    %190 = vector.multi_reduction <maximumf>, %189, %cst_68 [1] : vector<16x8xf32> to vector<16xf32>
    %191 = vector.shape_cast %190 : vector<16xf32> to vector<16x1xf32>
    %192 = vector.broadcast %191 : vector<16x1xf32> to vector<16x8xf32>
    %193 = arith.subf %189, %192 : vector<16x8xf32>
    %194 = math.exp %193 : vector<16x8xf32>
    %cst_69 = arith.constant dense<0.000000e+00> : vector<16xf32>
    %195 = vector.multi_reduction <add>, %194, %cst_69 [1] : vector<16x8xf32> to vector<16xf32>
    %196 = vector.shape_cast %195 : vector<16xf32> to vector<16x1xf32>
    %197 = tpu.reciprocal %196 : vector<16x1xf32> -> vector<16x1xf32>
    %198 = vector.broadcast %197 : vector<16x1xf32> to vector<16x8xf32>
    %199 = arith.mulf %194, %198 : vector<16x8xf32>
    %cst_70 = arith.constant dense<0.000000e+00> : vector<16x8xf32>
    %200 = tpu.matmul %199, %186, %cst_70 {dimension_numbers = #tpu.dot_dimension_numbers<[1], [0], [0], [1], [0, 0, 1, 1], [], []>} : vector<16x8xf32>, vector<8x8xf32>, vector<16x8xf32> -> vector<16x8xf32>
    %201 = vector.broadcast %14 : vector<16x1xf32> to vector<16x8xf32>
    %202 = arith.mulf %201, %171 : vector<16x8xf32>
    %203 = arith.addf %200, %202 : vector<16x8xf32>
    %204 = vector.extract_strided_slice %8 {offsets = [0, 0], sizes = [8, 32], strides = [1, 1]} : vector<32x32xf32> to vector<8x32xf32>
    %cst_71 = arith.constant dense<0.000000e+00> : vector<16x32xf32>
    %205 = tpu.matmul %203, %204, %cst_71 {dimension_numbers = #tpu.dot_dimension_numbers<[1], [0], [0], [1], [0, 0, 1, 1], [], []>} : vector<16x8xf32>, vector<8x32xf32>, vector<16x32xf32> -> vector<16x32xf32>
    %206 = vector.extract_strided_slice %2 {offsets = [16, 8], sizes = [16, 8], strides = [1, 1]} : vector<32x32xf32> to vector<16x8xf32>
    %207 = vector.extract_strided_slice %4 {offsets = [16, 8], sizes = [16, 8], strides = [1, 1]} : vector<32x32xf32> to vector<16x8xf32>
    %208 = vector.extract_strided_slice %6 {offsets = [16, 8], sizes = [16, 8], strides = [1, 1]} : vector<32x32xf32> to vector<16x8xf32>
    %209 = vector.extract_strided_slice %7 {offsets = [8, 0], sizes = [8, 8], strides = [1, 1]} : vector<32x8xf32> to vector<8x8xf32>
    %cst_72 = arith.constant dense<0.000000e+00> : vector<8x16xf32>
    %210 = tpu.matmul %209, %207, %cst_72 {dimension_numbers = #tpu.dot_dimension_numbers<[1], [1], [0], [0], [0, 0, 1, 0], [], []>} : vector<8x8xf32>, vector<16x8xf32>, vector<8x16xf32> -> vector<8x16xf32>
    %cst_73 = arith.constant 0.353553385 : f32
    %211 = vector.broadcast %cst_73 : f32 to vector<8x16xf32>
    %212 = arith.mulf %210, %211 : vector<8x16xf32>
    %cst_74 = arith.constant dense<0xFF800000> : vector<8xf32>
    %213 = vector.multi_reduction <maximumf>, %212, %cst_74 [1] : vector<8x16xf32> to vector<8xf32>
    %214 = vector.shape_cast %213 : vector<8xf32> to vector<8x1xf32>
    %215 = vector.broadcast %214 : vector<8x1xf32> to vector<8x16xf32>
    %216 = arith.subf %212, %215 : vector<8x16xf32>
    %217 = math.exp %216 : vector<8x16xf32>
    %cst_75 = arith.constant dense<0.000000e+00> : vector<8xf32>
    %218 = vector.multi_reduction <add>, %217, %cst_75 [1] : vector<8x16xf32> to vector<8xf32>
    %219 = vector.shape_cast %218 : vector<8xf32> to vector<8x1xf32>
    %220 = tpu.reciprocal %219 : vector<8x1xf32> -> vector<8x1xf32>
    %221 = vector.broadcast %220 : vector<8x1xf32> to vector<8x16xf32>
    %222 = arith.mulf %217, %221 : vector<8x16xf32>
    %cst_76 = arith.constant dense<0.000000e+00> : vector<8x8xf32>
    %223 = tpu.matmul %222, %208, %cst_76 {dimension_numbers = #tpu.dot_dimension_numbers<[1], [0], [0], [1], [0, 0, 1, 1], [], []>} : vector<8x16xf32>, vector<16x8xf32>, vector<8x8xf32> -> vector<8x8xf32>
    %cst_77 = arith.constant dense<0.000000e+00> : vector<16x8xf32>
    %224 = tpu.matmul %206, %209, %cst_77 {dimension_numbers = #tpu.dot_dimension_numbers<[1], [1], [0], [0], [0, 0, 1, 0], [], []>} : vector<16x8xf32>, vector<8x8xf32>, vector<16x8xf32> -> vector<16x8xf32>
    %cst_78 = arith.constant 0.353553385 : f32
    %225 = vector.broadcast %cst_78 : f32 to vector<16x8xf32>
    %226 = arith.mulf %224, %225 : vector<16x8xf32>
    %cst_79 = arith.constant dense<0xFF800000> : vector<16xf32>
    %227 = vector.multi_reduction <maximumf>, %226, %cst_79 [1] : vector<16x8xf32> to vector<16xf32>
    %228 = vector.shape_cast %227 : vector<16xf32> to vector<16x1xf32>
    %229 = vector.broadcast %228 : vector<16x1xf32> to vector<16x8xf32>
    %230 = arith.subf %226, %229 : vector<16x8xf32>
    %231 = math.exp %230 : vector<16x8xf32>
    %cst_80 = arith.constant dense<0.000000e+00> : vector<16xf32>
    %232 = vector.multi_reduction <add>, %231, %cst_80 [1] : vector<16x8xf32> to vector<16xf32>
    %233 = vector.shape_cast %232 : vector<16xf32> to vector<16x1xf32>
    %234 = tpu.reciprocal %233 : vector<16x1xf32> -> vector<16x1xf32>
    %235 = vector.broadcast %234 : vector<16x1xf32> to vector<16x8xf32>
    %236 = arith.mulf %231, %235 : vector<16x8xf32>
    %cst_81 = arith.constant dense<0.000000e+00> : vector<16x8xf32>
    %237 = tpu.matmul %236, %223, %cst_81 {dimension_numbers = #tpu.dot_dimension_numbers<[1], [0], [0], [1], [0, 0, 1, 1], [], []>} : vector<16x8xf32>, vector<8x8xf32>, vector<16x8xf32> -> vector<16x8xf32>
    %238 = vector.broadcast %14 : vector<16x1xf32> to vector<16x8xf32>
    %239 = arith.mulf %238, %208 : vector<16x8xf32>
    %240 = arith.addf %237, %239 : vector<16x8xf32>
    %241 = vector.extract_strided_slice %8 {offsets = [8, 0], sizes = [8, 32], strides = [1, 1]} : vector<32x32xf32> to vector<8x32xf32>
    %cst_82 = arith.constant dense<0.000000e+00> : vector<16x32xf32>
    %242 = tpu.matmul %240, %241, %cst_82 {dimension_numbers = #tpu.dot_dimension_numbers<[1], [0], [0], [1], [0, 0, 1, 1], [], []>} : vector<16x8xf32>, vector<8x32xf32>, vector<16x32xf32> -> vector<16x32xf32>
    %243 = arith.addf %205, %242 : vector<16x32xf32>
    %244 = vector.extract_strided_slice %2 {offsets = [16, 16], sizes = [16, 8], strides = [1, 1]} : vector<32x32xf32> to vector<16x8xf32>
    %245 = vector.extract_strided_slice %4 {offsets = [16, 16], sizes = [16, 8], strides = [1, 1]} : vector<32x32xf32> to vector<16x8xf32>
    %246 = vector.extract_strided_slice %6 {offsets = [16, 16], sizes = [16, 8], strides = [1, 1]} : vector<32x32xf32> to vector<16x8xf32>
    %247 = vector.extract_strided_slice %7 {offsets = [16, 0], sizes = [8, 8], strides = [1, 1]} : vector<32x8xf32> to vector<8x8xf32>
    %cst_83 = arith.constant dense<0.000000e+00> : vector<8x16xf32>
    %248 = tpu.matmul %247, %245, %cst_83 {dimension_numbers = #tpu.dot_dimension_numbers<[1], [1], [0], [0], [0, 0, 1, 0], [], []>} : vector<8x8xf32>, vector<16x8xf32>, vector<8x16xf32> -> vector<8x16xf32>
    %cst_84 = arith.constant 0.353553385 : f32
    %249 = vector.broadcast %cst_84 : f32 to vector<8x16xf32>
    %250 = arith.mulf %248, %249 : vector<8x16xf32>
    %cst_85 = arith.constant dense<0xFF800000> : vector<8xf32>
    %251 = vector.multi_reduction <maximumf>, %250, %cst_85 [1] : vector<8x16xf32> to vector<8xf32>
    %252 = vector.shape_cast %251 : vector<8xf32> to vector<8x1xf32>
    %253 = vector.broadcast %252 : vector<8x1xf32> to vector<8x16xf32>
    %254 = arith.subf %250, %253 : vector<8x16xf32>
    %255 = math.exp %254 : vector<8x16xf32>
    %cst_86 = arith.constant dense<0.000000e+00> : vector<8xf32>
    %256 = vector.multi_reduction <add>, %255, %cst_86 [1] : vector<8x16xf32> to vector<8xf32>
    %257 = vector.shape_cast %256 : vector<8xf32> to vector<8x1xf32>
    %258 = tpu.reciprocal %257 : vector<8x1xf32> -> vector<8x1xf32>
    %259 = vector.broadcast %258 : vector<8x1xf32> to vector<8x16xf32>
    %260 = arith.mulf %255, %259 : vector<8x16xf32>
    %cst_87 = arith.constant dense<0.000000e+00> : vector<8x8xf32>
    %261 = tpu.matmul %260, %246, %cst_87 {dimension_numbers = #tpu.dot_dimension_numbers<[1], [0], [0], [1], [0, 0, 1, 1], [], []>} : vector<8x16xf32>, vector<16x8xf32>, vector<8x8xf32> -> vector<8x8xf32>
    %cst_88 = arith.constant dense<0.000000e+00> : vector<16x8xf32>
    %262 = tpu.matmul %244, %247, %cst_88 {dimension_numbers = #tpu.dot_dimension_numbers<[1], [1], [0], [0], [0, 0, 1, 0], [], []>} : vector<16x8xf32>, vector<8x8xf32>, vector<16x8xf32> -> vector<16x8xf32>
    %cst_89 = arith.constant 0.353553385 : f32
    %263 = vector.broadcast %cst_89 : f32 to vector<16x8xf32>
    %264 = arith.mulf %262, %263 : vector<16x8xf32>
    %cst_90 = arith.constant dense<0xFF800000> : vector<16xf32>
    %265 = vector.multi_reduction <maximumf>, %264, %cst_90 [1] : vector<16x8xf32> to vector<16xf32>
    %266 = vector.shape_cast %265 : vector<16xf32> to vector<16x1xf32>
    %267 = vector.broadcast %266 : vector<16x1xf32> to vector<16x8xf32>
    %268 = arith.subf %264, %267 : vector<16x8xf32>
    %269 = math.exp %268 : vector<16x8xf32>
    %cst_91 = arith.constant dense<0.000000e+00> : vector<16xf32>
    %270 = vector.multi_reduction <add>, %269, %cst_91 [1] : vector<16x8xf32> to vector<16xf32>
    %271 = vector.shape_cast %270 : vector<16xf32> to vector<16x1xf32>
    %272 = tpu.reciprocal %271 : vector<16x1xf32> -> vector<16x1xf32>
    %273 = vector.broadcast %272 : vector<16x1xf32> to vector<16x8xf32>
    %274 = arith.mulf %269, %273 : vector<16x8xf32>
    %cst_92 = arith.constant dense<0.000000e+00> : vector<16x8xf32>
    %275 = tpu.matmul %274, %261, %cst_92 {dimension_numbers = #tpu.dot_dimension_numbers<[1], [0], [0], [1], [0, 0, 1, 1], [], []>} : vector<16x8xf32>, vector<8x8xf32>, vector<16x8xf32> -> vector<16x8xf32>
    %276 = vector.broadcast %14 : vector<16x1xf32> to vector<16x8xf32>
    %277 = arith.mulf %276, %246 : vector<16x8xf32>
    %278 = arith.addf %275, %277 : vector<16x8xf32>
    %279 = vector.extract_strided_slice %8 {offsets = [16, 0], sizes = [8, 32], strides = [1, 1]} : vector<32x32xf32> to vector<8x32xf32>
    %cst_93 = arith.constant dense<0.000000e+00> : vector<16x32xf32>
    %280 = tpu.matmul %278, %279, %cst_93 {dimension_numbers = #tpu.dot_dimension_numbers<[1], [0], [0], [1], [0, 0, 1, 1], [], []>} : vector<16x8xf32>, vector<8x32xf32>, vector<16x32xf32> -> vector<16x32xf32>
    %281 = arith.addf %243, %280 : vector<16x32xf32>
    %282 = vector.extract_strided_slice %2 {offsets = [16, 24], sizes = [16, 8], strides = [1, 1]} : vector<32x32xf32> to vector<16x8xf32>
    %283 = vector.extract_strided_slice %4 {offsets = [16, 24], sizes = [16, 8], strides = [1, 1]} : vector<32x32xf32> to vector<16x8xf32>
    %284 = vector.extract_strided_slice %6 {offsets = [16, 24], sizes = [16, 8], strides = [1, 1]} : vector<32x32xf32> to vector<16x8xf32>
    %285 = vector.extract_strided_slice %7 {offsets = [24, 0], sizes = [8, 8], strides = [1, 1]} : vector<32x8xf32> to vector<8x8xf32>
    %cst_94 = arith.constant dense<0.000000e+00> : vector<8x16xf32>
    %286 = tpu.matmul %285, %283, %cst_94 {dimension_numbers = #tpu.dot_dimension_numbers<[1], [1], [0], [0], [0, 0, 1, 0], [], []>} : vector<8x8xf32>, vector<16x8xf32>, vector<8x16xf32> -> vector<8x16xf32>
    %cst_95 = arith.constant 0.353553385 : f32
    %287 = vector.broadcast %cst_95 : f32 to vector<8x16xf32>
    %288 = arith.mulf %286, %287 : vector<8x16xf32>
    %cst_96 = arith.constant dense<0xFF800000> : vector<8xf32>
    %289 = vector.multi_reduction <maximumf>, %288, %cst_96 [1] : vector<8x16xf32> to vector<8xf32>
    %290 = vector.shape_cast %289 : vector<8xf32> to vector<8x1xf32>
    %291 = vector.broadcast %290 : vector<8x1xf32> to vector<8x16xf32>
    %292 = arith.subf %288, %291 : vector<8x16xf32>
    %293 = math.exp %292 : vector<8x16xf32>
    %cst_97 = arith.constant dense<0.000000e+00> : vector<8xf32>
    %294 = vector.multi_reduction <add>, %293, %cst_97 [1] : vector<8x16xf32> to vector<8xf32>
    %295 = vector.shape_cast %294 : vector<8xf32> to vector<8x1xf32>
    %296 = tpu.reciprocal %295 : vector<8x1xf32> -> vector<8x1xf32>
    %297 = vector.broadcast %296 : vector<8x1xf32> to vector<8x16xf32>
    %298 = arith.mulf %293, %297 : vector<8x16xf32>
    %cst_98 = arith.constant dense<0.000000e+00> : vector<8x8xf32>
    %299 = tpu.matmul %298, %284, %cst_98 {dimension_numbers = #tpu.dot_dimension_numbers<[1], [0], [0], [1], [0, 0, 1, 1], [], []>} : vector<8x16xf32>, vector<16x8xf32>, vector<8x8xf32> -> vector<8x8xf32>
    %cst_99 = arith.constant dense<0.000000e+00> : vector<16x8xf32>
    %300 = tpu.matmul %282, %285, %cst_99 {dimension_numbers = #tpu.dot_dimension_numbers<[1], [1], [0], [0], [0, 0, 1, 0], [], []>} : vector<16x8xf32>, vector<8x8xf32>, vector<16x8xf32> -> vector<16x8xf32>
    %cst_100 = arith.constant 0.353553385 : f32
    %301 = vector.broadcast %cst_100 : f32 to vector<16x8xf32>
    %302 = arith.mulf %300, %301 : vector<16x8xf32>
    %cst_101 = arith.constant dense<0xFF800000> : vector<16xf32>
    %303 = vector.multi_reduction <maximumf>, %302, %cst_101 [1] : vector<16x8xf32> to vector<16xf32>
    %304 = vector.shape_cast %303 : vector<16xf32> to vector<16x1xf32>
    %305 = vector.broadcast %304 : vector<16x1xf32> to vector<16x8xf32>
    %306 = arith.subf %302, %305 : vector<16x8xf32>
    %307 = math.exp %306 : vector<16x8xf32>
    %cst_102 = arith.constant dense<0.000000e+00> : vector<16xf32>
    %308 = vector.multi_reduction <add>, %307, %cst_102 [1] : vector<16x8xf32> to vector<16xf32>
    %309 = vector.shape_cast %308 : vector<16xf32> to vector<16x1xf32>
    %310 = tpu.reciprocal %309 : vector<16x1xf32> -> vector<16x1xf32>
    %311 = vector.broadcast %310 : vector<16x1xf32> to vector<16x8xf32>
    %312 = arith.mulf %307, %311 : vector<16x8xf32>
    %cst_103 = arith.constant dense<0.000000e+00> : vector<16x8xf32>
    %313 = tpu.matmul %312, %299, %cst_103 {dimension_numbers = #tpu.dot_dimension_numbers<[1], [0], [0], [1], [0, 0, 1, 1], [], []>} : vector<16x8xf32>, vector<8x8xf32>, vector<16x8xf32> -> vector<16x8xf32>
    %314 = vector.broadcast %14 : vector<16x1xf32> to vector<16x8xf32>
    %315 = arith.mulf %314, %284 : vector<16x8xf32>
    %316 = arith.addf %313, %315 : vector<16x8xf32>
    %317 = vector.extract_strided_slice %8 {offsets = [24, 0], sizes = [8, 32], strides = [1, 1]} : vector<32x32xf32> to vector<8x32xf32>
    %cst_104 = arith.constant dense<0.000000e+00> : vector<16x32xf32>
    %318 = tpu.matmul %316, %317, %cst_104 {dimension_numbers = #tpu.dot_dimension_numbers<[1], [0], [0], [1], [0, 0, 1, 1], [], []>} : vector<16x8xf32>, vector<8x32xf32>, vector<16x32xf32> -> vector<16x32xf32>
    %319 = arith.addf %281, %318 : vector<16x32xf32>
    %320 = vector.broadcast %9 : vector<1x32xf32> to vector<16x32xf32>
    %321 = arith.addf %319, %320 : vector<16x32xf32>
    %c16 = arith.constant 16 : index
    %c0_105 = arith.constant 0 : index
    %322 = vector.load %arg7[%c16, %c0_105] : memref<32x32xf32, #tpu.memory_space<vmem>>, vector<16x32xf32>
    tpu.vector_store %arg7[%c16, %c0_105], %321 {strides = array<i32>} : memref<32x32xf32, #tpu.memory_space<vmem>>, vector<16x32xf32>,
    return
  }
}

</mosaic_0001>

<llo_original>
// kernel: agent_attention_forward.1
$region0: #{agent_attention_forward.1}
  #allocation0 [shape = 'u32[]', space=smem, size = 0x4, offset = 0x4, fixed_abs, tag = 'smem constant byte address 0x4 - core index']
  #allocation1 [shape = 'u32[144,128]{1,0:T(1,128)}', space=vmem, size = 0x12000, scoped, tag = 'internal scratch']
  %s0 = inlined_call_operand.vmem [shape: f32[32,32], index: 0, kind: input, shape index: {}]
  %s1 = inlined_call_operand.vmem [shape: f32[32,32], index: 1, kind: input, shape index: {}]
  %s2 = inlined_call_operand.vmem [shape: f32[32,32], index: 2, kind: input, shape index: {}]
  %s3 = inlined_call_operand.vmem [shape: f32[32,32], index: 3, kind: input, shape index: {}]
  %s4 = inlined_call_operand.vmem [shape: f32[32,8], index: 4, kind: input, shape index: {}]
  %s5 = inlined_call_operand.vmem [shape: f32[32,32], index: 5, kind: input, shape index: {}]
  %s6 = inlined_call_operand.vmem [shape: f32[1,32], index: 6, kind: input, shape index: {}]
  %s7 = inlined_call_operand.hbm [shape: f32[32,32], index: 7, kind: output, shape index: {}]
  %s8 = sld [smem:[#allocation0]]
  $region38: #{agent_attention_forward.1} parent=0
    _
  %s10 = ssub.s32 1, %s8
  %s11 = scalar_select 0, %s10, %s8
  $region1: #{agent_attention_forward.1} parent=0
    #allocation2 [shape = 'u8[16384]{0}', space=vmem, size = 0x4000, scoped, tag = 'output window, operand 0, single buffered']
    #allocation3 [shape = 's32[1]{0}', space=sflag, size = 0x4, scoped, tag = 'scoped memory for agent_attention_forward.1']
    %12 = vsyncpa [#allocation3], 0
    // Predicated region
    $region2: #{agent_attention_forward.1} parent=1 // pred_check
      _
    $region3: #{agent_attention_forward.1} parent=1 // pred_check_branch
      %14 = sbr.rel (0) target = $region5
    $region4: #{agent_attention_forward.1} parent=1 // pred_region
      _
    $region5: #{agent_attention_forward.1} parent=1 // pred_fallthru
      _
    // Predicated region
    $region6: #{agent_attention_forward.1} parent=1 // pred_check
      _
    $region7: #{agent_attention_forward.1} parent=1 // pred_check_branch
      %16 = sbr.rel (0) target = $region9
    $region8: #{agent_attention_forward.1} parent=1 // pred_region
      _
    $region9: #{agent_attention_forward.1} parent=1 // pred_fallthru
      _
    // Predicated region
    $region10: #{agent_attention_forward.1} parent=1 // pred_check
      _
    $region11: #{agent_attention_forward.1} parent=1 // pred_check_branch
      %18 = sbr.rel (0) target = $region13
    $region12: #{agent_attention_forward.1} parent=1 // pred_region
      _
    $region13: #{agent_attention_forward.1} parent=1 // pred_fallthru
      _
    // Predicated region
    $region14: #{agent_attention_forward.1} parent=1 // pred_check
      _
    $region15: #{agent_attention_forward.1} parent=1 // pred_check_branch
      %20 = sbr.rel (0) target = $region17
    $region16: #{agent_attention_forward.1} parent=1 // pred_region
      _
    $region17: #{agent_attention_forward.1} parent=1 // pred_fallthru
      _
    // Predicated region
    $region18: #{agent_attention_forward.1} parent=1 // pred_check
      _
    $region19: #{agent_attention_forward.1} parent=1 // pred_check_branch
      %22 = sbr.rel (0) target = $region21
    $region20: #{agent_attention_forward.1} parent=1 // pred_region
      _
    $region21: #{agent_attention_forward.1} parent=1 // pred_fallthru
      _
    // Predicated region
    $region22: #{agent_attention_forward.1} parent=1 // pred_check
      _
    $region23: #{agent_attention_forward.1} parent=1 // pred_check_branch
      %24 = sbr.rel (0) target = $region25
    $region24: #{agent_attention_forward.1} parent=1 // pred_region
      _
    $region25: #{agent_attention_forward.1} parent=1 // pred_fallthru
      _
    // Predicated region
    $region26: #{agent_attention_forward.1} parent=1 // pred_check
      _
    $region27: #{agent_attention_forward.1} parent=1 // pred_check_branch
      %26 = sbr.rel (0) target = $region29
    $region28: #{agent_attention_forward.1} parent=1 // pred_region
      _
    $region29: #{agent_attention_forward.1} parent=1 // pred_fallthru
      _
    %v27 = vld [vmem:[%s0] sm:$0xff]
    %v28 = vld [vmem:[%s0 + $0x8] sm:$0xff]
    %v29 = vld [vmem:[%s0 + $0x10] sm:$0xff]
    %v30 = vld [vmem:[%s0 + $0x18] sm:$0xff]
    %v31 = vld [vmem:[%s1] sm:$0xff]
    %v32 = vld [vmem:[%s1 + $0x8] sm:$0xff]
    %v33 = vld [vmem:[%s1 + $0x10] sm:$0xff]
    %v34 = vld [vmem:[%s1 + $0x18] sm:$0xff]
    %vm35 = vcmask 261120
    %v37 = vsel %vm35, %v27, 0
    %v40 = vsel %vm35, %v28, 0
    %v43 = vsel %vm35, %v29, 0
    %v46 = vsel %vm35, %v30, 0
    %48 = vmatprep.subr.mxu0 0.0
    %49 = vmatpush1.msra.mxu0 %v31
    %50 = vmatprep.subr.mxu0 0.0
    %51 = vmatpush1.msra.mxu0 %v32
    %52 = vmatprep.subr.mxu0 0.0
    %53 = vmatpush1.msra.mxu0 %v33
    %54 = vmatprep.subr.mxu0 0.0
    %55 = vmatpush1.msra.mxu0 %v34
    %56 = vmatprep.subr.mxu0 0.0
    %57 = vmatpush1.msra.mxu0 0.0
    %58 = vmatprep.subr.mxu0 0.0
    %59 = vmatpush1.msra.mxu0 0.0
    %60 = vmatprep.subr.mxu0 0.0
    %61 = vmatpush1.msra.mxu0 0.0
    %62 = vmatprep.subr.mxu0 0.0
    %63 = vmatpush1.msra.mxu0 0.0
    %64 = vmatprep.subr.mxu0 0.0
    %65 = vmatpush1.msra.mxu0 0.0
    %66 = vmatprep.subr.mxu0 0.0
    %67 = vmatpush1.msra.mxu0 0.0
    %68 = vmatprep.subr.mxu0 0.0
    %69 = vmatpush1.msra.mxu0 0.0
    %70 = vmatprep.subr.mxu0 0.0
    %71 = vmatpush1.msra.mxu0 0.0
    %72 = vmatprep.subr.mxu0 0.0
    %73 = vmatpush1.msra.mxu0 0.0
    %74 = vmatprep.subr.mxu0 0.0
    %75 = vmatpush1.msra.mxu0 0.0
    %76 = vmatprep.subr.mxu0 0.0
    %77 = vmatpush1.msra.mxu0 0.0
    %78 = vmatprep.subr.mxu0 0.0
    %79 = vmatpush1.msra.mxu0 0.0
    %80 = vmatprep.subr.mxu0 0.0
    %81 = vmatpush1.msra.mxu0 0.0
    %82 = vmatprep.subr.mxu0 0.0
    %83 = vmatpush1.msra.mxu0 0.0
    %84 = vmatprep.subr.mxu0 0.0
    %85 = vmatpush1.msra.mxu0 0.0
    %86 = vmatprep.subr.mxu0 0.0
    %87 = vmatpush1.msra.mxu0 0.0
    %88 = vmatprep.subr.mxu0 0.0
    %89 = vmatpush1.msra.mxu0 0.0
    %90 = vmatprep.subr.mxu0 0.0
    %91 = vmatpush1.msra.mxu0 0.0
    %92 = vmatprep.subr.mxu0 0.0
    %93 = vmatpush1.msra.mxu0 0.0
    %94 = vmatprep.subr.mxu0 0.0
    %95 = vmatpush1.msra.mxu0 0.0
    %96 = vmatprep.subr.mxu0 0.0
    %97 = vmatpush1.msra.mxu0 0.0
    %98 = vmatprep.subr.mxu0 0.0
    %99 = vmatpush1.msra.mxu0 0.0
    %100 = vmatprep.subr.mxu0 0.0
    %101 = vmatpush1.msra.mxu0 0.0
    %102 = vmatprep.subr.mxu0 0.0
    %103 = vmatpush1.msra.mxu0 0.0
    %104 = vmatprep.subr.mxu0 0.0
    %105 = vmatpush1.msra.mxu0 0.0
    %106 = vmatprep.subr.mxu0 0.0
    %107 = vmatpush1.msra.mxu0 0.0
    %108 = vmatprep.subr.mxu0 0.0
    %109 = vmatpush1.msra.mxu0 0.0
    %110 = vmatprep.subr.mxu0 0.0
    %111 = vmatpush1.msra.mxu0 0.0
    %112 = vmatprep.mubr.f32.mxu0 0.0
    %113 = vmatmul.mubr.f32.gmra.mrb[0].mxu0 %v37
    %v114 = vpop.f32.mrb[0].mxu0
    %v115 = vadd.f32 0.0, %v114
    %v116 = vpop.f32.mrb[0].mxu0
    %117 = vmatprep.mubr.f32.mxu0 0.0
    %118 = vmatmul.mubr.f32.gmra.mrb[0].mxu0 %v40
    %v119 = vpop.f32.mrb[0].mxu0
    %v120 = vadd.f32 0.0, %v119
    %v121 = vpop.f32.mrb[0].mxu0
    %122 = vmatprep.mubr.f32.mxu0 0.0
    %123 = vmatmul.mubr.f32.gmra.mrb[0].mxu0 %v43
    %v124 = vpop.f32.mrb[0].mxu0
    %v125 = vadd.f32 0.0, %v124
    %v126 = vpop.f32.mrb[0].mxu0
    %127 = vmatprep.mubr.f32.mxu0 0.0
    %128 = vmatmul.mubr.f32.gmra.mrb[0].mxu0 %v46
    %v129 = vpop.f32.mrb[0].mxu0
    %v130 = vadd.f32 0.0, %v129
    %v131 = vpop.f32.mrb[0].mxu0
    %132 = vdwg.mxu0
    %v133 = vld [vmem:[%s2] sm:$0xff]
    %v134 = vld [vmem:[%s2 + $0x8] sm:$0xff]
    %v135 = vld [vmem:[%s2 + $0x10] sm:$0xff]
    %v136 = vld [vmem:[%s2 + $0x18] sm:$0xff]
    %137 = vmatprep.subr.mxu0 0.0
    %138 = vmatpush1.msra.mxu0 %v133
    %139 = vmatprep.subr.mxu0 0.0
    %140 = vmatpush1.msra.mxu0 %v134
    %141 = vmatprep.subr.mxu0 0.0
    %142 = vmatpush1.msra.mxu0 %v135
    %143 = vmatprep.subr.mxu0 0.0
    %144 = vmatpush1.msra.mxu0 %v136
    %145 = vmatprep.subr.mxu0 0.0
    %146 = vmatpush1.msra.mxu0 0.0
    %147 = vmatprep.subr.mxu0 0.0
    %148 = vmatpush1.msra.mxu0 0.0
    %149 = vmatprep.subr.mxu0 0.0
    %150 = vmatpush1.msra.mxu0 0.0
    %151 = vmatprep.subr.mxu0 0.0
    %152 = vmatpush1.msra.mxu0 0.0
    %153 = vmatprep.subr.mxu0 0.0
    %154 = vmatpush1.msra.mxu0 0.0
    %155 = vmatprep.subr.mxu0 0.0
    %156 = vmatpush1.msra.mxu0 0.0
    %157 = vmatprep.subr.mxu0 0.0
    %158 = vmatpush1.msra.mxu0 0.0
    %159 = vmatprep.subr.mxu0 0.0
    %160 = vmatpush1.msra.mxu0 0.0
    %161 = vmatprep.subr.mxu0 0.0
    %162 = vmatpush1.msra.mxu0 0.0
    %163 = vmatprep.subr.mxu0 0.0
    %164 = vmatpush1.msra.mxu0 0.0
    %165 = vmatprep.subr.mxu0 0.0
    %166 = vmatpush1.msra.mxu0 0.0
    %167 = vmatprep.subr.mxu0 0.0
    %168 = vmatpush1.msra.mxu0 0.0
    %169 = vmatprep.subr.mxu0 0.0
    %170 = vmatpush1.msra.mxu0 0.0
    %171 = vmatprep.subr.mxu0 0.0
    %172 = vmatpush1.msra.mxu0 0.0
    %173 = vmatprep.subr.mxu0 0.0
    %174 = vmatpush1.msra.mxu0 0.0
    %175 = vmatprep.subr.mxu0 0.0
    %176 = vmatpush1.msra.mxu0 0.0
    %177 = vmatprep.subr.mxu0 0.0
    %178 = vmatpush1.msra.mxu0 0.0
    %179 = vmatprep.subr.mxu0 0.0
    %180 = vmatpush1.msra.mxu0 0.0
    %181 = vmatprep.subr.mxu0 0.0
    %182 = vmatpush1.msra.mxu0 0.0
    %183 = vmatprep.subr.mxu0 0.0
    %184 = vmatpush1.msra.mxu0 0.0
    %185 = vmatprep.subr.mxu0 0.0
    %186 = vmatpush1.msra.mxu0 0.0
    %187 = vmatprep.subr.mxu0 0.0
    %188 = vmatpush1.msra.mxu0 0.0
    %189 = vmatprep.subr.mxu0 0.0
    %190 = vmatpush1.msra.mxu0 0.0
    %191 = vmatprep.subr.mxu0 0.0
    %192 = vmatpush1.msra.mxu0 0.0
    %193 = vmatprep.subr.mxu0 0.0
    %194 = vmatpush1.msra.mxu0 0.0
    %195 = vmatprep.subr.mxu0 0.0
    %196 = vmatpush1.msra.mxu0 0.0
    %197 = vmatprep.subr.mxu0 0.0
    %198 = vmatpush1.msra.mxu0 0.0
    %199 = vmatprep.subr.mxu0 0.0
    %200 = vmatpush1.msra.mxu0 0.0
    %201 = vmatprep.mubr.f32.mxu0 0.0
    %202 = vmatmul.mubr.f32.gmra.mrb[0].mxu0 %v37
    %v203 = vpop.f32.mrb[0].mxu0
    %v204 = vadd.f32 0.0, %v203
    %v205 = vpop.f32.mrb[0].mxu0
    %206 = vmatprep.mubr.f32.mxu0 0.0
    %207 = vmatmul.mubr.f32.gmra.mrb[0].mxu0 %v40
    %v208 = vpop.f32.mrb[0].mxu0
    %v209 = vadd.f32 0.0, %v208
    %v210 = vpop.f32.mrb[0].mxu0
    %211 = vmatprep.mubr.f32.mxu0 0.0
    %212 = vmatmul.mubr.f32.gmra.mrb[0].mxu0 %v43
    %v213 = vpop.f32.mrb[0].mxu0
    %v214 = vadd.f32 0.0, %v213
    %v215 = vpop.f32.mrb[0].mxu0
    %216 = vmatprep.mubr.f32.mxu0 0.0
    %217 = vmatmul.mubr.f32.gmra.mrb[0].mxu0 %v46
    %v218 = vpop.f32.mrb[0].mxu0
    %v219 = vadd.f32 0.0, %v218
    %v220 = vpop.f32.mrb[0].mxu0
    %221 = vdwg.mxu0
    %v222 = vld [vmem:[%s3] sm:$0xff]
    %v223 = vld [vmem:[%s3 + $0x8] sm:$0xff]
    %v224 = vld [vmem:[%s3 + $0x10] sm:$0xff]
    %v225 = vld [vmem:[%s3 + $0x18] sm:$0xff]
    %226 = vmatprep.subr.mxu0 0.0
    %227 = vmatpush1.msra.mxu0 %v222
    %228 = vmatprep.subr.mxu0 0.0
    %229 = vmatpush1.msra.mxu0 %v223
    %230 = vmatprep.subr.mxu0 0.0
    %231 = vmatpush1.msra.mxu0 %v224
    %232 = vmatprep.subr.mxu0 0.0
    %233 = vmatpush1.msra.mxu0 %v225
    %234 = vmatprep.subr.mxu0 0.0
    %235 = vmatpush1.msra.mxu0 0.0
    %236 = vmatprep.subr.mxu0 0.0
    %237 = vmatpush1.msra.mxu0 0.0
    %238 = vmatprep.subr.mxu0 0.0
    %239 = vmatpush1.msra.mxu0 0.0
    %240 = vmatprep.subr.mxu0 0.0
    %241 = vmatpush1.msra.mxu0 0.0
    %242 = vmatprep.subr.mxu0 0.0
    %243 = vmatpush1.msra.mxu0 0.0
    %244 = vmatprep.subr.mxu0 0.0
    %245 = vmatpush1.msra.mxu0 0.0
    %246 = vmatprep.subr.mxu0 0.0
    %247 = vmatpush1.msra.mxu0 0.0
    %248 = vmatprep.subr.mxu0 0.0
    %249 = vmatpush1.msra.mxu0 0.0
    %250 = vmatprep.subr.mxu0 0.0
    %251 = vmatpush1.msra.mxu0 0.0
    %252 = vmatprep.subr.mxu0 0.0
    %253 = vmatpush1.msra.mxu0 0.0
    %254 = vmatprep.subr.mxu0 0.0
    %255 = vmatpush1.msra.mxu0 0.0
    %256 = vmatprep.subr.mxu0 0.0
    %257 = vmatpush1.msra.mxu0 0.0
    %258 = vmatprep.subr.mxu0 0.0
    %259 = vmatpush1.msra.mxu0 0.0
    %260 = vmatprep.subr.mxu0 0.0
    %261 = vmatpush1.msra.mxu0 0.0
    %262 = vmatprep.subr.mxu0 0.0
    %263 = vmatpush1.msra.mxu0 0.0
    %264 = vmatprep.subr.mxu0 0.0
    %265 = vmatpush1.msra.mxu0 0.0
    %266 = vmatprep.subr.mxu0 0.0
    %267 = vmatpush1.msra.mxu0 0.0
    %268 = vmatprep.subr.mxu0 0.0
    %269 = vmatpush1.msra.mxu0 0.0
    %270 = vmatprep.subr.mxu0 0.0
    %271 = vmatpush1.msra.mxu0 0.0
    %272 = vmatprep.subr.mxu0 0.0
    %273 = vmatpush1.msra.mxu0 0.0
    %274 = vmatprep.subr.mxu0 0.0
    %275 = vmatpush1.msra.mxu0 0.0
    %276 = vmatprep.subr.mxu0 0.0
    %277 = vmatpush1.msra.mxu0 0.0
    %278 = vmatprep.subr.mxu0 0.0
    %279 = vmatpush1.msra.mxu0 0.0
    %280 = vmatprep.subr.mxu0 0.0
    %281 = vmatpush1.msra.mxu0 0.0
    %282 = vmatprep.subr.mxu0 0.0
    %283 = vmatpush1.msra.mxu0 0.0
    %284 = vmatprep.subr.mxu0 0.0
    %285 = vmatpush1.msra.mxu0 0.0
    %286 = vmatprep.subr.mxu0 0.0
    %287 = vmatpush1.msra.mxu0 0.0
    %288 = vmatprep.subr.mxu0 0.0
    %289 = vmatpush1.msra.mxu0 0.0
    %290 = vmatprep.mubr.f32.mxu0 0.0
    %291 = vmatmul.mubr.f32.gmra.mrb[0].mxu0 %v37
    %v292 = vpop.f32.mrb[0].mxu0
    %v293 = vadd.f32 0.0, %v292
    %v294 = vpop.f32.mrb[0].mxu0
    %295 = vmatprep.mubr.f32.mxu0 0.0
    %296 = vmatmul.mubr.f32.gmra.mrb[0].mxu0 %v40
    %v297 = vpop.f32.mrb[0].mxu0
    %v298 = vadd.f32 0.0, %v297
    %v299 = vpop.f32.mrb[0].mxu0
    %300 = vmatprep.mubr.f32.mxu0 0.0
    %301 = vmatmul.mubr.f32.gmra.mrb[0].mxu0 %v43
    %v302 = vpop.f32.mrb[0].mxu0
    %v303 = vadd.f32 0.0, %v302
    %v304 = vpop.f32.mrb[0].mxu0
    %305 = vmatprep.mubr.f32.mxu0 0.0
    %306 = vmatmul.mubr.f32.gmra.mrb[0].mxu0 %v46
    %v307 = vpop.f32.mrb[0].mxu0
    %v308 = vadd.f32 0.0, %v307
    %v309 = vpop.f32.mrb[0].mxu0
    %310 = vdwg.mxu0
    %v311 = vld [vmem:[%s4] sm:$0xff]
    %v312 = vld [vmem:[%s4 + $0x8] sm:$0xff]
    %v313 = vld [vmem:[%s4 + $0x10] sm:$0xff]
    %v314 = vld [vmem:[%s4 + $0x18] sm:$0xff]
    %v315 = vld [vmem:[%s5] sm:$0xff]
    %v316 = vld [vmem:[%s5 + $0x8] sm:$0xff]
    %v317 = vld [vmem:[%s5 + $0x10] sm:$0xff]
    %v318 = vld [vmem:[%s5 + $0x18] sm:$0xff]
    %v319 = vld [vmem:[%s6] sm:$0x1]
    %v320 = vlaneseq
    %v321 = vshrl.u32 %v320, 7
    %v322 = vadd.s32 %v321, 8
    %vm323 = vcmp.gt.s32.totalorder %v321, 0
    %vm324 = vcmp.gt.s32.totalorder %v322, 0
    %v325 = vsel %vm323, 1, 0
    %v326 = vsel %vm324, 1, 0
    %v327 = vcvt.s32.f32 %v325
    %v328 = vcvt.s32.f32 %v326
    %vm329 = vcmask 64512
    %v331 = vsel %vm329, %v311, 0
    %v334 = vsel %vm329, %v204, 0
    %v337 = vsel %vm329, %v209, 0
    %339 = vmatprep.subr.mxu0 0.0
    %340 = vmatpush1.xpose.msra.mxu0 %v334
    %341 = vmatprep.subr.mxu0 0.0
    %342 = vmatpush1.xpose.msra.mxu0 %v337
    %343 = vmatprep.subr.mxu0 0.0
    %344 = vmatpush1.xpose.msra.mxu0 0.0
    %345 = vmatprep.subr.mxu0 0.0
    %346 = vmatpush1.xpose.msra.mxu0 0.0
    %347 = vmatprep.subr.mxu0 0.0
    %348 = vmatpush1.xpose.msra.mxu0 0.0
    %349 = vmatprep.subr.mxu0 0.0
    %350 = vmatpush1.xpose.msra.mxu0 0.0
    %351 = vmatprep.subr.mxu0 0.0
    %352 = vmatpush1.xpose.msra.mxu0 0.0
    %353 = vmatprep.subr.mxu0 0.0
    %354 = vmatpush1.xpose.msra.mxu0 0.0
    %355 = vmatprep.subr.mxu0 0.0
    %356 = vmatpush1.xpose.msra.mxu0 0.0
    %357 = vmatprep.subr.mxu0 0.0
    %358 = vmatpush1.xpose.msra.mxu0 0.0
    %359 = vmatprep.subr.mxu0 0.0
    %360 = vmatpush1.xpose.msra.mxu0 0.0
    %361 = vmatprep.subr.mxu0 0.0
    %362 = vmatpush1.xpose.msra.mxu0 0.0
    %363 = vmatprep.subr.mxu0 0.0
    %364 = vmatpush1.xpose.msra.mxu0 0.0
    %365 = vmatprep.subr.mxu0 0.0
    %366 = vmatpush1.xpose.msra.mxu0 0.0
    %367 = vmatprep.subr.mxu0 0.0
    %368 = vmatpush1.xpose.msra.mxu0 0.0
    %369 = vmatprep.subr.mxu0 0.0
    %370 = vmatpush1.xpose.msra.mxu0 0.0
    %371 = vmatprep.subr.mxu0 0.0
    %372 = vmatpush1.xpose.msra.mxu0 0.0
    %373 = vmatprep.subr.mxu0 0.0
    %374 = vmatpush1.xpose.msra.mxu0 0.0
    %375 = vmatprep.subr.mxu0 0.0
    %376 = vmatpush1.xpose.msra.mxu0 0.0
    %377 = vmatprep.subr.mxu0 0.0
    %378 = vmatpush1.xpose.msra.mxu0 0.0
    %379 = vmatprep.subr.mxu0 0.0
    %380 = vmatpush1.xpose.msra.mxu0 0.0
    %381 = vmatprep.subr.mxu0 0.0
    %382 = vmatpush1.xpose.msra.mxu0 0.0
    %383 = vmatprep.subr.mxu0 0.0
    %384 = vmatpush1.xpose.msra.mxu0 0.0
    %385 = vmatprep.subr.mxu0 0.0
    %386 = vmatpush1.xpose.msra.mxu0 0.0
    %387 = vmatprep.subr.mxu0 0.0
    %388 = vmatpush1.xpose.msra.mxu0 0.0
    %389 = vmatprep.subr.mxu0 0.0
    %390 = vmatpush1.xpose.msra.mxu0 0.0
    %391 = vmatprep.subr.mxu0 0.0
    %392 = vmatpush1.xpose.msra.mxu0 0.0
    %393 = vmatprep.subr.mxu0 0.0
    %394 = vmatpush1.xpose.msra.mxu0 0.0
    %395 = vmatprep.subr.mxu0 0.0
    %396 = vmatpush1.xpose.msra.mxu0 0.0
    %397 = vmatprep.subr.mxu0 0.0
    %398 = vmatpush1.xpose.msra.mxu0 0.0
    %399 = vmatprep.subr.mxu0 0.0
    %400 = vmatpush1.xpose.msra.mxu0 0.0
    %401 = vmatprep.subr.mxu0 0.0
    %402 = vmatpush1.xpose.msra.mxu0 0.0
    %403 = vmatprep.mubr.f32.mxu0 0.0
    %404 = vmatmul.mubr.f32.gmra.mrb[0].mxu0 %v331
    %v405 = vpop.f32.mrb[0].mxu0
    %v406 = vadd.f32 0.0, %v405
    %v407 = vpop.f32.mrb[0].mxu0
    %408 = vdwg.mxu0
    %v409 = vmul.f32 %v406, 0.35355338
    %vm410 = vcmask 130048
    %v411 = vsel %vm410, %v409, -inf
    %412 = vmax.xlane.f32.xlu0 %v411
    %v413 = vpop.xlane.xlu0 %412
    %v414 = vsub.f32 %v409, %v413
    %v415 = vmul.f32 %v414, 1.442695
    %v416 = vpow.pop %v415
    %v417 = vsel %vm410, %v416, 0.0
    %418 = vadd.xlane.f32.xlu0 %v417
    %v419 = vpop.xlane.xlu0 %418
    %v420 = vrcp.pop %v419
    %v421 = vmul.f32 %v416, %v420
    %v423 = vsel %vm410, %v421, 0
    %425 = vmatprep.subr.mxu0 0.0
    %426 = vmatpush1.msra.mxu0 %v293
    %427 = vmatprep.subr.mxu0 0.0
    %428 = vmatpush1.msra.mxu0 %v298
    %429 = vmatprep.subr.mxu0 0.0
    %430 = vmatpush1.msra.mxu0 0.0
    %431 = vmatprep.subr.mxu0 0.0
    %432 = vmatpush1.msra.mxu0 0.0
    %433 = vmatprep.subr.mxu0 0.0
    %434 = vmatpush1.msra.mxu0 0.0
    %435 = vmatprep.subr.mxu0 0.0
    %436 = vmatpush1.msra.mxu0 0.0
    %437 = vmatprep.subr.mxu0 0.0
    %438 = vmatpush1.msra.mxu0 0.0
    %439 = vmatprep.subr.mxu0 0.0
    %440 = vmatpush1.msra.mxu0 0.0
    %441 = vmatprep.subr.mxu0 0.0
    %442 = vmatpush1.msra.mxu0 0.0
    %443 = vmatprep.subr.mxu0 0.0
    %444 = vmatpush1.msra.mxu0 0.0
    %445 = vmatprep.subr.mxu0 0.0
    %446 = vmatpush1.msra.mxu0 0.0
    %447 = vmatprep.subr.mxu0 0.0
    %448 = vmatpush1.msra.mxu0 0.0
    %449 = vmatprep.subr.mxu0 0.0
    %450 = vmatpush1.msra.mxu0 0.0
    %451 = vmatprep.subr.mxu0 0.0
    %452 = vmatpush1.msra.mxu0 0.0
    %453 = vmatprep.subr.mxu0 0.0
    %454 = vmatpush1.msra.mxu0 0.0
    %455 = vmatprep.subr.mxu0 0.0
    %456 = vmatpush1.msra.mxu0 0.0
    %457 = vmatprep.subr.mxu0 0.0
    %458 = vmatpush1.msra.mxu0 0.0
    %459 = vmatprep.subr.mxu0 0.0
    %460 = vmatpush1.msra.mxu0 0.0
    %461 = vmatprep.subr.mxu0 0.0
    %462 = vmatpush1.msra.mxu0 0.0
    %463 = vmatprep.subr.mxu0 0.0
    %464 = vmatpush1.msra.mxu0 0.0
    %465 = vmatprep.subr.mxu0 0.0
    %466 = vmatpush1.msra.mxu0 0.0
    %467 = vmatprep.subr.mxu0 0.0
    %468 = vmatpush1.msra.mxu0 0.0
    %469 = vmatprep.subr.mxu0 0.0
    %470 = vmatpush1.msra.mxu0 0.0
    %471 = vmatprep.subr.mxu0 0.0
    %472 = vmatpush1.msra.mxu0 0.0
    %473 = vmatprep.subr.mxu0 0.0
    %474 = vmatpush1.msra.mxu0 0.0
    %475 = vmatprep.subr.mxu0 0.0
    %476 = vmatpush1.msra.mxu0 0.0
    %477 = vmatprep.subr.mxu0 0.0
    %478 = vmatpush1.msra.mxu0 0.0
    %479 = vmatprep.subr.mxu0 0.0
    %480 = vmatpush1.msra.mxu0 0.0
    %481 = vmatprep.subr.mxu0 0.0
    %482 = vmatpush1.msra.mxu0 0.0
    %483 = vmatprep.subr.mxu0 0.0
    %484 = vmatpush1.msra.mxu0 0.0
    %485 = vmatprep.subr.mxu0 0.0
    %486 = vmatpush1.msra.mxu0 0.0
    %487 = vmatprep.subr.mxu0 0.0
    %488 = vmatpush1.msra.mxu0 0.0
    %489 = vmatprep.mubr.f32.mxu0 0.0
    %490 = vmatmul.mubr.f32.gmra.mrb[0].mxu0 %v423
    %v491 = vpop.f32.mrb[0].mxu0
    %v492 = vadd.f32 0.0, %v491
    %v493 = vpop.f32.mrb[0].mxu0
    %494 = vdwg.mxu0
    %v496 = vsel %vm329, %v115, 0
    %v499 = vsel %vm329, %v120, 0
    %501 = vmatprep.subr.mxu0 0.0
    %502 = vmatpush1.xpose.msra.mxu0 %v331
    %503 = vmatprep.subr.mxu0 0.0
    %504 = vmatpush1.xpose.msra.mxu0 0.0
    %505 = vmatprep.subr.mxu0 0.0
    %506 = vmatpush1.xpose.msra.mxu0 0.0
    %507 = vmatprep.subr.mxu0 0.0
    %508 = vmatpush1.xpose.msra.mxu0 0.0
    %509 = vmatprep.subr.mxu0 0.0
    %510 = vmatpush1.xpose.msra.mxu0 0.0
    %511 = vmatprep.subr.mxu0 0.0
    %512 = vmatpush1.xpose.msra.mxu0 0.0
    %513 = vmatprep.subr.mxu0 0.0
    %514 = vmatpush1.xpose.msra.mxu0 0.0
    %515 = vmatprep.subr.mxu0 0.0
    %516 = vmatpush1.xpose.msra.mxu0 0.0
    %517 = vmatprep.subr.mxu0 0.0
    %518 = vmatpush1.xpose.msra.mxu0 0.0
    %519 = vmatprep.subr.mxu0 0.0
    %520 = vmatpush1.xpose.msra.mxu0 0.0
    %521 = vmatprep.subr.mxu0 0.0
    %522 = vmatpush1.xpose.msra.mxu0 0.0
    %523 = vmatprep.subr.mxu0 0.0
    %524 = vmatpush1.xpose.msra.mxu0 0.0
    %525 = vmatprep.subr.mxu0 0.0
    %526 = vmatpush1.xpose.msra.mxu0 0.0
    %527 = vmatprep.subr.mxu0 0.0
    %528 = vmatpush1.xpose.msra.mxu0 0.0
    %529 = vmatprep.subr.mxu0 0.0
    %530 = vmatpush1.xpose.msra.mxu0 0.0
    %531 = vmatprep.subr.mxu0 0.0
    %532 = vmatpush1.xpose.msra.mxu0 0.0
    %533 = vmatprep.subr.mxu0 0.0
    %534 = vmatpush1.xpose.msra.mxu0 0.0
    %535 = vmatprep.subr.mxu0 0.0
    %536 = vmatpush1.xpose.msra.mxu0 0.0
    %537 = vmatprep.subr.mxu0 0.0
    %538 = vmatpush1.xpose.msra.mxu0 0.0
    %539 = vmatprep.subr.mxu0 0.0
    %540 = vmatpush1.xpose.msra.mxu0 0.0
    %541 = vmatprep.subr.mxu0 0.0
    %542 = vmatpush1.xpose.msra.mxu0 0.0
    %543 = vmatprep.subr.mxu0 0.0
    %544 = vmatpush1.xpose.msra.mxu0 0.0
    %545 = vmatprep.subr.mxu0 0.0
    %546 = vmatpush1.xpose.msra.mxu0 0.0
    %547 = vmatprep.subr.mxu0 0.0
    %548 = vmatpush1.xpose.msra.mxu0 0.0
    %549 = vmatprep.subr.mxu0 0.0
    %550 = vmatpush1.xpose.msra.mxu0 0.0
    %551 = vmatprep.subr.mxu0 0.0
    %552 = vmatpush1.xpose.msra.mxu0 0.0
    %553 = vmatprep.subr.mxu0 0.0
    %554 = vmatpush1.xpose.msra.mxu0 0.0
    %555 = vmatprep.subr.mxu0 0.0
    %556 = vmatpush1.xpose.msra.mxu0 0.0
    %557 = vmatprep.subr.mxu0 0.0
    %558 = vmatpush1.xpose.msra.mxu0 0.0
    %559 = vmatprep.subr.mxu0 0.0
    %560 = vmatpush1.xpose.msra.mxu0 0.0
    %561 = vmatprep.subr.mxu0 0.0
    %562 = vmatpush1.xpose.msra.mxu0 0.0
    %563 = vmatprep.subr.mxu0 0.0
    %564 = vmatpush1.xpose.msra.mxu0 0.0
    %565 = vmatprep.mubr.f32.mxu0 0.0
    %566 = vmatmul.mubr.f32.gmra.mrb[0].mxu0 %v496
    %v567 = vpop.f32.mrb[0].mxu0
    %v568 = vadd.f32 0.0, %v567
    %v569 = vpop.f32.mrb[0].mxu0
    %570 = vmatprep.mubr.f32.mxu0 0.0
    %571 = vmatmul.mubr.f32.gmra.mrb[0].mxu0 %v499
    %v572 = vpop.f32.mrb[0].mxu0
    %v573 = vadd.f32 0.0, %v572
    %v574 = vpop.f32.mrb[0].mxu0
    %575 = vdwg.mxu0
    %v576 = vmul.f32 %v568, 0.35355338
    %v577 = vmul.f32 %v573, 0.35355338
    %v578 = vsel %vm329, %v576, -inf
    %579 = vmax.xlane.f32.xlu0 %v578
    %v580 = vpop.xlane.xlu0 %579
    %v581 = vsel %vm329, %v577, -inf
    %582 = vmax.xlane.f32.xlu0 %v581
    %v583 = vpop.xlane.xlu0 %582
    %v584 = vsub.f32 %v576, %v580
    %v585 = vsub.f32 %v577, %v583
    %v586 = vmul.f32 %v584, 1.442695
    %v587 = vpow.pop %v586
    %v588 = vmul.f32 %v585, 1.442695
    %v589 = vpow.pop %v588
    %v590 = vsel %vm329, %v587, 0.0
    %591 = vadd.xlane.f32.xlu0 %v590
    %v592 = vpop.xlane.xlu0 %591
    %v593 = vsel %vm329, %v589, 0.0
    %594 = vadd.xlane.f32.xlu0 %v593
    %v595 = vpop.xlane.xlu0 %594
    %v596 = vrcp.pop %v592
    %v597 = vrcp.pop %v595
    %v598 = vmul.f32 %v587, %v596
    %v599 = vmul.f32 %v589, %v597
    %v600 = vmul.f32 %v327, %v293
    %v601 = vmul.f32 %v328, %v298
    %v603 = vsel %vm329, %v598, 0
    %v606 = vsel %vm329, %v599, 0
    %608 = vmatprep.subr.mxu0 0.0
    %609 = vmatpush1.msra.mxu0 %v492
    %610 = vmatprep.subr.mxu0 0.0
    %611 = vmatpush1.msra.mxu0 0.0
    %612 = vmatprep.subr.mxu0 0.0
    %613 = vmatpush1.msra.mxu0 0.0
    %614 = vmatprep.subr.mxu0 0.0
    %615 = vmatpush1.msra.mxu0 0.0
    %616 = vmatprep.subr.mxu0 0.0
    %617 = vmatpush1.msra.mxu0 0.0
    %618 = vmatprep.subr.mxu0 0.0
    %619 = vmatpush1.msra.mxu0 0.0
    %620 = vmatprep.subr.mxu0 0.0
    %621 = vmatpush1.msra.mxu0 0.0
    %622 = vmatprep.subr.mxu0 0.0
    %623 = vmatpush1.msra.mxu0 0.0
    %624 = vmatprep.subr.mxu0 0.0
    %625 = vmatpush1.msra.mxu0 0.0
    %626 = vmatprep.subr.mxu0 0.0
    %627 = vmatpush1.msra.mxu0 0.0
    %628 = vmatprep.subr.mxu0 0.0
    %629 = vmatpush1.msra.mxu0 0.0
    %630 = vmatprep.subr.mxu0 0.0
    %631 = vmatpush1.msra.mxu0 0.0
    %632 = vmatprep.subr.mxu0 0.0
    %633 = vmatpush1.msra.mxu0 0.0
    %634 = vmatprep.subr.mxu0 0.0
    %635 = vmatpush1.msra.mxu0 0.0
    %636 = vmatprep.subr.mxu0 0.0
    %637 = vmatpush1.msra.mxu0 0.0
    %638 = vmatprep.subr.mxu0 0.0
    %639 = vmatpush1.msra.mxu0 0.0
    %640 = vmatprep.subr.mxu0 0.0
    %641 = vmatpush1.msra.mxu0 0.0
    %642 = vmatprep.subr.mxu0 0.0
    %643 = vmatpush1.msra.mxu0 0.0
    %644 = vmatprep.subr.mxu0 0.0
    %645 = vmatpush1.msra.mxu0 0.0
    %646 = vmatprep.subr.mxu0 0.0
    %647 = vmatpush1.msra.mxu0 0.0
    %648 = vmatprep.subr.mxu0 0.0
    %649 = vmatpush1.msra.mxu0 0.0
    %650 = vmatprep.subr.mxu0 0.0
    %651 = vmatpush1.msra.mxu0 0.0
    %652 = vmatprep.subr.mxu0 0.0
    %653 = vmatpush1.msra.mxu0 0.0
    %654 = vmatprep.subr.mxu0 0.0
    %655 = vmatpush1.msra.mxu0 0.0
    %656 = vmatprep.subr.mxu0 0.0
    %657 = vmatpush1.msra.mxu0 0.0
    %658 = vmatprep.subr.mxu0 0.0
    %659 = vmatpush1.msra.mxu0 0.0
    %660 = vmatprep.subr.mxu0 0.0
    %661 = vmatpush1.msra.mxu0 0.0
    %662 = vmatprep.subr.mxu0 0.0
    %663 = vmatpush1.msra.mxu0 0.0
    %664 = vmatprep.subr.mxu0 0.0
    %665 = vmatpush1.msra.mxu0 0.0
    %666 = vmatprep.subr.mxu0 0.0
    %667 = vmatpush1.msra.mxu0 0.0
    %668 = vmatprep.subr.mxu0 0.0
    %669 = vmatpush1.msra.mxu0 0.0
    %670 = vmatprep.subr.mxu0 0.0
    %671 = vmatpush1.msra.mxu0 0.0
    %672 = vmatprep.mubr.f32.mxu0 0.0
    %673 = vmatmul.mubr.f32.gmra.mrb[0].mxu0 %v603
    %v674 = vpop.f32.mrb[0].mxu0
    %v675 = vadd.f32 %v600, %v674
    %v676 = vpop.f32.mrb[0].mxu0
    %677 = vmatprep.mubr.f32.mxu0 0.0
    %678 = vmatmul.mubr.f32.gmra.mrb[0].mxu0 %v606
    %v679 = vpop.f32.mrb[0].mxu0
    %v680 = vadd.f32 %v601, %v679
    %v681 = vpop.f32.mrb[0].mxu0
    %682 = vdwg.mxu0
    %683 = vrot.lane.b32.xlu0 %v204, 120
    %v684 = vpop.permute.xlu0 %683
    %685 = vrot.lane.b32.xlu0 %v209, 120
    %v686 = vpop.permute.xlu0 %685
    %v688 = vsel %vm329, %v312, 0
    %v690 = vsel %vm329, %v684, 0
    %v692 = vsel %vm329, %v686, 0
    %694 = vmatprep.subr.mxu0 0.0
    %695 = vmatpush1.xpose.msra.mxu0 %v690
    %696 = vmatprep.subr.mxu0 0.0
    %697 = vmatpush1.xpose.msra.mxu0 %v692
    %698 = vmatprep.subr.mxu0 0.0
    %699 = vmatpush1.xpose.msra.mxu0 0.0
    %700 = vmatprep.subr.mxu0 0.0
    %701 = vmatpush1.xpose.msra.mxu0 0.0
    %702 = vmatprep.subr.mxu0 0.0
    %703 = vmatpush1.xpose.msra.mxu0 0.0
    %704 = vmatprep.subr.mxu0 0.0
    %705 = vmatpush1.xpose.msra.mxu0 0.0
    %706 = vmatprep.subr.mxu0 0.0
    %707 = vmatpush1.xpose.msra.mxu0 0.0
    %708 = vmatprep.subr.mxu0 0.0
    %709 = vmatpush1.xpose.msra.mxu0 0.0
    %710 = vmatprep.subr.mxu0 0.0
    %711 = vmatpush1.xpose.msra.mxu0 0.0
    %712 = vmatprep.subr.mxu0 0.0
    %713 = vmatpush1.xpose.msra.mxu0 0.0
    %714 = vmatprep.subr.mxu0 0.0
    %715 = vmatpush1.xpose.msra.mxu0 0.0
    %716 = vmatprep.subr.mxu0 0.0
    %717 = vmatpush1.xpose.msra.mxu0 0.0
    %718 = vmatprep.subr.mxu0 0.0
    %719 = vmatpush1.xpose.msra.mxu0 0.0
    %720 = vmatprep.subr.mxu0 0.0
    %721 = vmatpush1.xpose.msra.mxu0 0.0
    %722 = vmatprep.subr.mxu0 0.0
    %723 = vmatpush1.xpose.msra.mxu0 0.0
    %724 = vmatprep.subr.mxu0 0.0
    %725 = vmatpush1.xpose.msra.mxu0 0.0
    %726 = vmatprep.subr.mxu0 0.0
    %727 = vmatpush1.xpose.msra.mxu0 0.0
    %728 = vmatprep.subr.mxu0 0.0
    %729 = vmatpush1.xpose.msra.mxu0 0.0
    %730 = vmatprep.subr.mxu0 0.0
    %731 = vmatpush1.xpose.msra.mxu0 0.0
    %732 = vmatprep.subr.mxu0 0.0
    %733 = vmatpush1.xpose.msra.mxu0 0.0
    %734 = vmatprep.subr.mxu0 0.0
    %735 = vmatpush1.xpose.msra.mxu0 0.0
    %736 = vmatprep.subr.mxu0 0.0
    %737 = vmatpush1.xpose.msra.mxu0 0.0
    %738 = vmatprep.subr.mxu0 0.0
    %739 = vmatpush1.xpose.msra.mxu0 0.0
    %740 = vmatprep.subr.mxu0 0.0
    %741 = vmatpush1.xpose.msra.mxu0 0.0
    %742 = vmatprep.subr.mxu0 0.0
    %743 = vmatpush1.xpose.msra.mxu0 0.0
    %744 = vmatprep.subr.mxu0 0.0
    %745 = vmatpush1.xpose.msra.mxu0 0.0
    %746 = vmatprep.subr.mxu0 0.0
    %747 = vmatpush1.xpose.msra.mxu0 0.0
    %748 = vmatprep.subr.mxu0 0.0
    %749 = vmatpush1.xpose.msra.mxu0 0.0
    %750 = vmatprep.subr.mxu0 0.0
    %751 = vmatpush1.xpose.msra.mxu0 0.0
    %752 = vmatprep.subr.mxu0 0.0
    %753 = vmatpush1.xpose.msra.mxu0 0.0
    %754 = vmatprep.subr.mxu0 0.0
    %755 = vmatpush1.xpose.msra.mxu0 0.0
    %756 = vmatprep.subr.mxu0 0.0
    %757 = vmatpush1.xpose.msra.mxu0 0.0
    %758 = vmatprep.mubr.f32.mxu0 0.0
    %759 = vmatmul.mubr.f32.gmra.mrb[0].mxu0 %v688
    %v760 = vpop.f32.mrb[0].mxu0
    %v761 = vadd.f32 0.0, %v760
    %v762 = vpop.f32.mrb[0].mxu0
    %763 = vdwg.mxu0
    %v764 = vmul.f32 %v761, 0.35355338
    %v765 = vsel %vm410, %v764, -inf
    %766 = vmax.xlane.f32.xlu0 %v765
    %v767 = vpop.xlane.xlu0 %766
    %v768 = vsub.f32 %v764, %v767
    %v769 = vmul.f32 %v768, 1.442695
    %v770 = vpow.pop %v769
    %v771 = vsel %vm410, %v770, 0.0
    %772 = vadd.xlane.f32.xlu0 %v771
    %v773 = vpop.xlane.xlu0 %772
    %v774 = vrcp.pop %v773
    %v775 = vmul.f32 %v770, %v774
    %778 = vrot.lane.b32.xlu0 %v293, 120
    %v779 = vpop.permute.xlu0 %778
    %780 = vrot.lane.b32.xlu0 %v298, 120
    %v781 = vpop.permute.xlu0 %780
    %v785 = vsel %vm410, %v775, 0
    %787 = vmatprep.subr.mxu0 0.0
    %788 = vmatpush1.msra.mxu0 %v779
    %789 = vmatprep.subr.mxu0 0.0
    %790 = vmatpush1.msra.mxu0 %v781
    %791 = vmatprep.subr.mxu0 0.0
    %792 = vmatpush1.msra.mxu0 0.0
    %793 = vmatprep.subr.mxu0 0.0
    %794 = vmatpush1.msra.mxu0 0.0
    %795 = vmatprep.subr.mxu0 0.0
    %796 = vmatpush1.msra.mxu0 0.0
    %797 = vmatprep.subr.mxu0 0.0
    %798 = vmatpush1.msra.mxu0 0.0
    %799 = vmatprep.subr.mxu0 0.0
    %800 = vmatpush1.msra.mxu0 0.0
    %801 = vmatprep.subr.mxu0 0.0
    %802 = vmatpush1.msra.mxu0 0.0
    %803 = vmatprep.subr.mxu0 0.0
    %804 = vmatpush1.msra.mxu0 0.0
    %805 = vmatprep.subr.mxu0 0.0
    %806 = vmatpush1.msra.mxu0 0.0
    %807 = vmatprep.subr.mxu0 0.0
    %808 = vmatpush1.msra.mxu0 0.0
    %809 = vmatprep.subr.mxu0 0.0
    %810 = vmatpush1.msra.mxu0 0.0
    %811 = vmatprep.subr.mxu0 0.0
    %812 = vmatpush1.msra.mxu0 0.0
    %813 = vmatprep.subr.mxu0 0.0
    %814 = vmatpush1.msra.mxu0 0.0
    %815 = vmatprep.subr.mxu0 0.0
    %816 = vmatpush1.msra.mxu0 0.0
    %817 = vmatprep.subr.mxu0 0.0
    %818 = vmatpush1.msra.mxu0 0.0
    %819 = vmatprep.subr.mxu0 0.0
    %820 = vmatpush1.msra.mxu0 0.0
    %821 = vmatprep.subr.mxu0 0.0
    %822 = vmatpush1.msra.mxu0 0.0
    %823 = vmatprep.subr.mxu0 0.0
    %824 = vmatpush1.msra.mxu0 0.0
    %825 = vmatprep.subr.mxu0 0.0
    %826 = vmatpush1.msra.mxu0 0.0
    %827 = vmatprep.subr.mxu0 0.0
    %828 = vmatpush1.msra.mxu0 0.0
    %829 = vmatprep.subr.mxu0 0.0
    %830 = vmatpush1.msra.mxu0 0.0
    %831 = vmatprep.subr.mxu0 0.0
    %832 = vmatpush1.msra.mxu0 0.0
    %833 = vmatprep.subr.mxu0 0.0
    %834 = vmatpush1.msra.mxu0 0.0
    %835 = vmatprep.subr.mxu0 0.0
    %836 = vmatpush1.msra.mxu0 0.0
    %837 = vmatprep.subr.mxu0 0.0
    %838 = vmatpush1.msra.mxu0 0.0
    %839 = vmatprep.subr.mxu0 0.0
    %840 = vmatpush1.msra.mxu0 0.0
    %841 = vmatprep.subr.mxu0 0.0
    %842 = vmatpush1.msra.mxu0 0.0
    %843 = vmatprep.subr.mxu0 0.0
    %844 = vmatpush1.msra.mxu0 0.0
    %845 = vmatprep.subr.mxu0 0.0
    %846 = vmatpush1.msra.mxu0 0.0
    %847 = vmatprep.subr.mxu0 0.0
    %848 = vmatpush1.msra.mxu0 0.0
    %849 = vmatprep.subr.mxu0 0.0
    %850 = vmatpush1.msra.mxu0 0.0
    %851 = vmatprep.mubr.f32.mxu0 0.0
    %852 = vmatmul.mubr.f32.gmra.mrb[0].mxu0 %v785
    %v853 = vpop.f32.mrb[0].mxu0
    %v854 = vadd.f32 0.0, %v853
    %v855 = vpop.f32.mrb[0].mxu0
    %856 = vdwg.mxu0
    %857 = vrot.lane.b32.xlu0 %v115, 120
    %v858 = vpop.permute.xlu0 %857
    %859 = vrot.lane.b32.xlu0 %v120, 120
    %v860 = vpop.permute.xlu0 %859
    %v861 = vsel %vm329, %v858, 0
    %v863 = vsel %vm329, %v860, 0
    %865 = vmatprep.subr.mxu0 0.0
    %866 = vmatpush1.xpose.msra.mxu0 %v688
    %867 = vmatprep.subr.mxu0 0.0
    %868 = vmatpush1.xpose.msra.mxu0 0.0
    %869 = vmatprep.subr.mxu0 0.0
    %870 = vmatpush1.xpose.msra.mxu0 0.0
    %871 = vmatprep.subr.mxu0 0.0
    %872 = vmatpush1.xpose.msra.mxu0 0.0
    %873 = vmatprep.subr.mxu0 0.0
    %874 = vmatpush1.xpose.msra.mxu0 0.0
    %875 = vmatprep.subr.mxu0 0.0
    %876 = vmatpush1.xpose.msra.mxu0 0.0
    %877 = vmatprep.subr.mxu0 0.0
    %878 = vmatpush1.xpose.msra.mxu0 0.0
    %879 = vmatprep.subr.mxu0 0.0
    %880 = vmatpush1.xpose.msra.mxu0 0.0
    %881 = vmatprep.subr.mxu0 0.0
    %882 = vmatpush1.xpose.msra.mxu0 0.0
    %883 = vmatprep.subr.mxu0 0.0
    %884 = vmatpush1.xpose.msra.mxu0 0.0
    %885 = vmatprep.subr.mxu0 0.0
    %886 = vmatpush1.xpose.msra.mxu0 0.0
    %887 = vmatprep.subr.mxu0 0.0
    %888 = vmatpush1.xpose.msra.mxu0 0.0
    %889 = vmatprep.subr.mxu0 0.0
    %890 = vmatpush1.xpose.msra.mxu0 0.0
    %891 = vmatprep.subr.mxu0 0.0
    %892 = vmatpush1.xpose.msra.mxu0 0.0
    %893 = vmatprep.subr.mxu0 0.0
    %894 = vmatpush1.xpose.msra.mxu0 0.0
    %895 = vmatprep.subr.mxu0 0.0
    %896 = vmatpush1.xpose.msra.mxu0 0.0
    %897 = vmatprep.subr.mxu0 0.0
    %898 = vmatpush1.xpose.msra.mxu0 0.0
    %899 = vmatprep.subr.mxu0 0.0
    %900 = vmatpush1.xpose.msra.mxu0 0.0
    %901 = vmatprep.subr.mxu0 0.0
    %902 = vmatpush1.xpose.msra.mxu0 0.0
    %903 = vmatprep.subr.mxu0 0.0
    %904 = vmatpush1.xpose.msra.mxu0 0.0
    %905 = vmatprep.subr.mxu0 0.0
    %906 = vmatpush1.xpose.msra.mxu0 0.0
    %907 = vmatprep.subr.mxu0 0.0
    %908 = vmatpush1.xpose.msra.mxu0 0.0
    %909 = vmatprep.subr.mxu0 0.0
    %910 = vmatpush1.xpose.msra.mxu0 0.0
    %911 = vmatprep.subr.mxu0 0.0
    %912 = vmatpush1.xpose.msra.mxu0 0.0
    %913 = vmatprep.subr.mxu0 0.0
    %914 = vmatpush1.xpose.msra.mxu0 0.0
    %915 = vmatprep.subr.mxu0 0.0
    %916 = vmatpush1.xpose.msra.mxu0 0.0
    %917 = vmatprep.subr.mxu0 0.0
    %918 = vmatpush1.xpose.msra.mxu0 0.0
    %919 = vmatprep.subr.mxu0 0.0
    %920 = vmatpush1.xpose.msra.mxu0 0.0
    %921 = vmatprep.subr.mxu0 0.0
    %922 = vmatpush1.xpose.msra.mxu0 0.0
    %923 = vmatprep.subr.mxu0 0.0
    %924 = vmatpush1.xpose.msra.mxu0 0.0
    %925 = vmatprep.subr.mxu0 0.0
    %926 = vmatpush1.xpose.msra.mxu0 0.0
    %927 = vmatprep.subr.mxu0 0.0
    %928 = vmatpush1.xpose.msra.mxu0 0.0
    %929 = vmatprep.mubr.f32.mxu0 0.0
    %930 = vmatmul.mubr.f32.gmra.mrb[0].mxu0 %v861
    %v931 = vpop.f32.mrb[0].mxu0
    %v932 = vadd.f32 0.0, %v931
    %v933 = vpop.f32.mrb[0].mxu0
    %934 = vmatprep.mubr.f32.mxu0 0.0
    %935 = vmatmul.mubr.f32.gmra.mrb[0].mxu0 %v863
    %v936 = vpop.f32.mrb[0].mxu0
    %v937 = vadd.f32 0.0, %v936
    %v938 = vpop.f32.mrb[0].mxu0
    %939 = vdwg.mxu0
    %v940 = vmul.f32 %v932, 0.35355338
    %v941 = vmul.f32 %v937, 0.35355338
    %v942 = vsel %vm329, %v940, -inf
    %943 = vmax.xlane.f32.xlu0 %v942
    %v944 = vpop.xlane.xlu0 %943
    %v945 = vsel %vm329, %v941, -inf
    %946 = vmax.xlane.f32.xlu0 %v945
    %v947 = vpop.xlane.xlu0 %946
    %v948 = vsub.f32 %v940, %v944
    %v949 = vsub.f32 %v941, %v947
    %v950 = vmul.f32 %v948, 1.442695
    %v951 = vpow.pop %v950
    %v952 = vmul.f32 %v949, 1.442695
    %v953 = vpow.pop %v952
    %v954 = vsel %vm329, %v951, 0.0
    %955 = vadd.xlane.f32.xlu0 %v954
    %v956 = vpop.xlane.xlu0 %955
    %v957 = vsel %vm329, %v953, 0.0
    %958 = vadd.xlane.f32.xlu0 %v957
    %v959 = vpop.xlane.xlu0 %958
    %v960 = vrcp.pop %v956
    %v961 = vrcp.pop %v959
    %v962 = vmul.f32 %v951, %v960
    %v963 = vmul.f32 %v953, %v961
    %966 = vrot.lane.b32.xlu0 %v600, 120
    %v967 = vpop.permute.xlu0 %966
    %968 = vrot.lane.b32.xlu0 %v601, 120
    %v969 = vpop.permute.xlu0 %968
    %v973 = vsel %vm329, %v962, 0
    %v976 = vsel %vm329, %v963, 0
    %978 = vmatprep.subr.mxu0 0.0
    %979 = vmatpush1.msra.mxu0 %v854
    %980 = vmatprep.subr.mxu0 0.0
    %981 = vmatpush1.msra.mxu0 0.0
    %982 = vmatprep.subr.mxu0 0.0
    %983 = vmatpush1.msra.mxu0 0.0
    %984 = vmatprep.subr.mxu0 0.0
    %985 = vmatpush1.msra.mxu0 0.0
    %986 = vmatprep.subr.mxu0 0.0
    %987 = vmatpush1.msra.mxu0 0.0
    %988 = vmatprep.subr.mxu0 0.0
    %989 = vmatpush1.msra.mxu0 0.0
    %990 = vmatprep.subr.mxu0 0.0
    %991 = vmatpush1.msra.mxu0 0.0
    %992 = vmatprep.subr.mxu0 0.0
    %993 = vmatpush1.msra.mxu0 0.0
    %994 = vmatprep.subr.mxu0 0.0
    %995 = vmatpush1.msra.mxu0 0.0
    %996 = vmatprep.subr.mxu0 0.0
    %997 = vmatpush1.msra.mxu0 0.0
    %998 = vmatprep.subr.mxu0 0.0
    %999 = vmatpush1.msra.mxu0 0.0
    %1000 = vmatprep.subr.mxu0 0.0
    %1001 = vmatpush1.msra.mxu0 0.0
    %1002 = vmatprep.subr.mxu0 0.0
    %1003 = vmatpush1.msra.mxu0 0.0
    %1004 = vmatprep.subr.mxu0 0.0
    %1005 = vmatpush1.msra.mxu0 0.0
    %1006 = vmatprep.subr.mxu0 0.0
    %1007 = vmatpush1.msra.mxu0 0.0
    %1008 = vmatprep.subr.mxu0 0.0
    %1009 = vmatpush1.msra.mxu0 0.0
    %1010 = vmatprep.subr.mxu0 0.0
    %1011 = vmatpush1.msra.mxu0 0.0
    %1012 = vmatprep.subr.mxu0 0.0
    %1013 = vmatpush1.msra.mxu0 0.0
    %1014 = vmatprep.subr.mxu0 0.0
    %1015 = vmatpush1.msra.mxu0 0.0
    %1016 = vmatprep.subr.mxu0 0.0
    %1017 = vmatpush1.msra.mxu0 0.0
    %1018 = vmatprep.subr.mxu0 0.0
    %1019 = vmatpush1.msra.mxu0 0.0
    %1020 = vmatprep.subr.mxu0 0.0
    %1021 = vmatpush1.msra.mxu0 0.0
    %1022 = vmatprep.subr.mxu0 0.0
    %1023 = vmatpush1.msra.mxu0 0.0
    %1024 = vmatprep.subr.mxu0 0.0
    %1025 = vmatpush1.msra.mxu0 0.0
    %1026 = vmatprep.subr.mxu0 0.0
    %1027 = vmatpush1.msra.mxu0 0.0
    %1028 = vmatprep.subr.mxu0 0.0
    %1029 = vmatpush1.msra.mxu0 0.0
    %1030 = vmatprep.subr.mxu0 0.0
    %1031 = vmatpush1.msra.mxu0 0.0
    %1032 = vmatprep.subr.mxu0 0.0
    %1033 = vmatpush1.msra.mxu0 0.0
    %1034 = vmatprep.subr.mxu0 0.0
    %1035 = vmatpush1.msra.mxu0 0.0
    %1036 = vmatprep.subr.mxu0 0.0
    %1037 = vmatpush1.msra.mxu0 0.0
    %1038 = vmatprep.subr.mxu0 0.0
    %1039 = vmatpush1.msra.mxu0 0.0
    %1040 = vmatprep.subr.mxu0 0.0
    %1041 = vmatpush1.msra.mxu0 0.0
    %1042 = vmatprep.mubr.f32.mxu0 0.0
    %1043 = vmatmul.mubr.f32.gmra.mrb[0].mxu0 %v973
    %v1044 = vpop.f32.mrb[0].mxu0
    %v1045 = vadd.f32 %v967, %v1044
    %v1046 = vpop.f32.mrb[0].mxu0
    %1047 = vmatprep.mubr.f32.mxu0 0.0
    %1048 = vmatmul.mubr.f32.gmra.mrb[0].mxu0 %v976
    %v1049 = vpop.f32.mrb[0].mxu0
    %v1050 = vadd.f32 %v969, %v1049
    %v1051 = vpop.f32.mrb[0].mxu0
    %1052 = vdwg.mxu0
    %v1054 = vsel %vm329, %v1045, 0
    %v1057 = vsel %vm329, %v1050, 0
    %1059 = vmatprep.subr.mxu0 0.0
    %1060 = vmatpush1.msra.mxu0 %v316
    %1061 = vmatprep.subr.mxu0 0.0
    %1062 = vmatpush1.msra.mxu0 0.0
    %1063 = vmatprep.subr.mxu0 0.0
    %1064 = vmatpush1.msra.mxu0 0.0
    %1065 = vmatprep.subr.mxu0 0.0
    %1066 = vmatpush1.msra.mxu0 0.0
    %1067 = vmatprep.subr.mxu0 0.0
    %1068 = vmatpush1.msra.mxu0 0.0
    %1069 = vmatprep.subr.mxu0 0.0
    %1070 = vmatpush1.msra.mxu0 0.0
    %1071 = vmatprep.subr.mxu0 0.0
    %1072 = vmatpush1.msra.mxu0 0.0
    %1073 = vmatprep.subr.mxu0 0.0
    %1074 = vmatpush1.msra.mxu0 0.0
    %1075 = vmatprep.subr.mxu0 0.0
    %1076 = vmatpush1.msra.mxu0 0.0
    %1077 = vmatprep.subr.mxu0 0.0
    %1078 = vmatpush1.msra.mxu0 0.0
    %1079 = vmatprep.subr.mxu0 0.0
    %1080 = vmatpush1.msra.mxu0 0.0
    %1081 = vmatprep.subr.mxu0 0.0
    %1082 = vmatpush1.msra.mxu0 0.0
    %1083 = vmatprep.subr.mxu0 0.0
    %1084 = vmatpush1.msra.mxu0 0.0
    %1085 = vmatprep.subr.mxu0 0.0
    %1086 = vmatpush1.msra.mxu0 0.0
    %1087 = vmatprep.subr.mxu0 0.0
    %1088 = vmatpush1.msra.mxu0 0.0
    %1089 = vmatprep.subr.mxu0 0.0
    %1090 = vmatpush1.msra.mxu0 0.0
    %1091 = vmatprep.subr.mxu0 0.0
    %1092 = vmatpush1.msra.mxu0 0.0
    %1093 = vmatprep.subr.mxu0 0.0
    %1094 = vmatpush1.msra.mxu0 0.0
    %1095 = vmatprep.subr.mxu0 0.0
    %1096 = vmatpush1.msra.mxu0 0.0
    %1097 = vmatprep.subr.mxu0 0.0
    %1098 = vmatpush1.msra.mxu0 0.0
    %1099 = vmatprep.subr.mxu0 0.0
    %1100 = vmatpush1.msra.mxu0 0.0
    %1101 = vmatprep.subr.mxu0 0.0
    %1102 = vmatpush1.msra.mxu0 0.0
    %1103 = vmatprep.subr.mxu0 0.0
    %1104 = vmatpush1.msra.mxu0 0.0
    %1105 = vmatprep.subr.mxu0 0.0
    %1106 = vmatpush1.msra.mxu0 0.0
    %1107 = vmatprep.subr.mxu0 0.0
    %1108 = vmatpush1.msra.mxu0 0.0
    %1109 = vmatprep.subr.mxu0 0.0
    %1110 = vmatpush1.msra.mxu0 0.0
    %1111 = vmatprep.subr.mxu0 0.0
    %1112 = vmatpush1.msra.mxu0 0.0
    %1113 = vmatprep.subr.mxu0 0.0
    %1114 = vmatpush1.msra.mxu0 0.0
    %1115 = vmatprep.subr.mxu0 0.0
    %1116 = vmatpush1.msra.mxu0 0.0
    %1117 = vmatprep.subr.mxu0 0.0
    %1118 = vmatpush1.msra.mxu0 0.0
    %1119 = vmatprep.subr.mxu0 0.0
    %1120 = vmatpush1.msra.mxu0 0.0
    %1121 = vmatprep.subr.mxu0 0.0
    %1122 = vmatpush1.msra.mxu0 0.0
    %1123 = vmatprep.mubr.f32.mxu0 0.0
    %1124 = vmatmul.mubr.f32.gmra.mrb[0].mxu0 %v1054
    %v1125 = vpop.f32.mrb[0].mxu0
    %v1126 = vadd.f32 0.0, %v1125
    %v1127 = vpop.f32.mrb[0].mxu0
    %1128 = vmatprep.mubr.f32.mxu0 0.0
    %1129 = vmatmul.mubr.f32.gmra.mrb[0].mxu0 %v1057
    %v1130 = vpop.f32.mrb[0].mxu0
    %v1131 = vadd.f32 0.0, %v1130
    %v1132 = vpop.f32.mrb[0].mxu0
    %1133 = vdwg.mxu0
    %v1135 = vsel %vm329, %v675, 0
    %v1138 = vsel %vm329, %v680, 0
    %1140 = vmatprep.subr.mxu0 0.0
    %1141 = vmatpush1.msra.mxu0 %v315
    %1142 = vmatprep.subr.mxu0 0.0
    %1143 = vmatpush1.msra.mxu0 0.0
    %1144 = vmatprep.subr.mxu0 0.0
    %1145 = vmatpush1.msra.mxu0 0.0
    %1146 = vmatprep.subr.mxu0 0.0
    %1147 = vmatpush1.msra.mxu0 0.0
    %1148 = vmatprep.subr.mxu0 0.0
    %1149 = vmatpush1.msra.mxu0 0.0
    %1150 = vmatprep.subr.mxu0 0.0
    %1151 = vmatpush1.msra.mxu0 0.0
    %1152 = vmatprep.subr.mxu0 0.0
    %1153 = vmatpush1.msra.mxu0 0.0
    %1154 = vmatprep.subr.mxu0 0.0
    %1155 = vmatpush1.msra.mxu0 0.0
    %1156 = vmatprep.subr.mxu0 0.0
    %1157 = vmatpush1.msra.mxu0 0.0
    %1158 = vmatprep.subr.mxu0 0.0
    %1159 = vmatpush1.msra.mxu0 0.0
    %1160 = vmatprep.subr.mxu0 0.0
    %1161 = vmatpush1.msra.mxu0 0.0
    %1162 = vmatprep.subr.mxu0 0.0
    %1163 = vmatpush1.msra.mxu0 0.0
    %1164 = vmatprep.subr.mxu0 0.0
    %1165 = vmatpush1.msra.mxu0 0.0
    %1166 = vmatprep.subr.mxu0 0.0
    %1167 = vmatpush1.msra.mxu0 0.0
    %1168 = vmatprep.subr.mxu0 0.0
    %1169 = vmatpush1.msra.mxu0 0.0
    %1170 = vmatprep.subr.mxu0 0.0
    %1171 = vmatpush1.msra.mxu0 0.0
    %1172 = vmatprep.subr.mxu0 0.0
    %1173 = vmatpush1.msra.mxu0 0.0
    %1174 = vmatprep.subr.mxu0 0.0
    %1175 = vmatpush1.msra.mxu0 0.0
    %1176 = vmatprep.subr.mxu0 0.0
    %1177 = vmatpush1.msra.mxu0 0.0
    %1178 = vmatprep.subr.mxu0 0.0
    %1179 = vmatpush1.msra.mxu0 0.0
    %1180 = vmatprep.subr.mxu0 0.0
    %1181 = vmatpush1.msra.mxu0 0.0
    %1182 = vmatprep.subr.mxu0 0.0
    %1183 = vmatpush1.msra.mxu0 0.0
    %1184 = vmatprep.subr.mxu0 0.0
    %1185 = vmatpush1.msra.mxu0 0.0
    %1186 = vmatprep.subr.mxu0 0.0
    %1187 = vmatpush1.msra.mxu0 0.0
    %1188 = vmatprep.subr.mxu0 0.0
    %1189 = vmatpush1.msra.mxu0 0.0
    %1190 = vmatprep.subr.mxu0 0.0
    %1191 = vmatpush1.msra.mxu0 0.0
    %1192 = vmatprep.subr.mxu0 0.0
    %1193 = vmatpush1.msra.mxu0 0.0
    %1194 = vmatprep.subr.mxu0 0.0
    %1195 = vmatpush1.msra.mxu0 0.0
    %1196 = vmatprep.subr.mxu0 0.0
    %1197 = vmatpush1.msra.mxu0 0.0
    %1198 = vmatprep.subr.mxu0 0.0
    %1199 = vmatpush1.msra.mxu0 0.0
    %1200 = vmatprep.subr.mxu0 0.0
    %1201 = vmatpush1.msra.mxu0 0.0
    %1202 = vmatprep.subr.mxu0 0.0
    %1203 = vmatpush1.msra.mxu0 0.0
    %1204 = vmatprep.mubr.f32.mxu0 0.0
    %1205 = vmatmul.mubr.f32.gmra.mrb[0].mxu0 %v1135
    %v1206 = vpop.f32.mrb[0].mxu0
    %v1207 = vadd.f32 %v1126, %v1206
    %v1208 = vpop.f32.mrb[0].mxu0
    %1209 = vmatprep.mubr.f32.mxu0 0.0
    %1210 = vmatmul.mubr.f32.gmra.mrb[0].mxu0 %v1138
    %v1211 = vpop.f32.mrb[0].mxu0
    %v1212 = vadd.f32 %v1131, %v1211
    %v1213 = vpop.f32.mrb[0].mxu0
    %1214 = vdwg.mxu0
    %1215 = vrot.lane.b32.xlu0 %v204, 112
    %v1216 = vpop.permute.xlu0 %1215
    %1217 = vrot.lane.b32.xlu0 %v209, 112
    %v1218 = vpop.permute.xlu0 %1217
    %v1220 = vsel %vm329, %v313, 0
    %v1222 = vsel %vm329, %v1216, 0
    %v1224 = vsel %vm329, %v1218, 0
    %1226 = vmatprep.subr.mxu0 0.0
    %1227 = vmatpush1.xpose.msra.mxu0 %v1222
    %1228 = vmatprep.subr.mxu0 0.0
    %1229 = vmatpush1.xpose.msra.mxu0 %v1224
    %1230 = vmatprep.subr.mxu0 0.0
    %1231 = vmatpush1.xpose.msra.mxu0 0.0
    %1232 = vmatprep.subr.mxu0 0.0
    %1233 = vmatpush1.xpose.msra.mxu0 0.0
    %1234 = vmatprep.subr.mxu0 0.0
    %1235 = vmatpush1.xpose.msra.mxu0 0.0
    %1236 = vmatprep.subr.mxu0 0.0
    %1237 = vmatpush1.xpose.msra.mxu0 0.0
    %1238 = vmatprep.subr.mxu0 0.0
    %1239 = vmatpush1.xpose.msra.mxu0 0.0
    %1240 = vmatprep.subr.mxu0 0.0
    %1241 = vmatpush1.xpose.msra.mxu0 0.0
    %1242 = vmatprep.subr.mxu0 0.0
    %1243 = vmatpush1.xpose.msra.mxu0 0.0
    %1244 = vmatprep.subr.mxu0 0.0
    %1245 = vmatpush1.xpose.msra.mxu0 0.0
    %1246 = vmatprep.subr.mxu0 0.0
    %1247 = vmatpush1.xpose.msra.mxu0 0.0
    %1248 = vmatprep.subr.mxu0 0.0
    %1249 = vmatpush1.xpose.msra.mxu0 0.0
    %1250 = vmatprep.subr.mxu0 0.0
    %1251 = vmatpush1.xpose.msra.mxu0 0.0
    %1252 = vmatprep.subr.mxu0 0.0
    %1253 = vmatpush1.xpose.msra.mxu0 0.0
    %1254 = vmatprep.subr.mxu0 0.0
    %1255 = vmatpush1.xpose.msra.mxu0 0.0
    %1256 = vmatprep.subr.mxu0 0.0
    %1257 = vmatpush1.xpose.msra.mxu0 0.0
    %1258 = vmatprep.subr.mxu0 0.0
    %1259 = vmatpush1.xpose.msra.mxu0 0.0
    %1260 = vmatprep.subr.mxu0 0.0
    %1261 = vmatpush1.xpose.msra.mxu0 0.0
    %1262 = vmatprep.subr.mxu0 0.0
    %1263 = vmatpush1.xpose.msra.mxu0 0.0
    %1264 = vmatprep.subr.mxu0 0.0
    %1265 = vmatpush1.xpose.msra.mxu0 0.0
    %1266 = vmatprep.subr.mxu0 0.0
    %1267 = vmatpush1.xpose.msra.mxu0 0.0
    %1268 = vmatprep.subr.mxu0 0.0
    %1269 = vmatpush1.xpose.msra.mxu0 0.0
    %1270 = vmatprep.subr.mxu0 0.0
    %1271 = vmatpush1.xpose.msra.mxu0 0.0
    %1272 = vmatprep.subr.mxu0 0.0
    %1273 = vmatpush1.xpose.msra.mxu0 0.0
    %1274 = vmatprep.subr.mxu0 0.0
    %1275 = vmatpush1.xpose.msra.mxu0 0.0
    %1276 = vmatprep.subr.mxu0 0.0
    %1277 = vmatpush1.xpose.msra.mxu0 0.0
    %1278 = vmatprep.subr.mxu0 0.0
    %1279 = vmatpush1.xpose.msra.mxu0 0.0
    %1280 = vmatprep.subr.mxu0 0.0
    %1281 = vmatpush1.xpose.msra.mxu0 0.0
    %1282 = vmatprep.subr.mxu0 0.0
    %1283 = vmatpush1.xpose.msra.mxu0 0.0
    %1284 = vmatprep.subr.mxu0 0.0
    %1285 = vmatpush1.xpose.msra.mxu0 0.0
    %1286 = vmatprep.subr.mxu0 0.0
    %1287 = vmatpush1.xpose.msra.mxu0 0.0
    %1288 = vmatprep.subr.mxu0 0.0
    %1289 = vmatpush1.xpose.msra.mxu0 0.0
    %1290 = vmatprep.mubr.f32.mxu0 0.0
    %1291 = vmatmul.mubr.f32.gmra.mrb[0].mxu0 %v1220
    %v1292 = vpop.f32.mrb[0].mxu0
    %v1293 = vadd.f32 0.0, %v1292
    %v1294 = vpop.f32.mrb[0].mxu0
    %1295 = vdwg.mxu0
    %v1296 = vmul.f32 %v1293, 0.35355338
    %v1297 = vsel %vm410, %v1296, -inf
    %1298 = vmax.xlane.f32.xlu0 %v1297
    %v1299 = vpop.xlane.xlu0 %1298
    %v1300 = vsub.f32 %v1296, %v1299
    %v1301 = vmul.f32 %v1300, 1.442695
    %v1302 = vpow.pop %v1301
    %v1303 = vsel %vm410, %v1302, 0.0
    %1304 = vadd.xlane.f32.xlu0 %v1303
    %v1305 = vpop.xlane.xlu0 %1304
    %v1306 = vrcp.pop %v1305
    %v1307 = vmul.f32 %v1302, %v1306
    %1308 = vrot.lane.b32.xlu0 %v293, 112
    %v1309 = vpop.permute.xlu0 %1308
    %1310 = vrot.lane.b32.xlu0 %v298, 112
    %v1311 = vpop.permute.xlu0 %1310
    %v1315 = vsel %vm410, %v1307, 0
    %1317 = vmatprep.subr.mxu0 0.0
    %1318 = vmatpush1.msra.mxu0 %v1309
    %1319 = vmatprep.subr.mxu0 0.0
    %1320 = vmatpush1.msra.mxu0 %v1311
    %1321 = vmatprep.subr.mxu0 0.0
    %1322 = vmatpush1.msra.mxu0 0.0
    %1323 = vmatprep.subr.mxu0 0.0
    %1324 = vmatpush1.msra.mxu0 0.0
    %1325 = vmatprep.subr.mxu0 0.0
    %1326 = vmatpush1.msra.mxu0 0.0
    %1327 = vmatprep.subr.mxu0 0.0
    %1328 = vmatpush1.msra.mxu0 0.0
    %1329 = vmatprep.subr.mxu0 0.0
    %1330 = vmatpush1.msra.mxu0 0.0
    %1331 = vmatprep.subr.mxu0 0.0
    %1332 = vmatpush1.msra.mxu0 0.0
    %1333 = vmatprep.subr.mxu0 0.0
    %1334 = vmatpush1.msra.mxu0 0.0
    %1335 = vmatprep.subr.mxu0 0.0
    %1336 = vmatpush1.msra.mxu0 0.0
    %1337 = vmatprep.subr.mxu0 0.0
    %1338 = vmatpush1.msra.mxu0 0.0
    %1339 = vmatprep.subr.mxu0 0.0
    %1340 = vmatpush1.msra.mxu0 0.0
    %1341 = vmatprep.subr.mxu0 0.0
    %1342 = vmatpush1.msra.mxu0 0.0
    %1343 = vmatprep.subr.mxu0 0.0
    %1344 = vmatpush1.msra.mxu0 0.0
    %1345 = vmatprep.subr.mxu0 0.0
    %1346 = vmatpush1.msra.mxu0 0.0
    %1347 = vmatprep.subr.mxu0 0.0
    %1348 = vmatpush1.msra.mxu0 0.0
    %1349 = vmatprep.subr.mxu0 0.0
    %1350 = vmatpush1.msra.mxu0 0.0
    %1351 = vmatprep.subr.mxu0 0.0
    %1352 = vmatpush1.msra.mxu0 0.0
    %1353 = vmatprep.subr.mxu0 0.0
    %1354 = vmatpush1.msra.mxu0 0.0
    %1355 = vmatprep.subr.mxu0 0.0
    %1356 = vmatpush1.msra.mxu0 0.0
    %1357 = vmatprep.subr.mxu0 0.0
    %1358 = vmatpush1.msra.mxu0 0.0
    %1359 = vmatprep.subr.mxu0 0.0
    %1360 = vmatpush1.msra.mxu0 0.0
    %1361 = vmatprep.subr.mxu0 0.0
    %1362 = vmatpush1.msra.mxu0 0.0
    %1363 = vmatprep.subr.mxu0 0.0
    %1364 = vmatpush1.msra.mxu0 0.0
    %1365 = vmatprep.subr.mxu0 0.0
    %1366 = vmatpush1.msra.mxu0 0.0
    %1367 = vmatprep.subr.mxu0 0.0
    %1368 = vmatpush1.msra.mxu0 0.0
    %1369 = vmatprep.subr.mxu0 0.0
    %1370 = vmatpush1.msra.mxu0 0.0
    %1371 = vmatprep.subr.mxu0 0.0
    %1372 = vmatpush1.msra.mxu0 0.0
    %1373 = vmatprep.subr.mxu0 0.0
    %1374 = vmatpush1.msra.mxu0 0.0
    %1375 = vmatprep.subr.mxu0 0.0
    %1376 = vmatpush1.msra.mxu0 0.0
    %1377 = vmatprep.subr.mxu0 0.0
    %1378 = vmatpush1.msra.mxu0 0.0
    %1379 = vmatprep.subr.mxu0 0.0
    %1380 = vmatpush1.msra.mxu0 0.0
    %1381 = vmatprep.mubr.f32.mxu0 0.0
    %1382 = vmatmul.mubr.f32.gmra.mrb[0].mxu0 %v1315
    %v1383 = vpop.f32.mrb[0].mxu0
    %v1384 = vadd.f32 0.0, %v1383
    %v1385 = vpop.f32.mrb[0].mxu0
    %1386 = vdwg.mxu0
    %1387 = vrot.lane.b32.xlu0 %v115, 112
    %v1388 = vpop.permute.xlu0 %1387
    %1389 = vrot.lane.b32.xlu0 %v120, 112
    %v1390 = vpop.permute.xlu0 %1389
    %v1391 = vsel %vm329, %v1388, 0
    %v1393 = vsel %vm329, %v1390, 0
    %1395 = vmatprep.subr.mxu0 0.0
    %1396 = vmatpush1.xpose.msra.mxu0 %v1220
    %1397 = vmatprep.subr.mxu0 0.0
    %1398 = vmatpush1.xpose.msra.mxu0 0.0
    %1399 = vmatprep.subr.mxu0 0.0
    %1400 = vmatpush1.xpose.msra.mxu0 0.0
    %1401 = vmatprep.subr.mxu0 0.0
    %1402 = vmatpush1.xpose.msra.mxu0 0.0
    %1403 = vmatprep.subr.mxu0 0.0
    %1404 = vmatpush1.xpose.msra.mxu0 0.0
    %1405 = vmatprep.subr.mxu0 0.0
    %1406 = vmatpush1.xpose.msra.mxu0 0.0
    %1407 = vmatprep.subr.mxu0 0.0
    %1408 = vmatpush1.xpose.msra.mxu0 0.0
    %1409 = vmatprep.subr.mxu0 0.0
    %1410 = vmatpush1.xpose.msra.mxu0 0.0
    %1411 = vmatprep.subr.mxu0 0.0
    %1412 = vmatpush1.xpose.msra.mxu0 0.0
    %1413 = vmatprep.subr.mxu0 0.0
    %1414 = vmatpush1.xpose.msra.mxu0 0.0
    %1415 = vmatprep.subr.mxu0 0.0
    %1416 = vmatpush1.xpose.msra.mxu0 0.0
    %1417 = vmatprep.subr.mxu0 0.0
    %1418 = vmatpush1.xpose.msra.mxu0 0.0
    %1419 = vmatprep.subr.mxu0 0.0
    %1420 = vmatpush1.xpose.msra.mxu0 0.0
    %1421 = vmatprep.subr.mxu0 0.0
    %1422 = vmatpush1.xpose.msra.mxu0 0.0
    %1423 = vmatprep.subr.mxu0 0.0
    %1424 = vmatpush1.xpose.msra.mxu0 0.0
    %1425 = vmatprep.subr.mxu0 0.0
    %1426 = vmatpush1.xpose.msra.mxu0 0.0
    %1427 = vmatprep.subr.mxu0 0.0
    %1428 = vmatpush1.xpose.msra.mxu0 0.0
    %1429 = vmatprep.subr.mxu0 0.0
    %1430 = vmatpush1.xpose.msra.mxu0 0.0
    %1431 = vmatprep.subr.mxu0 0.0
    %1432 = vmatpush1.xpose.msra.mxu0 0.0
    %1433 = vmatprep.subr.mxu0 0.0
    %1434 = vmatpush1.xpose.msra.mxu0 0.0
    %1435 = vmatprep.subr.mxu0 0.0
    %1436 = vmatpush1.xpose.msra.mxu0 0.0
    %1437 = vmatprep.subr.mxu0 0.0
    %1438 = vmatpush1.xpose.msra.mxu0 0.0
    %1439 = vmatprep.subr.mxu0 0.0
    %1440 = vmatpush1.xpose.msra.mxu0 0.0
    %1441 = vmatprep.subr.mxu0 0.0
    %1442 = vmatpush1.xpose.msra.mxu0 0.0
    %1443 = vmatprep.subr.mxu0 0.0
    %1444 = vmatpush1.xpose.msra.mxu0 0.0
    %1445 = vmatprep.subr.mxu0 0.0
    %1446 = vmatpush1.xpose.msra.mxu0 0.0
    %1447 = vmatprep.subr.mxu0 0.0
    %1448 = vmatpush1.xpose.msra.mxu0 0.0
    %1449 = vmatprep.subr.mxu0 0.0
    %1450 = vmatpush1.xpose.msra.mxu0 0.0
    %1451 = vmatprep.subr.mxu0 0.0
    %1452 = vmatpush1.xpose.msra.mxu0 0.0
    %1453 = vmatprep.subr.mxu0 0.0
    %1454 = vmatpush1.xpose.msra.mxu0 0.0
    %1455 = vmatprep.subr.mxu0 0.0
    %1456 = vmatpush1.xpose.msra.mxu0 0.0
    %1457 = vmatprep.subr.mxu0 0.0
    %1458 = vmatpush1.xpose.msra.mxu0 0.0
    %1459 = vmatprep.mubr.f32.mxu0 0.0
    %1460 = vmatmul.mubr.f32.gmra.mrb[0].mxu0 %v1391
    %v1461 = vpop.f32.mrb[0].mxu0
    %v1462 = vadd.f32 0.0, %v1461
    %v1463 = vpop.f32.mrb[0].mxu0
    %1464 = vmatprep.mubr.f32.mxu0 0.0
    %1465 = vmatmul.mubr.f32.gmra.mrb[0].mxu0 %v1393
    %v1466 = vpop.f32.mrb[0].mxu0
    %v1467 = vadd.f32 0.0, %v1466
    %v1468 = vpop.f32.mrb[0].mxu0
    %1469 = vdwg.mxu0
    %v1470 = vmul.f32 %v1462, 0.35355338
    %v1471 = vmul.f32 %v1467, 0.35355338
    %v1472 = vsel %vm329, %v1470, -inf
    %1473 = vmax.xlane.f32.xlu0 %v1472
    %v1474 = vpop.xlane.xlu0 %1473
    %v1475 = vsel %vm329, %v1471, -inf
    %1476 = vmax.xlane.f32.xlu0 %v1475
    %v1477 = vpop.xlane.xlu0 %1476
    %v1478 = vsub.f32 %v1470, %v1474
    %v1479 = vsub.f32 %v1471, %v1477
    %v1480 = vmul.f32 %v1478, 1.442695
    %v1481 = vpow.pop %v1480
    %v1482 = vmul.f32 %v1479, 1.442695
    %v1483 = vpow.pop %v1482
    %v1484 = vsel %vm329, %v1481, 0.0
    %1485 = vadd.xlane.f32.xlu0 %v1484
    %v1486 = vpop.xlane.xlu0 %1485
    %v1487 = vsel %vm329, %v1483, 0.0
    %1488 = vadd.xlane.f32.xlu0 %v1487
    %v1489 = vpop.xlane.xlu0 %1488
    %v1490 = vrcp.pop %v1486
    %v1491 = vrcp.pop %v1489
    %v1492 = vmul.f32 %v1481, %v1490
    %v1493 = vmul.f32 %v1483, %v1491
    %1494 = vrot.lane.b32.xlu0 %v600, 112
    %v1495 = vpop.permute.xlu0 %1494
    %1496 = vrot.lane.b32.xlu0 %v601, 112
    %v1497 = vpop.permute.xlu0 %1496
    %v1501 = vsel %vm329, %v1492, 0
    %v1504 = vsel %vm329, %v1493, 0
    %1506 = vmatprep.subr.mxu0 0.0
    %1507 = vmatpush1.msra.mxu0 %v1384
    %1508 = vmatprep.subr.mxu0 0.0
    %1509 = vmatpush1.msra.mxu0 0.0
    %1510 = vmatprep.subr.mxu0 0.0
    %1511 = vmatpush1.msra.mxu0 0.0
    %1512 = vmatprep.subr.mxu0 0.0
    %1513 = vmatpush1.msra.mxu0 0.0
    %1514 = vmatprep.subr.mxu0 0.0
    %1515 = vmatpush1.msra.mxu0 0.0
    %1516 = vmatprep.subr.mxu0 0.0
    %1517 = vmatpush1.msra.mxu0 0.0
    %1518 = vmatprep.subr.mxu0 0.0
    %1519 = vmatpush1.msra.mxu0 0.0
    %1520 = vmatprep.subr.mxu0 0.0
    %1521 = vmatpush1.msra.mxu0 0.0
    %1522 = vmatprep.subr.mxu0 0.0
    %1523 = vmatpush1.msra.mxu0 0.0
    %1524 = vmatprep.subr.mxu0 0.0
    %1525 = vmatpush1.msra.mxu0 0.0
    %1526 = vmatprep.subr.mxu0 0.0
    %1527 = vmatpush1.msra.mxu0 0.0
    %1528 = vmatprep.subr.mxu0 0.0
    %1529 = vmatpush1.msra.mxu0 0.0
    %1530 = vmatprep.subr.mxu0 0.0
    %1531 = vmatpush1.msra.mxu0 0.0
    %1532 = vmatprep.subr.mxu0 0.0
    %1533 = vmatpush1.msra.mxu0 0.0
    %1534 = vmatprep.subr.mxu0 0.0
    %1535 = vmatpush1.msra.mxu0 0.0
    %1536 = vmatprep.subr.mxu0 0.0
    %1537 = vmatpush1.msra.mxu0 0.0
    %1538 = vmatprep.subr.mxu0 0.0
    %1539 = vmatpush1.msra.mxu0 0.0
    %1540 = vmatprep.subr.mxu0 0.0
    %1541 = vmatpush1.msra.mxu0 0.0
    %1542 = vmatprep.subr.mxu0 0.0
    %1543 = vmatpush1.msra.mxu0 0.0
    %1544 = vmatprep.subr.mxu0 0.0
    %1545 = vmatpush1.msra.mxu0 0.0
    %1546 = vmatprep.subr.mxu0 0.0
    %1547 = vmatpush1.msra.mxu0 0.0
    %1548 = vmatprep.subr.mxu0 0.0
    %1549 = vmatpush1.msra.mxu0 0.0
    %1550 = vmatprep.subr.mxu0 0.0
    %1551 = vmatpush1.msra.mxu0 0.0
    %1552 = vmatprep.subr.mxu0 0.0
    %1553 = vmatpush1.msra.mxu0 0.0
    %1554 = vmatprep.subr.mxu0 0.0
    %1555 = vmatpush1.msra.mxu0 0.0
    %1556 = vmatprep.subr.mxu0 0.0
    %1557 = vmatpush1.msra.mxu0 0.0
    %1558 = vmatprep.subr.mxu0 0.0
    %1559 = vmatpush1.msra.mxu0 0.0
    %1560 = vmatprep.subr.mxu0 0.0
    %1561 = vmatpush1.msra.mxu0 0.0
    %1562 = vmatprep.subr.mxu0 0.0
    %1563 = vmatpush1.msra.mxu0 0.0
    %1564 = vmatprep.subr.mxu0 0.0
    %1565 = vmatpush1.msra.mxu0 0.0
    %1566 = vmatprep.subr.mxu0 0.0
    %1567 = vmatpush1.msra.mxu0 0.0
    %1568 = vmatprep.subr.mxu0 0.0
    %1569 = vmatpush1.msra.mxu0 0.0
    %1570 = vmatprep.mubr.f32.mxu0 0.0
    %1571 = vmatmul.mubr.f32.gmra.mrb[0].mxu0 %v1501
    %v1572 = vpop.f32.mrb[0].mxu0
    %v1573 = vadd.f32 %v1495, %v1572
    %v1574 = vpop.f32.mrb[0].mxu0
    %1575 = vmatprep.mubr.f32.mxu0 0.0
    %1576 = vmatmul.mubr.f32.gmra.mrb[0].mxu0 %v1504
    %v1577 = vpop.f32.mrb[0].mxu0
    %v1578 = vadd.f32 %v1497, %v1577
    %v1579 = vpop.f32.mrb[0].mxu0
    %1580 = vdwg.mxu0
    %v1582 = vsel %vm329, %v1573, 0
    %v1585 = vsel %vm329, %v1578, 0
    %1587 = vmatprep.subr.mxu0 0.0
    %1588 = vmatpush1.msra.mxu0 %v317
    %1589 = vmatprep.subr.mxu0 0.0
    %1590 = vmatpush1.msra.mxu0 0.0
    %1591 = vmatprep.subr.mxu0 0.0
    %1592 = vmatpush1.msra.mxu0 0.0
    %1593 = vmatprep.subr.mxu0 0.0
    %1594 = vmatpush1.msra.mxu0 0.0
    %1595 = vmatprep.subr.mxu0 0.0
    %1596 = vmatpush1.msra.mxu0 0.0
    %1597 = vmatprep.subr.mxu0 0.0
    %1598 = vmatpush1.msra.mxu0 0.0
    %1599 = vmatprep.subr.mxu0 0.0
    %1600 = vmatpush1.msra.mxu0 0.0
    %1601 = vmatprep.subr.mxu0 0.0
    %1602 = vmatpush1.msra.mxu0 0.0
    %1603 = vmatprep.subr.mxu0 0.0
    %1604 = vmatpush1.msra.mxu0 0.0
    %1605 = vmatprep.subr.mxu0 0.0
    %1606 = vmatpush1.msra.mxu0 0.0
    %1607 = vmatprep.subr.mxu0 0.0
    %1608 = vmatpush1.msra.mxu0 0.0
    %1609 = vmatprep.subr.mxu0 0.0
    %1610 = vmatpush1.msra.mxu0 0.0
    %1611 = vmatprep.subr.mxu0 0.0
    %1612 = vmatpush1.msra.mxu0 0.0
    %1613 = vmatprep.subr.mxu0 0.0
    %1614 = vmatpush1.msra.mxu0 0.0
    %1615 = vmatprep.subr.mxu0 0.0
    %1616 = vmatpush1.msra.mxu0 0.0
    %1617 = vmatprep.subr.mxu0 0.0
    %1618 = vmatpush1.msra.mxu0 0.0
    %1619 = vmatprep.subr.mxu0 0.0
    %1620 = vmatpush1.msra.mxu0 0.0
    %1621 = vmatprep.subr.mxu0 0.0
    %1622 = vmatpush1.msra.mxu0 0.0
    %1623 = vmatprep.subr.mxu0 0.0
    %1624 = vmatpush1.msra.mxu0 0.0
    %1625 = vmatprep.subr.mxu0 0.0
    %1626 = vmatpush1.msra.mxu0 0.0
    %1627 = vmatprep.subr.mxu0 0.0
    %1628 = vmatpush1.msra.mxu0 0.0
    %1629 = vmatprep.subr.mxu0 0.0
    %1630 = vmatpush1.msra.mxu0 0.0
    %1631 = vmatprep.subr.mxu0 0.0
    %1632 = vmatpush1.msra.mxu0 0.0
    %1633 = vmatprep.subr.mxu0 0.0
    %1634 = vmatpush1.msra.mxu0 0.0
    %1635 = vmatprep.subr.mxu0 0.0
    %1636 = vmatpush1.msra.mxu0 0.0
    %1637 = vmatprep.subr.mxu0 0.0
    %1638 = vmatpush1.msra.mxu0 0.0
    %1639 = vmatprep.subr.mxu0 0.0
    %1640 = vmatpush1.msra.mxu0 0.0
    %1641 = vmatprep.subr.mxu0 0.0
    %1642 = vmatpush1.msra.mxu0 0.0
    %1643 = vmatprep.subr.mxu0 0.0
    %1644 = vmatpush1.msra.mxu0 0.0
    %1645 = vmatprep.subr.mxu0 0.0
    %1646 = vmatpush1.msra.mxu0 0.0
    %1647 = vmatprep.subr.mxu0 0.0
    %1648 = vmatpush1.msra.mxu0 0.0
    %1649 = vmatprep.subr.mxu0 0.0
    %1650 = vmatpush1.msra.mxu0 0.0
    %1651 = vmatprep.mubr.f32.mxu0 0.0
    %1652 = vmatmul.mubr.f32.gmra.mrb[0].mxu0 %v1582
    %v1653 = vpop.f32.mrb[0].mxu0
    %v1654 = vadd.f32 0.0, %v1653
    %v1655 = vpop.f32.mrb[0].mxu0
    %1656 = vmatprep.mubr.f32.mxu0 0.0
    %1657 = vmatmul.mubr.f32.gmra.mrb[0].mxu0 %v1585
    %v1658 = vpop.f32.mrb[0].mxu0
    %v1659 = vadd.f32 0.0, %v1658
    %v1660 = vpop.f32.mrb[0].mxu0
    %1661 = vdwg.mxu0
    %v1662 = vadd.f32 %v1207, %v1654
    %v1663 = vadd.f32 %v1212, %v1659
    %1664 = vrot.lane.b32.xlu0 %v204, 104
    %v1665 = vpop.permute.xlu0 %1664
    %1666 = vrot.lane.b32.xlu0 %v209, 104
    %v1667 = vpop.permute.xlu0 %1666
    %v1669 = vsel %vm329, %v314, 0
    %v1671 = vsel %vm329, %v1665, 0
    %v1673 = vsel %vm329, %v1667, 0
    %1675 = vmatprep.subr.mxu0 0.0
    %1676 = vmatpush1.xpose.msra.mxu0 %v1671
    %1677 = vmatprep.subr.mxu0 0.0
    %1678 = vmatpush1.xpose.msra.mxu0 %v1673
    %1679 = vmatprep.subr.mxu0 0.0
    %1680 = vmatpush1.xpose.msra.mxu0 0.0
    %1681 = vmatprep.subr.mxu0 0.0
    %1682 = vmatpush1.xpose.msra.mxu0 0.0
    %1683 = vmatprep.subr.mxu0 0.0
    %1684 = vmatpush1.xpose.msra.mxu0 0.0
    %1685 = vmatprep.subr.mxu0 0.0
    %1686 = vmatpush1.xpose.msra.mxu0 0.0
    %1687 = vmatprep.subr.mxu0 0.0
    %1688 = vmatpush1.xpose.msra.mxu0 0.0
    %1689 = vmatprep.subr.mxu0 0.0
    %1690 = vmatpush1.xpose.msra.mxu0 0.0
    %1691 = vmatprep.subr.mxu0 0.0
    %1692 = vmatpush1.xpose.msra.mxu0 0.0
    %1693 = vmatprep.subr.mxu0 0.0
    %1694 = vmatpush1.xpose.msra.mxu0 0.0
    %1695 = vmatprep.subr.mxu0 0.0
    %1696 = vmatpush1.xpose.msra.mxu0 0.0
    %1697 = vmatprep.subr.mxu0 0.0
    %1698 = vmatpush1.xpose.msra.mxu0 0.0
    %1699 = vmatprep.subr.mxu0 0.0
    %1700 = vmatpush1.xpose.msra.mxu0 0.0
    %1701 = vmatprep.subr.mxu0 0.0
    %1702 = vmatpush1.xpose.msra.mxu0 0.0
    %1703 = vmatprep.subr.mxu0 0.0
    %1704 = vmatpush1.xpose.msra.mxu0 0.0
    %1705 = vmatprep.subr.mxu0 0.0
    %1706 = vmatpush1.xpose.msra.mxu0 0.0
    %1707 = vmatprep.subr.mxu0 0.0
    %1708 = vmatpush1.xpose.msra.mxu0 0.0
    %1709 = vmatprep.subr.mxu0 0.0
    %1710 = vmatpush1.xpose.msra.mxu0 0.0
    %1711 = vmatprep.subr.mxu0 0.0
    %1712 = vmatpush1.xpose.msra.mxu0 0.0
    %1713 = vmatprep.subr.mxu0 0.0
    %1714 = vmatpush1.xpose.msra.mxu0 0.0
    %1715 = vmatprep.subr.mxu0 0.0
    %1716 = vmatpush1.xpose.msra.mxu0 0.0
    %1717 = vmatprep.subr.mxu0 0.0
    %1718 = vmatpush1.xpose.msra.mxu0 0.0
    %1719 = vmatprep.subr.mxu0 0.0
    %1720 = vmatpush1.xpose.msra.mxu0 0.0
    %1721 = vmatprep.subr.mxu0 0.0
    %1722 = vmatpush1.xpose.msra.mxu0 0.0
    %1723 = vmatprep.subr.mxu0 0.0
    %1724 = vmatpush1.xpose.msra.mxu0 0.0
    %1725 = vmatprep.subr.mxu0 0.0
    %1726 = vmatpush1.xpose.msra.mxu0 0.0
    %1727 = vmatprep.subr.mxu0 0.0
    %1728 = vmatpush1.xpose.msra.mxu0 0.0
    %1729 = vmatprep.subr.mxu0 0.0
    %1730 = vmatpush1.xpose.msra.mxu0 0.0
    %1731 = vmatprep.subr.mxu0 0.0
    %1732 = vmatpush1.xpose.msra.mxu0 0.0
    %1733 = vmatprep.subr.mxu0 0.0
    %1734 = vmatpush1.xpose.msra.mxu0 0.0
    %1735 = vmatprep.subr.mxu0 0.0
    %1736 = vmatpush1.xpose.msra.mxu0 0.0
    %1737 = vmatprep.subr.mxu0 0.0
    %1738 = vmatpush1.xpose.msra.mxu0 0.0
    %1739 = vmatprep.mubr.f32.mxu0 0.0
    %1740 = vmatmul.mubr.f32.gmra.mrb[0].mxu0 %v1669
    %v1741 = vpop.f32.mrb[0].mxu0
    %v1742 = vadd.f32 0.0, %v1741
    %v1743 = vpop.f32.mrb[0].mxu0
    %1744 = vdwg.mxu0
    %v1745 = vmul.f32 %v1742, 0.35355338
    %v1746 = vsel %vm410, %v1745, -inf
    %1747 = vmax.xlane.f32.xlu0 %v1746
    %v1748 = vpop.xlane.xlu0 %1747
    %v1749 = vsub.f32 %v1745, %v1748
    %v1750 = vmul.f32 %v1749, 1.442695
    %v1751 = vpow.pop %v1750
    %v1752 = vsel %vm410, %v1751, 0.0
    %1753 = vadd.xlane.f32.xlu0 %v1752
    %v1754 = vpop.xlane.xlu0 %1753
    %v1755 = vrcp.pop %v1754
    %v1756 = vmul.f32 %v1751, %v1755
    %1757 = vrot.lane.b32.xlu0 %v293, 104
    %v1758 = vpop.permute.xlu0 %1757
    %1759 = vrot.lane.b32.xlu0 %v298, 104
    %v1760 = vpop.permute.xlu0 %1759
    %v1764 = vsel %vm410, %v1756, 0
    %1766 = vmatprep.subr.mxu0 0.0
    %1767 = vmatpush1.msra.mxu0 %v1758
    %1768 = vmatprep.subr.mxu0 0.0
    %1769 = vmatpush1.msra.mxu0 %v1760
    %1770 = vmatprep.subr.mxu0 0.0
    %1771 = vmatpush1.msra.mxu0 0.0
    %1772 = vmatprep.subr.mxu0 0.0
    %1773 = vmatpush1.msra.mxu0 0.0
    %1774 = vmatprep.subr.mxu0 0.0
    %1775 = vmatpush1.msra.mxu0 0.0
    %1776 = vmatprep.subr.mxu0 0.0
    %1777 = vmatpush1.msra.mxu0 0.0
    %1778 = vmatprep.subr.mxu0 0.0
    %1779 = vmatpush1.msra.mxu0 0.0
    %1780 = vmatprep.subr.mxu0 0.0
    %1781 = vmatpush1.msra.mxu0 0.0
    %1782 = vmatprep.subr.mxu0 0.0
    %1783 = vmatpush1.msra.mxu0 0.0
    %1784 = vmatprep.subr.mxu0 0.0
    %1785 = vmatpush1.msra.mxu0 0.0
    %1786 = vmatprep.subr.mxu0 0.0
    %1787 = vmatpush1.msra.mxu0 0.0
    %1788 = vmatprep.subr.mxu0 0.0
    %1789 = vmatpush1.msra.mxu0 0.0
    %1790 = vmatprep.subr.mxu0 0.0
    %1791 = vmatpush1.msra.mxu0 0.0
    %1792 = vmatprep.subr.mxu0 0.0
    %1793 = vmatpush1.msra.mxu0 0.0
    %1794 = vmatprep.subr.mxu0 0.0
    %1795 = vmatpush1.msra.mxu0 0.0
    %1796 = vmatprep.subr.mxu0 0.0
    %1797 = vmatpush1.msra.mxu0 0.0
    %1798 = vmatprep.subr.mxu0 0.0
    %1799 = vmatpush1.msra.mxu0 0.0
    %1800 = vmatprep.subr.mxu0 0.0
    %1801 = vmatpush1.msra.mxu0 0.0
    %1802 = vmatprep.subr.mxu0 0.0
    %1803 = vmatpush1.msra.mxu0 0.0
    %1804 = vmatprep.subr.mxu0 0.0
    %1805 = vmatpush1.msra.mxu0 0.0
    %1806 = vmatprep.subr.mxu0 0.0
    %1807 = vmatpush1.msra.mxu0 0.0
    %1808 = vmatprep.subr.mxu0 0.0
    %1809 = vmatpush1.msra.mxu0 0.0
    %1810 = vmatprep.subr.mxu0 0.0
    %1811 = vmatpush1.msra.mxu0 0.0
    %1812 = vmatprep.subr.mxu0 0.0
    %1813 = vmatpush1.msra.mxu0 0.0
    %1814 = vmatprep.subr.mxu0 0.0
    %1815 = vmatpush1.msra.mxu0 0.0
    %1816 = vmatprep.subr.mxu0 0.0
    %1817 = vmatpush1.msra.mxu0 0.0
    %1818 = vmatprep.subr.mxu0 0.0
    %1819 = vmatpush1.msra.mxu0 0.0
    %1820 = vmatprep.subr.mxu0 0.0
    %1821 = vmatpush1.msra.mxu0 0.0
    %1822 = vmatprep.subr.mxu0 0.0
    %1823 = vmatpush1.msra.mxu0 0.0
    %1824 = vmatprep.subr.mxu0 0.0
    %1825 = vmatpush1.msra.mxu0 0.0
    %1826 = vmatprep.subr.mxu0 0.0
    %1827 = vmatpush1.msra.mxu0 0.0
    %1828 = vmatprep.subr.mxu0 0.0
    %1829 = vmatpush1.msra.mxu0 0.0
    %1830 = vmatprep.mubr.f32.mxu0 0.0
    %1831 = vmatmul.mubr.f32.gmra.mrb[0].mxu0 %v1764
    %v1832 = vpop.f32.mrb[0].mxu0
    %v1833 = vadd.f32 0.0, %v1832
    %v1834 = vpop.f32.mrb[0].mxu0
    %1835 = vdwg.mxu0
    %1836 = vrot.lane.b32.xlu0 %v115, 104
    %v1837 = vpop.permute.xlu0 %1836
    %1838 = vrot.lane.b32.xlu0 %v120, 104
    %v1839 = vpop.permute.xlu0 %1838
    %v1840 = vsel %vm329, %v1837, 0
    %v1842 = vsel %vm329, %v1839, 0
    %1844 = vmatprep.subr.mxu0 0.0
    %1845 = vmatpush1.xpose.msra.mxu0 %v1669
    %1846 = vmatprep.subr.mxu0 0.0
    %1847 = vmatpush1.xpose.msra.mxu0 0.0
    %1848 = vmatprep.subr.mxu0 0.0
    %1849 = vmatpush1.xpose.msra.mxu0 0.0
    %1850 = vmatprep.subr.mxu0 0.0
    %1851 = vmatpush1.xpose.msra.mxu0 0.0
    %1852 = vmatprep.subr.mxu0 0.0
    %1853 = vmatpush1.xpose.msra.mxu0 0.0
    %1854 = vmatprep.subr.mxu0 0.0
    %1855 = vmatpush1.xpose.msra.mxu0 0.0
    %1856 = vmatprep.subr.mxu0 0.0
    %1857 = vmatpush1.xpose.msra.mxu0 0.0
    %1858 = vmatprep.subr.mxu0 0.0
    %1859 = vmatpush1.xpose.msra.mxu0 0.0
    %1860 = vmatprep.subr.mxu0 0.0
    %1861 = vmatpush1.xpose.msra.mxu0 0.0
    %1862 = vmatprep.subr.mxu0 0.0
    %1863 = vmatpush1.xpose.msra.mxu0 0.0
    %1864 = vmatprep.subr.mxu0 0.0
    %1865 = vmatpush1.xpose.msra.mxu0 0.0
    %1866 = vmatprep.subr.mxu0 0.0
    %1867 = vmatpush1.xpose.msra.mxu0 0.0
    %1868 = vmatprep.subr.mxu0 0.0
    %1869 = vmatpush1.xpose.msra.mxu0 0.0
    %1870 = vmatprep.subr.mxu0 0.0
    %1871 = vmatpush1.xpose.msra.mxu0 0.0
    %1872 = vmatprep.subr.mxu0 0.0
    %1873 = vmatpush1.xpose.msra.mxu0 0.0
    %1874 = vmatprep.subr.mxu0 0.0
    %1875 = vmatpush1.xpose.msra.mxu0 0.0
    %1876 = vmatprep.subr.mxu0 0.0
    %1877 = vmatpush1.xpose.msra.mxu0 0.0
    %1878 = vmatprep.subr.mxu0 0.0
    %1879 = vmatpush1.xpose.msra.mxu0 0.0
    %1880 = vmatprep.subr.mxu0 0.0
    %1881 = vmatpush1.xpose.msra.mxu0 0.0
    %1882 = vmatprep.subr.mxu0 0.0
    %1883 = vmatpush1.xpose.msra.mxu0 0.0
    %1884 = vmatprep.subr.mxu0 0.0
    %1885 = vmatpush1.xpose.msra.mxu0 0.0
    %1886 = vmatprep.subr.mxu0 0.0
    %1887 = vmatpush1.xpose.msra.mxu0 0.0
    %1888 = vmatprep.subr.mxu0 0.0
    %1889 = vmatpush1.xpose.msra.mxu0 0.0
    %1890 = vmatprep.subr.mxu0 0.0
    %1891 = vmatpush1.xpose.msra.mxu0 0.0
    %1892 = vmatprep.subr.mxu0 0.0
    %1893 = vmatpush1.xpose.msra.mxu0 0.0
    %1894 = vmatprep.subr.mxu0 0.0
    %1895 = vmatpush1.xpose.msra.mxu0 0.0
    %1896 = vmatprep.subr.mxu0 0.0
    %1897 = vmatpush1.xpose.msra.mxu0 0.0
    %1898 = vmatprep.subr.mxu0 0.0
    %1899 = vmatpush1.xpose.msra.mxu0 0.0
    %1900 = vmatprep.subr.mxu0 0.0
    %1901 = vmatpush1.xpose.msra.mxu0 0.0
    %1902 = vmatprep.subr.mxu0 0.0
    %1903 = vmatpush1.xpose.msra.mxu0 0.0
    %1904 = vmatprep.subr.mxu0 0.0
    %1905 = vmatpush1.xpose.msra.mxu0 0.0
    %1906 = vmatprep.subr.mxu0 0.0
    %1907 = vmatpush1.xpose.msra.mxu0 0.0
    %1908 = vmatprep.mubr.f32.mxu0 0.0
    %1909 = vmatmul.mubr.f32.gmra.mrb[0].mxu0 %v1840
    %v1910 = vpop.f32.mrb[0].mxu0
    %v1911 = vadd.f32 0.0, %v1910
    %v1912 = vpop.f32.mrb[0].mxu0
    %1913 = vmatprep.mubr.f32.mxu0 0.0
    %1914 = vmatmul.mubr.f32.gmra.mrb[0].mxu0 %v1842
    %v1915 = vpop.f32.mrb[0].mxu0
    %v1916 = vadd.f32 0.0, %v1915
    %v1917 = vpop.f32.mrb[0].mxu0
    %1918 = vdwg.mxu0
    %v1919 = vmul.f32 %v1911, 0.35355338
    %v1920 = vmul.f32 %v1916, 0.35355338
    %v1921 = vsel %vm329, %v1919, -inf
    %1922 = vmax.xlane.f32.xlu0 %v1921
    %v1923 = vpop.xlane.xlu0 %1922
    %v1924 = vsel %vm329, %v1920, -inf
    %1925 = vmax.xlane.f32.xlu0 %v1924
    %v1926 = vpop.xlane.xlu0 %1925
    %v1927 = vsub.f32 %v1919, %v1923
    %v1928 = vsub.f32 %v1920, %v1926
    %v1929 = vmul.f32 %v1927, 1.442695
    %v1930 = vpow.pop %v1929
    %v1931 = vmul.f32 %v1928, 1.442695
    %v1932 = vpow.pop %v1931
    %v1933 = vsel %vm329, %v1930, 0.0
    %1934 = vadd.xlane.f32.xlu0 %v1933
    %v1935 = vpop.xlane.xlu0 %1934
    %v1936 = vsel %vm329, %v1932, 0.0
    %1937 = vadd.xlane.f32.xlu0 %v1936
    %v1938 = vpop.xlane.xlu0 %1937
    %v1939 = vrcp.pop %v1935
    %v1940 = vrcp.pop %v1938
    %v1941 = vmul.f32 %v1930, %v1939
    %v1942 = vmul.f32 %v1932, %v1940
    %1943 = vrot.lane.b32.xlu0 %v600, 104
    %v1944 = vpop.permute.xlu0 %1943
    %1945 = vrot.lane.b32.xlu0 %v601, 104
    %v1946 = vpop.permute.xlu0 %1945
    %v1950 = vsel %vm329, %v1941, 0
    %v1953 = vsel %vm329, %v1942, 0
    %1955 = vmatprep.subr.mxu0 0.0
    %1956 = vmatpush1.msra.mxu0 %v1833
    %1957 = vmatprep.subr.mxu0 0.0
    %1958 = vmatpush1.msra.mxu0 0.0
    %1959 = vmatprep.subr.mxu0 0.0
    %1960 = vmatpush1.msra.mxu0 0.0
    %1961 = vmatprep.subr.mxu0 0.0
    %1962 = vmatpush1.msra.mxu0 0.0
    %1963 = vmatprep.subr.mxu0 0.0
    %1964 = vmatpush1.msra.mxu0 0.0
    %1965 = vmatprep.subr.mxu0 0.0
    %1966 = vmatpush1.msra.mxu0 0.0
    %1967 = vmatprep.subr.mxu0 0.0
    %1968 = vmatpush1.msra.mxu0 0.0
    %1969 = vmatprep.subr.mxu0 0.0
    %1970 = vmatpush1.msra.mxu0 0.0
    %1971 = vmatprep.subr.mxu0 0.0
    %1972 = vmatpush1.msra.mxu0 0.0
    %1973 = vmatprep.subr.mxu0 0.0
    %1974 = vmatpush1.msra.mxu0 0.0
    %1975 = vmatprep.subr.mxu0 0.0
    %1976 = vmatpush1.msra.mxu0 0.0
    %1977 = vmatprep.subr.mxu0 0.0
    %1978 = vmatpush1.msra.mxu0 0.0
    %1979 = vmatprep.subr.mxu0 0.0
    %1980 = vmatpush1.msra.mxu0 0.0
    %1981 = vmatprep.subr.mxu0 0.0
    %1982 = vmatpush1.msra.mxu0 0.0
    %1983 = vmatprep.subr.mxu0 0.0
    %1984 = vmatpush1.msra.mxu0 0.0
    %1985 = vmatprep.subr.mxu0 0.0
    %1986 = vmatpush1.msra.mxu0 0.0
    %1987 = vmatprep.subr.mxu0 0.0
    %1988 = vmatpush1.msra.mxu0 0.0
    %1989 = vmatprep.subr.mxu0 0.0
    %1990 = vmatpush1.msra.mxu0 0.0
    %1991 = vmatprep.subr.mxu0 0.0
    %1992 = vmatpush1.msra.mxu0 0.0
    %1993 = vmatprep.subr.mxu0 0.0
    %1994 = vmatpush1.msra.mxu0 0.0
    %1995 = vmatprep.subr.mxu0 0.0
    %1996 = vmatpush1.msra.mxu0 0.0
    %1997 = vmatprep.subr.mxu0 0.0
    %1998 = vmatpush1.msra.mxu0 0.0
    %1999 = vmatprep.subr.mxu0 0.0
    %2000 = vmatpush1.msra.mxu0 0.0
    %2001 = vmatprep.subr.mxu0 0.0
    %2002 = vmatpush1.msra.mxu0 0.0
    %2003 = vmatprep.subr.mxu0 0.0
    %2004 = vmatpush1.msra.mxu0 0.0
    %2005 = vmatprep.subr.mxu0 0.0
    %2006 = vmatpush1.msra.mxu0 0.0
    %2007 = vmatprep.subr.mxu0 0.0
    %2008 = vmatpush1.msra.mxu0 0.0
    %2009 = vmatprep.subr.mxu0 0.0
    %2010 = vmatpush1.msra.mxu0 0.0
    %2011 = vmatprep.subr.mxu0 0.0
    %2012 = vmatpush1.msra.mxu0 0.0
    %2013 = vmatprep.subr.mxu0 0.0
    %2014 = vmatpush1.msra.mxu0 0.0
    %2015 = vmatprep.subr.mxu0 0.0
    %2016 = vmatpush1.msra.mxu0 0.0
    %2017 = vmatprep.subr.mxu0 0.0
    %2018 = vmatpush1.msra.mxu0 0.0
    %2019 = vmatprep.mubr.f32.mxu0 0.0
    %2020 = vmatmul.mubr.f32.gmra.mrb[0].mxu0 %v1950
    %v2021 = vpop.f32.mrb[0].mxu0
    %v2022 = vadd.f32 %v1944, %v2021
    %v2023 = vpop.f32.mrb[0].mxu0
    %2024 = vmatprep.mubr.f32.mxu0 0.0
    %2025 = vmatmul.mubr.f32.gmra.mrb[0].mxu0 %v1953
    %v2026 = vpop.f32.mrb[0].mxu0
    %v2027 = vadd.f32 %v1946, %v2026
    %v2028 = vpop.f32.mrb[0].mxu0
    %2029 = vdwg.mxu0
    %v2031 = vsel %vm329, %v2022, 0
    %v2034 = vsel %vm329, %v2027, 0
    %2036 = vmatprep.subr.mxu0 0.0
    %2037 = vmatpush1.msra.mxu0 %v318
    %2038 = vmatprep.subr.mxu0 0.0
    %2039 = vmatpush1.msra.mxu0 0.0
    %2040 = vmatprep.subr.mxu0 0.0
    %2041 = vmatpush1.msra.mxu0 0.0
    %2042 = vmatprep.subr.mxu0 0.0
    %2043 = vmatpush1.msra.mxu0 0.0
    %2044 = vmatprep.subr.mxu0 0.0
    %2045 = vmatpush1.msra.mxu0 0.0
    %2046 = vmatprep.subr.mxu0 0.0
    %2047 = vmatpush1.msra.mxu0 0.0
    %2048 = vmatprep.subr.mxu0 0.0
    %2049 = vmatpush1.msra.mxu0 0.0
    %2050 = vmatprep.subr.mxu0 0.0
    %2051 = vmatpush1.msra.mxu0 0.0
    %2052 = vmatprep.subr.mxu0 0.0
    %2053 = vmatpush1.msra.mxu0 0.0
    %2054 = vmatprep.subr.mxu0 0.0
    %2055 = vmatpush1.msra.mxu0 0.0
    %2056 = vmatprep.subr.mxu0 0.0
    %2057 = vmatpush1.msra.mxu0 0.0
    %2058 = vmatprep.subr.mxu0 0.0
    %2059 = vmatpush1.msra.mxu0 0.0
    %2060 = vmatprep.subr.mxu0 0.0
    %2061 = vmatpush1.msra.mxu0 0.0
    %2062 = vmatprep.subr.mxu0 0.0
    %2063 = vmatpush1.msra.mxu0 0.0
    %2064 = vmatprep.subr.mxu0 0.0
    %2065 = vmatpush1.msra.mxu0 0.0
    %2066 = vmatprep.subr.mxu0 0.0
    %2067 = vmatpush1.msra.mxu0 0.0
    %2068 = vmatprep.subr.mxu0 0.0
    %2069 = vmatpush1.msra.mxu0 0.0
    %2070 = vmatprep.subr.mxu0 0.0
    %2071 = vmatpush1.msra.mxu0 0.0
    %2072 = vmatprep.subr.mxu0 0.0
    %2073 = vmatpush1.msra.mxu0 0.0
    %2074 = vmatprep.subr.mxu0 0.0
    %2075 = vmatpush1.msra.mxu0 0.0
    %2076 = vmatprep.subr.mxu0 0.0
    %2077 = vmatpush1.msra.mxu0 0.0
    %2078 = vmatprep.subr.mxu0 0.0
    %2079 = vmatpush1.msra.mxu0 0.0
    %2080 = vmatprep.subr.mxu0 0.0
    %2081 = vmatpush1.msra.mxu0 0.0
    %2082 = vmatprep.subr.mxu0 0.0
    %2083 = vmatpush1.msra.mxu0 0.0
    %2084 = vmatprep.subr.mxu0 0.0
    %2085 = vmatpush1.msra.mxu0 0.0
    %2086 = vmatprep.subr.mxu0 0.0
    %2087 = vmatpush1.msra.mxu0 0.0
    %2088 = vmatprep.subr.mxu0 0.0
    %2089 = vmatpush1.msra.mxu0 0.0
    %2090 = vmatprep.subr.mxu0 0.0
    %2091 = vmatpush1.msra.mxu0 0.0
    %2092 = vmatprep.subr.mxu0 0.0
    %2093 = vmatpush1.msra.mxu0 0.0
    %2094 = vmatprep.subr.mxu0 0.0
    %2095 = vmatpush1.msra.mxu0 0.0
    %2096 = vmatprep.subr.mxu0 0.0
    %2097 = vmatpush1.msra.mxu0 0.0
    %2098 = vmatprep.subr.mxu0 0.0
    %2099 = vmatpush1.msra.mxu0 0.0
    %2100 = vmatprep.mubr.f32.mxu0 0.0
    %2101 = vmatmul.mubr.f32.gmra.mrb[0].mxu0 %v2031
    %v2102 = vpop.f32.mrb[0].mxu0
    %v2103 = vadd.f32 0.0, %v2102
    %v2104 = vpop.f32.mrb[0].mxu0
    %2105 = vmatprep.mubr.f32.mxu0 0.0
    %2106 = vmatmul.mubr.f32.gmra.mrb[0].mxu0 %v2034
    %v2107 = vpop.f32.mrb[0].mxu0
    %v2108 = vadd.f32 0.0, %v2107
    %v2109 = vpop.f32.mrb[0].mxu0
    %2110 = vdwg.mxu0
    %v2111 = vadd.f32 %v1662, %v2103
    %v2112 = vadd.f32 %v1663, %v2108
    %v2114 = vlaneseq
    %v2115 = vshrl.u32 %v2114, 7
    %v2116 = vsub.s32 0, %v2115
    %v2117 = vrot.slane %v319, %v2116
    %v2119 = vadd.f32 %v2111, %v2117
    %v2120 = vadd.f32 %v2112, %v2117
    %2121 = vst.msk [vmem:[#allocation2] sm:$0xff] %vm35, %v2119
    %2122 = vst.msk [vmem:[#allocation2 + $0x8] sm:$0xff] %vm35, %v2120
    %v2124 = vsel %vm329, %v214, 0
    %v2127 = vsel %vm329, %v219, 0
    %2129 = vmatprep.subr.mxu0 0.0
    %2130 = vmatpush1.xpose.msra.mxu0 %v2124
    %2131 = vmatprep.subr.mxu0 0.0
    %2132 = vmatpush1.xpose.msra.mxu0 %v2127
    %2133 = vmatprep.subr.mxu0 0.0
    %2134 = vmatpush1.xpose.msra.mxu0 0.0
    %2135 = vmatprep.subr.mxu0 0.0
    %2136 = vmatpush1.xpose.msra.mxu0 0.0
    %2137 = vmatprep.subr.mxu0 0.0
    %2138 = vmatpush1.xpose.msra.mxu0 0.0
    %2139 = vmatprep.subr.mxu0 0.0
    %2140 = vmatpush1.xpose.msra.mxu0 0.0
    %2141 = vmatprep.subr.mxu0 0.0
    %2142 = vmatpush1.xpose.msra.mxu0 0.0
    %2143 = vmatprep.subr.mxu0 0.0
    %2144 = vmatpush1.xpose.msra.mxu0 0.0
    %2145 = vmatprep.subr.mxu0 0.0
    %2146 = vmatpush1.xpose.msra.mxu0 0.0
    %2147 = vmatprep.subr.mxu0 0.0
    %2148 = vmatpush1.xpose.msra.mxu0 0.0
    %2149 = vmatprep.subr.mxu0 0.0
    %2150 = vmatpush1.xpose.msra.mxu0 0.0
    %2151 = vmatprep.subr.mxu0 0.0
    %2152 = vmatpush1.xpose.msra.mxu0 0.0
    %2153 = vmatprep.subr.mxu0 0.0
    %2154 = vmatpush1.xpose.msra.mxu0 0.0
    %2155 = vmatprep.subr.mxu0 0.0
    %2156 = vmatpush1.xpose.msra.mxu0 0.0
    %2157 = vmatprep.subr.mxu0 0.0
    %2158 = vmatpush1.xpose.msra.mxu0 0.0
    %2159 = vmatprep.subr.mxu0 0.0
    %2160 = vmatpush1.xpose.msra.mxu0 0.0
    %2161 = vmatprep.subr.mxu0 0.0
    %2162 = vmatpush1.xpose.msra.mxu0 0.0
    %2163 = vmatprep.subr.mxu0 0.0
    %2164 = vmatpush1.xpose.msra.mxu0 0.0
    %2165 = vmatprep.subr.mxu0 0.0
    %2166 = vmatpush1.xpose.msra.mxu0 0.0
    %2167 = vmatprep.subr.mxu0 0.0
    %2168 = vmatpush1.xpose.msra.mxu0 0.0
    %2169 = vmatprep.subr.mxu0 0.0
    %2170 = vmatpush1.xpose.msra.mxu0 0.0
    %2171 = vmatprep.subr.mxu0 0.0
    %2172 = vmatpush1.xpose.msra.mxu0 0.0
    %2173 = vmatprep.subr.mxu0 0.0
    %2174 = vmatpush1.xpose.msra.mxu0 0.0
    %2175 = vmatprep.subr.mxu0 0.0
    %2176 = vmatpush1.xpose.msra.mxu0 0.0
    %2177 = vmatprep.subr.mxu0 0.0
    %2178 = vmatpush1.xpose.msra.mxu0 0.0
    %2179 = vmatprep.subr.mxu0 0.0
    %2180 = vmatpush1.xpose.msra.mxu0 0.0
    %2181 = vmatprep.subr.mxu0 0.0
    %2182 = vmatpush1.xpose.msra.mxu0 0.0
    %2183 = vmatprep.subr.mxu0 0.0
    %2184 = vmatpush1.xpose.msra.mxu0 0.0
    %2185 = vmatprep.subr.mxu0 0.0
    %2186 = vmatpush1.xpose.msra.mxu0 0.0
    %2187 = vmatprep.subr.mxu0 0.0
    %2188 = vmatpush1.xpose.msra.mxu0 0.0
    %2189 = vmatprep.subr.mxu0 0.0
    %2190 = vmatpush1.xpose.msra.mxu0 0.0
    %2191 = vmatprep.subr.mxu0 0.0
    %2192 = vmatpush1.xpose.msra.mxu0 0.0
    %2193 = vmatprep.mubr.f32.mxu0 0.0
    %2194 = vmatmul.mubr.f32.gmra.mrb[0].mxu0 %v331
    %v2195 = vpop.f32.mrb[0].mxu0
    %v2196 = vadd.f32 0.0, %v2195
    %v2197 = vpop.f32.mrb[0].mxu0
    %2198 = vdwg.mxu0
    %v2199 = vmul.f32 %v2196, 0.35355338
    %v2200 = vsel %vm410, %v2199, -inf
    %2201 = vmax.xlane.f32.xlu0 %v2200
    %v2202 = vpop.xlane.xlu0 %2201
    %v2203 = vsub.f32 %v2199, %v2202
    %v2204 = vmul.f32 %v2203, 1.442695
    %v2205 = vpow.pop %v2204
    %v2206 = vsel %vm410, %v2205, 0.0
    %2207 = vadd.xlane.f32.xlu0 %v2206
    %v2208 = vpop.xlane.xlu0 %2207
    %v2209 = vrcp.pop %v2208
    %v2210 = vmul.f32 %v2205, %v2209
    %v2212 = vsel %vm410, %v2210, 0
    %2214 = vmatprep.subr.mxu0 0.0
    %2215 = vmatpush1.msra.mxu0 %v303
    %2216 = vmatprep.subr.mxu0 0.0
    %2217 = vmatpush1.msra.mxu0 %v308
    %2218 = vmatprep.subr.mxu0 0.0
    %2219 = vmatpush1.msra.mxu0 0.0
    %2220 = vmatprep.subr.mxu0 0.0
    %2221 = vmatpush1.msra.mxu0 0.0
    %2222 = vmatprep.subr.mxu0 0.0
    %2223 = vmatpush1.msra.mxu0 0.0
    %2224 = vmatprep.subr.mxu0 0.0
    %2225 = vmatpush1.msra.mxu0 0.0
    %2226 = vmatprep.subr.mxu0 0.0
    %2227 = vmatpush1.msra.mxu0 0.0
    %2228 = vmatprep.subr.mxu0 0.0
    %2229 = vmatpush1.msra.mxu0 0.0
    %2230 = vmatprep.subr.mxu0 0.0
    %2231 = vmatpush1.msra.mxu0 0.0
    %2232 = vmatprep.subr.mxu0 0.0
    %2233 = vmatpush1.msra.mxu0 0.0
    %2234 = vmatprep.subr.mxu0 0.0
    %2235 = vmatpush1.msra.mxu0 0.0
    %2236 = vmatprep.subr.mxu0 0.0
    %2237 = vmatpush1.msra.mxu0 0.0
    %2238 = vmatprep.subr.mxu0 0.0
    %2239 = vmatpush1.msra.mxu0 0.0
    %2240 = vmatprep.subr.mxu0 0.0
    %2241 = vmatpush1.msra.mxu0 0.0
    %2242 = vmatprep.subr.mxu0 0.0
    %2243 = vmatpush1.msra.mxu0 0.0
    %2244 = vmatprep.subr.mxu0 0.0
    %2245 = vmatpush1.msra.mxu0 0.0
    %2246 = vmatprep.subr.mxu0 0.0
    %2247 = vmatpush1.msra.mxu0 0.0
    %2248 = vmatprep.subr.mxu0 0.0
    %2249 = vmatpush1.msra.mxu0 0.0
    %2250 = vmatprep.subr.mxu0 0.0
    %2251 = vmatpush1.msra.mxu0 0.0
    %2252 = vmatprep.subr.mxu0 0.0
    %2253 = vmatpush1.msra.mxu0 0.0
    %2254 = vmatprep.subr.mxu0 0.0
    %2255 = vmatpush1.msra.mxu0 0.0
    %2256 = vmatprep.subr.mxu0 0.0
    %2257 = vmatpush1.msra.mxu0 0.0
    %2258 = vmatprep.subr.mxu0 0.0
    %2259 = vmatpush1.msra.mxu0 0.0
    %2260 = vmatprep.subr.mxu0 0.0
    %2261 = vmatpush1.msra.mxu0 0.0
    %2262 = vmatprep.subr.mxu0 0.0
    %2263 = vmatpush1.msra.mxu0 0.0
    %2264 = vmatprep.subr.mxu0 0.0
    %2265 = vmatpush1.msra.mxu0 0.0
    %2266 = vmatprep.subr.mxu0 0.0
    %2267 = vmatpush1.msra.mxu0 0.0
    %2268 = vmatprep.subr.mxu0 0.0
    %2269 = vmatpush1.msra.mxu0 0.0
    %2270 = vmatprep.subr.mxu0 0.0
    %2271 = vmatpush1.msra.mxu0 0.0
    %2272 = vmatprep.subr.mxu0 0.0
    %2273 = vmatpush1.msra.mxu0 0.0
    %2274 = vmatprep.subr.mxu0 0.0
    %2275 = vmatpush1.msra.mxu0 0.0
    %2276 = vmatprep.subr.mxu0 0.0
    %2277 = vmatpush1.msra.mxu0 0.0
    %2278 = vmatprep.mubr.f32.mxu0 0.0
    %2279 = vmatmul.mubr.f32.gmra.mrb[0].mxu0 %v2212
    %v2280 = vpop.f32.mrb[0].mxu0
    %v2281 = vadd.f32 0.0, %v2280
    %v2282 = vpop.f32.mrb[0].mxu0
    %2283 = vdwg.mxu0
    %v2285 = vsel %vm329, %v125, 0
    %v2288 = vsel %vm329, %v130, 0
    %2290 = vmatprep.subr.mxu0 0.0
    %2291 = vmatpush1.xpose.msra.mxu0 %v331
    %2292 = vmatprep.subr.mxu0 0.0
    %2293 = vmatpush1.xpose.msra.mxu0 0.0
    %2294 = vmatprep.subr.mxu0 0.0
    %2295 = vmatpush1.xpose.msra.mxu0 0.0
    %2296 = vmatprep.subr.mxu0 0.0
    %2297 = vmatpush1.xpose.msra.mxu0 0.0
    %2298 = vmatprep.subr.mxu0 0.0
    %2299 = vmatpush1.xpose.msra.mxu0 0.0
    %2300 = vmatprep.subr.mxu0 0.0
    %2301 = vmatpush1.xpose.msra.mxu0 0.0
    %2302 = vmatprep.subr.mxu0 0.0
    %2303 = vmatpush1.xpose.msra.mxu0 0.0
    %2304 = vmatprep.subr.mxu0 0.0
    %2305 = vmatpush1.xpose.msra.mxu0 0.0
    %2306 = vmatprep.subr.mxu0 0.0
    %2307 = vmatpush1.xpose.msra.mxu0 0.0
    %2308 = vmatprep.subr.mxu0 0.0
    %2309 = vmatpush1.xpose.msra.mxu0 0.0
    %2310 = vmatprep.subr.mxu0 0.0
    %2311 = vmatpush1.xpose.msra.mxu0 0.0
    %2312 = vmatprep.subr.mxu0 0.0
    %2313 = vmatpush1.xpose.msra.mxu0 0.0
    %2314 = vmatprep.subr.mxu0 0.0
    %2315 = vmatpush1.xpose.msra.mxu0 0.0
    %2316 = vmatprep.subr.mxu0 0.0
    %2317 = vmatpush1.xpose.msra.mxu0 0.0
    %2318 = vmatprep.subr.mxu0 0.0
    %2319 = vmatpush1.xpose.msra.mxu0 0.0
    %2320 = vmatprep.subr.mxu0 0.0
    %2321 = vmatpush1.xpose.msra.mxu0 0.0
    %2322 = vmatprep.subr.mxu0 0.0
    %2323 = vmatpush1.xpose.msra.mxu0 0.0
    %2324 = vmatprep.subr.mxu0 0.0
    %2325 = vmatpush1.xpose.msra.mxu0 0.0
    %2326 = vmatprep.subr.mxu0 0.0
    %2327 = vmatpush1.xpose.msra.mxu0 0.0
    %2328 = vmatprep.subr.mxu0 0.0
    %2329 = vmatpush1.xpose.msra.mxu0 0.0
    %2330 = vmatprep.subr.mxu0 0.0
    %2331 = vmatpush1.xpose.msra.mxu0 0.0
    %2332 = vmatprep.subr.mxu0 0.0
    %2333 = vmatpush1.xpose.msra.mxu0 0.0
    %2334 = vmatprep.subr.mxu0 0.0
    %2335 = vmatpush1.xpose.msra.mxu0 0.0
    %2336 = vmatprep.subr.mxu0 0.0
    %2337 = vmatpush1.xpose.msra.mxu0 0.0
    %2338 = vmatprep.subr.mxu0 0.0
    %2339 = vmatpush1.xpose.msra.mxu0 0.0
    %2340 = vmatprep.subr.mxu0 0.0
    %2341 = vmatpush1.xpose.msra.mxu0 0.0
    %2342 = vmatprep.subr.mxu0 0.0
    %2343 = vmatpush1.xpose.msra.mxu0 0.0
    %2344 = vmatprep.subr.mxu0 0.0
    %2345 = vmatpush1.xpose.msra.mxu0 0.0
    %2346 = vmatprep.subr.mxu0 0.0
    %2347 = vmatpush1.xpose.msra.mxu0 0.0
    %2348 = vmatprep.subr.mxu0 0.0
    %2349 = vmatpush1.xpose.msra.mxu0 0.0
    %2350 = vmatprep.subr.mxu0 0.0
    %2351 = vmatpush1.xpose.msra.mxu0 0.0
    %2352 = vmatprep.subr.mxu0 0.0
    %2353 = vmatpush1.xpose.msra.mxu0 0.0
    %2354 = vmatprep.mubr.f32.mxu0 0.0
    %2355 = vmatmul.mubr.f32.gmra.mrb[0].mxu0 %v2285
    %v2356 = vpop.f32.mrb[0].mxu0
    %v2357 = vadd.f32 0.0, %v2356
    %v2358 = vpop.f32.mrb[0].mxu0
    %2359 = vmatprep.mubr.f32.mxu0 0.0
    %2360 = vmatmul.mubr.f32.gmra.mrb[0].mxu0 %v2288
    %v2361 = vpop.f32.mrb[0].mxu0
    %v2362 = vadd.f32 0.0, %v2361
    %v2363 = vpop.f32.mrb[0].mxu0
    %2364 = vdwg.mxu0
    %v2365 = vmul.f32 %v2357, 0.35355338
    %v2366 = vmul.f32 %v2362, 0.35355338
    %v2367 = vsel %vm329, %v2365, -inf
    %2368 = vmax.xlane.f32.xlu0 %v2367
    %v2369 = vpop.xlane.xlu0 %2368
    %v2370 = vsel %vm329, %v2366, -inf
    %2371 = vmax.xlane.f32.xlu0 %v2370
    %v2372 = vpop.xlane.xlu0 %2371
    %v2373 = vsub.f32 %v2365, %v2369
    %v2374 = vsub.f32 %v2366, %v2372
    %v2375 = vmul.f32 %v2373, 1.442695
    %v2376 = vpow.pop %v2375
    %v2377 = vmul.f32 %v2374, 1.442695
    %v2378 = vpow.pop %v2377
    %v2379 = vsel %vm329, %v2376, 0.0
    %2380 = vadd.xlane.f32.xlu0 %v2379
    %v2381 = vpop.xlane.xlu0 %2380
    %v2382 = vsel %vm329, %v2378, 0.0
    %2383 = vadd.xlane.f32.xlu0 %v2382
    %v2384 = vpop.xlane.xlu0 %2383
    %v2385 = vrcp.pop %v2381
    %v2386 = vrcp.pop %v2384
    %v2387 = vmul.f32 %v2376, %v2385
    %v2388 = vmul.f32 %v2378, %v2386
    %v2389 = vmul.f32 %v327, %v303
    %v2390 = vmul.f32 %v328, %v308
    %v2392 = vsel %vm329, %v2387, 0
    %v2395 = vsel %vm329, %v2388, 0
    %2397 = vmatprep.subr.mxu0 0.0
    %2398 = vmatpush1.msra.mxu0 %v2281
    %2399 = vmatprep.subr.mxu0 0.0
    %2400 = vmatpush1.msra.mxu0 0.0
    %2401 = vmatprep.subr.mxu0 0.0
    %2402 = vmatpush1.msra.mxu0 0.0
    %2403 = vmatprep.subr.mxu0 0.0
    %2404 = vmatpush1.msra.mxu0 0.0
    %2405 = vmatprep.subr.mxu0 0.0
    %2406 = vmatpush1.msra.mxu0 0.0
    %2407 = vmatprep.subr.mxu0 0.0
    %2408 = vmatpush1.msra.mxu0 0.0
    %2409 = vmatprep.subr.mxu0 0.0
    %2410 = vmatpush1.msra.mxu0 0.0
    %2411 = vmatprep.subr.mxu0 0.0
    %2412 = vmatpush1.msra.mxu0 0.0
    %2413 = vmatprep.subr.mxu0 0.0
    %2414 = vmatpush1.msra.mxu0 0.0
    %2415 = vmatprep.subr.mxu0 0.0
    %2416 = vmatpush1.msra.mxu0 0.0
    %2417 = vmatprep.subr.mxu0 0.0
    %2418 = vmatpush1.msra.mxu0 0.0
    %2419 = vmatprep.subr.mxu0 0.0
    %2420 = vmatpush1.msra.mxu0 0.0
    %2421 = vmatprep.subr.mxu0 0.0
    %2422 = vmatpush1.msra.mxu0 0.0
    %2423 = vmatprep.subr.mxu0 0.0
    %2424 = vmatpush1.msra.mxu0 0.0
    %2425 = vmatprep.subr.mxu0 0.0
    %2426 = vmatpush1.msra.mxu0 0.0
    %2427 = vmatprep.subr.mxu0 0.0
    %2428 = vmatpush1.msra.mxu0 0.0
    %2429 = vmatprep.subr.mxu0 0.0
    %2430 = vmatpush1.msra.mxu0 0.0
    %2431 = vmatprep.subr.mxu0 0.0
    %2432 = vmatpush1.msra.mxu0 0.0
    %2433 = vmatprep.subr.mxu0 0.0
    %2434 = vmatpush1.msra.mxu0 0.0
    %2435 = vmatprep.subr.mxu0 0.0
    %2436 = vmatpush1.msra.mxu0 0.0
    %2437 = vmatprep.subr.mxu0 0.0
    %2438 = vmatpush1.msra.mxu0 0.0
    %2439 = vmatprep.subr.mxu0 0.0
    %2440 = vmatpush1.msra.mxu0 0.0
    %2441 = vmatprep.subr.mxu0 0.0
    %2442 = vmatpush1.msra.mxu0 0.0
    %2443 = vmatprep.subr.mxu0 0.0
    %2444 = vmatpush1.msra.mxu0 0.0
    %2445 = vmatprep.subr.mxu0 0.0
    %2446 = vmatpush1.msra.mxu0 0.0
    %2447 = vmatprep.subr.mxu0 0.0
    %2448 = vmatpush1.msra.mxu0 0.0
    %2449 = vmatprep.subr.mxu0 0.0
    %2450 = vmatpush1.msra.mxu0 0.0
    %2451 = vmatprep.subr.mxu0 0.0
    %2452 = vmatpush1.msra.mxu0 0.0
    %2453 = vmatprep.subr.mxu0 0.0
    %2454 = vmatpush1.msra.mxu0 0.0
    %2455 = vmatprep.subr.mxu0 0.0
    %2456 = vmatpush1.msra.mxu0 0.0
    %2457 = vmatprep.subr.mxu0 0.0
    %2458 = vmatpush1.msra.mxu0 0.0
    %2459 = vmatprep.subr.mxu0 0.0
    %2460 = vmatpush1.msra.mxu0 0.0
    %2461 = vmatprep.mubr.f32.mxu0 0.0
    %2462 = vmatmul.mubr.f32.gmra.mrb[0].mxu0 %v2392
    %v2463 = vpop.f32.mrb[0].mxu0
    %v2464 = vadd.f32 %v2389, %v2463
    %v2465 = vpop.f32.mrb[0].mxu0
    %2466 = vmatprep.mubr.f32.mxu0 0.0
    %2467 = vmatmul.mubr.f32.gmra.mrb[0].mxu0 %v2395
    %v2468 = vpop.f32.mrb[0].mxu0
    %v2469 = vadd.f32 %v2390, %v2468
    %v2470 = vpop.f32.mrb[0].mxu0
    %2471 = vdwg.mxu0
    %2472 = vrot.lane.b32.xlu0 %v214, 120
    %v2473 = vpop.permute.xlu0 %2472
    %2474 = vrot.lane.b32.xlu0 %v219, 120
    %v2475 = vpop.permute.xlu0 %2474
    %v2476 = vsel %vm329, %v2473, 0
    %v2478 = vsel %vm329, %v2475, 0
    %2480 = vmatprep.subr.mxu0 0.0
    %2481 = vmatpush1.xpose.msra.mxu0 %v2476
    %2482 = vmatprep.subr.mxu0 0.0
    %2483 = vmatpush1.xpose.msra.mxu0 %v2478
    %2484 = vmatprep.subr.mxu0 0.0
    %2485 = vmatpush1.xpose.msra.mxu0 0.0
    %2486 = vmatprep.subr.mxu0 0.0
    %2487 = vmatpush1.xpose.msra.mxu0 0.0
    %2488 = vmatprep.subr.mxu0 0.0
    %2489 = vmatpush1.xpose.msra.mxu0 0.0
    %2490 = vmatprep.subr.mxu0 0.0
    %2491 = vmatpush1.xpose.msra.mxu0 0.0
    %2492 = vmatprep.subr.mxu0 0.0
    %2493 = vmatpush1.xpose.msra.mxu0 0.0
    %2494 = vmatprep.subr.mxu0 0.0
    %2495 = vmatpush1.xpose.msra.mxu0 0.0
    %2496 = vmatprep.subr.mxu0 0.0
    %2497 = vmatpush1.xpose.msra.mxu0 0.0
    %2498 = vmatprep.subr.mxu0 0.0
    %2499 = vmatpush1.xpose.msra.mxu0 0.0
    %2500 = vmatprep.subr.mxu0 0.0
    %2501 = vmatpush1.xpose.msra.mxu0 0.0
    %2502 = vmatprep.subr.mxu0 0.0
    %2503 = vmatpush1.xpose.msra.mxu0 0.0
    %2504 = vmatprep.subr.mxu0 0.0
    %2505 = vmatpush1.xpose.msra.mxu0 0.0
    %2506 = vmatprep.subr.mxu0 0.0
    %2507 = vmatpush1.xpose.msra.mxu0 0.0
    %2508 = vmatprep.subr.mxu0 0.0
    %2509 = vmatpush1.xpose.msra.mxu0 0.0
    %2510 = vmatprep.subr.mxu0 0.0
    %2511 = vmatpush1.xpose.msra.mxu0 0.0
    %2512 = vmatprep.subr.mxu0 0.0
    %2513 = vmatpush1.xpose.msra.mxu0 0.0
    %2514 = vmatprep.subr.mxu0 0.0
    %2515 = vmatpush1.xpose.msra.mxu0 0.0
    %2516 = vmatprep.subr.mxu0 0.0
    %2517 = vmatpush1.xpose.msra.mxu0 0.0
    %2518 = vmatprep.subr.mxu0 0.0
    %2519 = vmatpush1.xpose.msra.mxu0 0.0
    %2520 = vmatprep.subr.mxu0 0.0
    %2521 = vmatpush1.xpose.msra.mxu0 0.0
    %2522 = vmatprep.subr.mxu0 0.0
    %2523 = vmatpush1.xpose.msra.mxu0 0.0
    %2524 = vmatprep.subr.mxu0 0.0
    %2525 = vmatpush1.xpose.msra.mxu0 0.0
    %2526 = vmatprep.subr.mxu0 0.0
    %2527 = vmatpush1.xpose.msra.mxu0 0.0
    %2528 = vmatprep.subr.mxu0 0.0
    %2529 = vmatpush1.xpose.msra.mxu0 0.0
    %2530 = vmatprep.subr.mxu0 0.0
    %2531 = vmatpush1.xpose.msra.mxu0 0.0
    %2532 = vmatprep.subr.mxu0 0.0
    %2533 = vmatpush1.xpose.msra.mxu0 0.0
    %2534 = vmatprep.subr.mxu0 0.0
    %2535 = vmatpush1.xpose.msra.mxu0 0.0
    %2536 = vmatprep.subr.mxu0 0.0
    %2537 = vmatpush1.xpose.msra.mxu0 0.0
    %2538 = vmatprep.subr.mxu0 0.0
    %2539 = vmatpush1.xpose.msra.mxu0 0.0
    %2540 = vmatprep.subr.mxu0 0.0
    %2541 = vmatpush1.xpose.msra.mxu0 0.0
    %2542 = vmatprep.subr.mxu0 0.0
    %2543 = vmatpush1.xpose.msra.mxu0 0.0
    %2544 = vmatprep.mubr.f32.mxu0 0.0
    %2545 = vmatmul.mubr.f32.gmra.mrb[0].mxu0 %v688
    %v2546 = vpop.f32.mrb[0].mxu0
    %v2547 = vadd.f32 0.0, %v2546
    %v2548 = vpop.f32.mrb[0].mxu0
    %2549 = vdwg.mxu0
    %v2550 = vmul.f32 %v2547, 0.35355338
    %v2551 = vsel %vm410, %v2550, -inf
    %2552 = vmax.xlane.f32.xlu0 %v2551
    %v2553 = vpop.xlane.xlu0 %2552
    %v2554 = vsub.f32 %v2550, %v2553
    %v2555 = vmul.f32 %v2554, 1.442695
    %v2556 = vpow.pop %v2555
    %v2557 = vsel %vm410, %v2556, 0.0
    %2558 = vadd.xlane.f32.xlu0 %v2557
    %v2559 = vpop.xlane.xlu0 %2558
    %v2560 = vrcp.pop %v2559
    %v2561 = vmul.f32 %v2556, %v2560
    %2564 = vrot.lane.b32.xlu0 %v303, 120
    %v2565 = vpop.permute.xlu0 %2564
    %2566 = vrot.lane.b32.xlu0 %v308, 120
    %v2567 = vpop.permute.xlu0 %2566
    %v2571 = vsel %vm410, %v2561, 0
    %2573 = vmatprep.subr.mxu0 0.0
    %2574 = vmatpush1.msra.mxu0 %v2565
    %2575 = vmatprep.subr.mxu0 0.0
    %2576 = vmatpush1.msra.mxu0 %v2567
    %2577 = vmatprep.subr.mxu0 0.0
    %2578 = vmatpush1.msra.mxu0 0.0
    %2579 = vmatprep.subr.mxu0 0.0
    %2580 = vmatpush1.msra.mxu0 0.0
    %2581 = vmatprep.subr.mxu0 0.0
    %2582 = vmatpush1.msra.mxu0 0.0
    %2583 = vmatprep.subr.mxu0 0.0
    %2584 = vmatpush1.msra.mxu0 0.0
    %2585 = vmatprep.subr.mxu0 0.0
    %2586 = vmatpush1.msra.mxu0 0.0
    %2587 = vmatprep.subr.mxu0 0.0
    %2588 = vmatpush1.msra.mxu0 0.0
    %2589 = vmatprep.subr.mxu0 0.0
    %2590 = vmatpush1.msra.mxu0 0.0
    %2591 = vmatprep.subr.mxu0 0.0
    %2592 = vmatpush1.msra.mxu0 0.0
    %2593 = vmatprep.subr.mxu0 0.0
    %2594 = vmatpush1.msra.mxu0 0.0
    %2595 = vmatprep.subr.mxu0 0.0
    %2596 = vmatpush1.msra.mxu0 0.0
    %2597 = vmatprep.subr.mxu0 0.0
    %2598 = vmatpush1.msra.mxu0 0.0
    %2599 = vmatprep.subr.mxu0 0.0
    %2600 = vmatpush1.msra.mxu0 0.0
    %2601 = vmatprep.subr.mxu0 0.0
    %2602 = vmatpush1.msra.mxu0 0.0
    %2603 = vmatprep.subr.mxu0 0.0
    %2604 = vmatpush1.msra.mxu0 0.0
    %2605 = vmatprep.subr.mxu0 0.0
    %2606 = vmatpush1.msra.mxu0 0.0
    %2607 = vmatprep.subr.mxu0 0.0
    %2608 = vmatpush1.msra.mxu0 0.0
    %2609 = vmatprep.subr.mxu0 0.0
    %2610 = vmatpush1.msra.mxu0 0.0
    %2611 = vmatprep.subr.mxu0 0.0
    %2612 = vmatpush1.msra.mxu0 0.0
    %2613 = vmatprep.subr.mxu0 0.0
    %2614 = vmatpush1.msra.mxu0 0.0
    %2615 = vmatprep.subr.mxu0 0.0
    %2616 = vmatpush1.msra.mxu0 0.0
    %2617 = vmatprep.subr.mxu0 0.0
    %2618 = vmatpush1.msra.mxu0 0.0
    %2619 = vmatprep.subr.mxu0 0.0
    %2620 = vmatpush1.msra.mxu0 0.0
    %2621 = vmatprep.subr.mxu0 0.0
    %2622 = vmatpush1.msra.mxu0 0.0
    %2623 = vmatprep.subr.mxu0 0.0
    %2624 = vmatpush1.msra.mxu0 0.0
    %2625 = vmatprep.subr.mxu0 0.0
    %2626 = vmatpush1.msra.mxu0 0.0
    %2627 = vmatprep.subr.mxu0 0.0
    %2628 = vmatpush1.msra.mxu0 0.0
    %2629 = vmatprep.subr.mxu0 0.0
    %2630 = vmatpush1.msra.mxu0 0.0
    %2631 = vmatprep.subr.mxu0 0.0
    %2632 = vmatpush1.msra.mxu0 0.0
    %2633 = vmatprep.subr.mxu0 0.0
    %2634 = vmatpush1.msra.mxu0 0.0
    %2635 = vmatprep.subr.mxu0 0.0
    %2636 = vmatpush1.msra.mxu0 0.0
    %2637 = vmatprep.mubr.f32.mxu0 0.0
    %2638 = vmatmul.mubr.f32.gmra.mrb[0].mxu0 %v2571
    %v2639 = vpop.f32.mrb[0].mxu0
    %v2640 = vadd.f32 0.0, %v2639
    %v2641 = vpop.f32.mrb[0].mxu0
    %2642 = vdwg.mxu0
    %2643 = vrot.lane.b32.xlu0 %v125, 120
    %v2644 = vpop.permute.xlu0 %2643
    %2645 = vrot.lane.b32.xlu0 %v130, 120
    %v2646 = vpop.permute.xlu0 %2645
    %v2647 = vsel %vm329, %v2644, 0
    %v2649 = vsel %vm329, %v2646, 0
    %2651 = vmatprep.subr.mxu0 0.0
    %2652 = vmatpush1.xpose.msra.mxu0 %v688
    %2653 = vmatprep.subr.mxu0 0.0
    %2654 = vmatpush1.xpose.msra.mxu0 0.0
    %2655 = vmatprep.subr.mxu0 0.0
    %2656 = vmatpush1.xpose.msra.mxu0 0.0
    %2657 = vmatprep.subr.mxu0 0.0
    %2658 = vmatpush1.xpose.msra.mxu0 0.0
    %2659 = vmatprep.subr.mxu0 0.0
    %2660 = vmatpush1.xpose.msra.mxu0 0.0
    %2661 = vmatprep.subr.mxu0 0.0
    %2662 = vmatpush1.xpose.msra.mxu0 0.0
    %2663 = vmatprep.subr.mxu0 0.0
    %2664 = vmatpush1.xpose.msra.mxu0 0.0
    %2665 = vmatprep.subr.mxu0 0.0
    %2666 = vmatpush1.xpose.msra.mxu0 0.0
    %2667 = vmatprep.subr.mxu0 0.0
    %2668 = vmatpush1.xpose.msra.mxu0 0.0
    %2669 = vmatprep.subr.mxu0 0.0
    %2670 = vmatpush1.xpose.msra.mxu0 0.0
    %2671 = vmatprep.subr.mxu0 0.0
    %2672 = vmatpush1.xpose.msra.mxu0 0.0
    %2673 = vmatprep.subr.mxu0 0.0
    %2674 = vmatpush1.xpose.msra.mxu0 0.0
    %2675 = vmatprep.subr.mxu0 0.0
    %2676 = vmatpush1.xpose.msra.mxu0 0.0
    %2677 = vmatprep.subr.mxu0 0.0
    %2678 = vmatpush1.xpose.msra.mxu0 0.0
    %2679 = vmatprep.subr.mxu0 0.0
    %2680 = vmatpush1.xpose.msra.mxu0 0.0
    %2681 = vmatprep.subr.mxu0 0.0
    %2682 = vmatpush1.xpose.msra.mxu0 0.0
    %2683 = vmatprep.subr.mxu0 0.0
    %2684 = vmatpush1.xpose.msra.mxu0 0.0
    %2685 = vmatprep.subr.mxu0 0.0
    %2686 = vmatpush1.xpose.msra.mxu0 0.0
    %2687 = vmatprep.subr.mxu0 0.0
    %2688 = vmatpush1.xpose.msra.mxu0 0.0
    %2689 = vmatprep.subr.mxu0 0.0
    %2690 = vmatpush1.xpose.msra.mxu0 0.0
    %2691 = vmatprep.subr.mxu0 0.0
    %2692 = vmatpush1.xpose.msra.mxu0 0.0
    %2693 = vmatprep.subr.mxu0 0.0
    %2694 = vmatpush1.xpose.msra.mxu0 0.0
    %2695 = vmatprep.subr.mxu0 0.0
    %2696 = vmatpush1.xpose.msra.mxu0 0.0
    %2697 = vmatprep.subr.mxu0 0.0
    %2698 = vmatpush1.xpose.msra.mxu0 0.0
    %2699 = vmatprep.subr.mxu0 0.0
    %2700 = vmatpush1.xpose.msra.mxu0 0.0
    %2701 = vmatprep.subr.mxu0 0.0
    %2702 = vmatpush1.xpose.msra.mxu0 0.0
    %2703 = vmatprep.subr.mxu0 0.0
    %2704 = vmatpush1.xpose.msra.mxu0 0.0
    %2705 = vmatprep.subr.mxu0 0.0
    %2706 = vmatpush1.xpose.msra.mxu0 0.0
    %2707 = vmatprep.subr.mxu0 0.0
    %2708 = vmatpush1.xpose.msra.mxu0 0.0
    %2709 = vmatprep.subr.mxu0 0.0
    %2710 = vmatpush1.xpose.msra.mxu0 0.0
    %2711 = vmatprep.subr.mxu0 0.0
    %2712 = vmatpush1.xpose.msra.mxu0 0.0
    %2713 = vmatprep.subr.mxu0 0.0
    %2714 = vmatpush1.xpose.msra.mxu0 0.0
    %2715 = vmatprep.mubr.f32.mxu0 0.0
    %2716 = vmatmul.mubr.f32.gmra.mrb[0].mxu0 %v2647
    %v2717 = vpop.f32.mrb[0].mxu0
    %v2718 = vadd.f32 0.0, %v2717
    %v2719 = vpop.f32.mrb[0].mxu0
    %2720 = vmatprep.mubr.f32.mxu0 0.0
    %2721 = vmatmul.mubr.f32.gmra.mrb[0].mxu0 %v2649
    %v2722 = vpop.f32.mrb[0].mxu0
    %v2723 = vadd.f32 0.0, %v2722
    %v2724 = vpop.f32.mrb[0].mxu0
    %2725 = vdwg.mxu0
    %v2726 = vmul.f32 %v2718, 0.35355338
    %v2727 = vmul.f32 %v2723, 0.35355338
    %v2728 = vsel %vm329, %v2726, -inf
    %2729 = vmax.xlane.f32.xlu0 %v2728
    %v2730 = vpop.xlane.xlu0 %2729
    %v2731 = vsel %vm329, %v2727, -inf
    %2732 = vmax.xlane.f32.xlu0 %v2731
    %v2733 = vpop.xlane.xlu0 %2732
    %v2734 = vsub.f32 %v2726, %v2730
    %v2735 = vsub.f32 %v2727, %v2733
    %v2736 = vmul.f32 %v2734, 1.442695
    %v2737 = vpow.pop %v2736
    %v2738 = vmul.f32 %v2735, 1.442695
    %v2739 = vpow.pop %v2738
    %v2740 = vsel %vm329, %v2737, 0.0
    %2741 = vadd.xlane.f32.xlu0 %v2740
    %v2742 = vpop.xlane.xlu0 %2741
    %v2743 = vsel %vm329, %v2739, 0.0
    %2744 = vadd.xlane.f32.xlu0 %v2743
    %v2745 = vpop.xlane.xlu0 %2744
    %v2746 = vrcp.pop %v2742
    %v2747 = vrcp.pop %v2745
    %v2748 = vmul.f32 %v2737, %v2746
    %v2749 = vmul.f32 %v2739, %v2747
    %2752 = vrot.lane.b32.xlu0 %v2389, 120
    %v2753 = vpop.permute.xlu0 %2752
    %2754 = vrot.lane.b32.xlu0 %v2390, 120
    %v2755 = vpop.permute.xlu0 %2754
    %v2759 = vsel %vm329, %v2748, 0
    %v2762 = vsel %vm329, %v2749, 0
    %2764 = vmatprep.subr.mxu0 0.0
    %2765 = vmatpush1.msra.mxu0 %v2640
    %2766 = vmatprep.subr.mxu0 0.0
    %2767 = vmatpush1.msra.mxu0 0.0
    %2768 = vmatprep.subr.mxu0 0.0
    %2769 = vmatpush1.msra.mxu0 0.0
    %2770 = vmatprep.subr.mxu0 0.0
    %2771 = vmatpush1.msra.mxu0 0.0
    %2772 = vmatprep.subr.mxu0 0.0
    %2773 = vmatpush1.msra.mxu0 0.0
    %2774 = vmatprep.subr.mxu0 0.0
    %2775 = vmatpush1.msra.mxu0 0.0
    %2776 = vmatprep.subr.mxu0 0.0
    %2777 = vmatpush1.msra.mxu0 0.0
    %2778 = vmatprep.subr.mxu0 0.0
    %2779 = vmatpush1.msra.mxu0 0.0
    %2780 = vmatprep.subr.mxu0 0.0
    %2781 = vmatpush1.msra.mxu0 0.0
    %2782 = vmatprep.subr.mxu0 0.0
    %2783 = vmatpush1.msra.mxu0 0.0
    %2784 = vmatprep.subr.mxu0 0.0
    %2785 = vmatpush1.msra.mxu0 0.0
    %2786 = vmatprep.subr.mxu0 0.0
    %2787 = vmatpush1.msra.mxu0 0.0
    %2788 = vmatprep.subr.mxu0 0.0
    %2789 = vmatpush1.msra.mxu0 0.0
    %2790 = vmatprep.subr.mxu0 0.0
    %2791 = vmatpush1.msra.mxu0 0.0
    %2792 = vmatprep.subr.mxu0 0.0
    %2793 = vmatpush1.msra.mxu0 0.0
    %2794 = vmatprep.subr.mxu0 0.0
    %2795 = vmatpush1.msra.mxu0 0.0
    %2796 = vmatprep.subr.mxu0 0.0
    %2797 = vmatpush1.msra.mxu0 0.0
    %2798 = vmatprep.subr.mxu0 0.0
    %2799 = vmatpush1.msra.mxu0 0.0
    %2800 = vmatprep.subr.mxu0 0.0
    %2801 = vmatpush1.msra.mxu0 0.0
    %2802 = vmatprep.subr.mxu0 0.0
    %2803 = vmatpush1.msra.mxu0 0.0
    %2804 = vmatprep.subr.mxu0 0.0
    %2805 = vmatpush1.msra.mxu0 0.0
    %2806 = vmatprep.subr.mxu0 0.0
    %2807 = vmatpush1.msra.mxu0 0.0
    %2808 = vmatprep.subr.mxu0 0.0
    %2809 = vmatpush1.msra.mxu0 0.0
    %2810 = vmatprep.subr.mxu0 0.0
    %2811 = vmatpush1.msra.mxu0 0.0
    %2812 = vmatprep.subr.mxu0 0.0
    %2813 = vmatpush1.msra.mxu0 0.0
    %2814 = vmatprep.subr.mxu0 0.0
    %2815 = vmatpush1.msra.mxu0 0.0
    %2816 = vmatprep.subr.mxu0 0.0
    %2817 = vmatpush1.msra.mxu0 0.0
    %2818 = vmatprep.subr.mxu0 0.0
    %2819 = vmatpush1.msra.mxu0 0.0
    %2820 = vmatprep.subr.mxu0 0.0
    %2821 = vmatpush1.msra.mxu0 0.0
    %2822 = vmatprep.subr.mxu0 0.0
    %2823 = vmatpush1.msra.mxu0 0.0
    %2824 = vmatprep.subr.mxu0 0.0
    %2825 = vmatpush1.msra.mxu0 0.0
    %2826 = vmatprep.subr.mxu0 0.0
    %2827 = vmatpush1.msra.mxu0 0.0
    %2828 = vmatprep.mubr.f32.mxu0 0.0
    %2829 = vmatmul.mubr.f32.gmra.mrb[0].mxu0 %v2759
    %v2830 = vpop.f32.mrb[0].mxu0
    %v2831 = vadd.f32 %v2753, %v2830
    %v2832 = vpop.f32.mrb[0].mxu0
    %2833 = vmatprep.mubr.f32.mxu0 0.0
    %2834 = vmatmul.mubr.f32.gmra.mrb[0].mxu0 %v2762
    %v2835 = vpop.f32.mrb[0].mxu0
    %v2836 = vadd.f32 %v2755, %v2835
    %v2837 = vpop.f32.mrb[0].mxu0
    %2838 = vdwg.mxu0
    %v2840 = vsel %vm329, %v2831, 0
    %v2843 = vsel %vm329, %v2836, 0
    %2845 = vmatprep.subr.mxu0 0.0
    %2846 = vmatpush1.msra.mxu0 %v316
    %2847 = vmatprep.subr.mxu0 0.0
    %2848 = vmatpush1.msra.mxu0 0.0
    %2849 = vmatprep.subr.mxu0 0.0
    %2850 = vmatpush1.msra.mxu0 0.0
    %2851 = vmatprep.subr.mxu0 0.0
    %2852 = vmatpush1.msra.mxu0 0.0
    %2853 = vmatprep.subr.mxu0 0.0
    %2854 = vmatpush1.msra.mxu0 0.0
    %2855 = vmatprep.subr.mxu0 0.0
    %2856 = vmatpush1.msra.mxu0 0.0
    %2857 = vmatprep.subr.mxu0 0.0
    %2858 = vmatpush1.msra.mxu0 0.0
    %2859 = vmatprep.subr.mxu0 0.0
    %2860 = vmatpush1.msra.mxu0 0.0
    %2861 = vmatprep.subr.mxu0 0.0
    %2862 = vmatpush1.msra.mxu0 0.0
    %2863 = vmatprep.subr.mxu0 0.0
    %2864 = vmatpush1.msra.mxu0 0.0
    %2865 = vmatprep.subr.mxu0 0.0
    %2866 = vmatpush1.msra.mxu0 0.0
    %2867 = vmatprep.subr.mxu0 0.0
    %2868 = vmatpush1.msra.mxu0 0.0
    %2869 = vmatprep.subr.mxu0 0.0
    %2870 = vmatpush1.msra.mxu0 0.0
    %2871 = vmatprep.subr.mxu0 0.0
    %2872 = vmatpush1.msra.mxu0 0.0
    %2873 = vmatprep.subr.mxu0 0.0
    %2874 = vmatpush1.msra.mxu0 0.0
    %2875 = vmatprep.subr.mxu0 0.0
    %2876 = vmatpush1.msra.mxu0 0.0
    %2877 = vmatprep.subr.mxu0 0.0
    %2878 = vmatpush1.msra.mxu0 0.0
    %2879 = vmatprep.subr.mxu0 0.0
    %2880 = vmatpush1.msra.mxu0 0.0
    %2881 = vmatprep.subr.mxu0 0.0
    %2882 = vmatpush1.msra.mxu0 0.0
    %2883 = vmatprep.subr.mxu0 0.0
    %2884 = vmatpush1.msra.mxu0 0.0
    %2885 = vmatprep.subr.mxu0 0.0
    %2886 = vmatpush1.msra.mxu0 0.0
    %2887 = vmatprep.subr.mxu0 0.0
    %2888 = vmatpush1.msra.mxu0 0.0
    %2889 = vmatprep.subr.mxu0 0.0
    %2890 = vmatpush1.msra.mxu0 0.0
    %2891 = vmatprep.subr.mxu0 0.0
    %2892 = vmatpush1.msra.mxu0 0.0
    %2893 = vmatprep.subr.mxu0 0.0
    %2894 = vmatpush1.msra.mxu0 0.0
    %2895 = vmatprep.subr.mxu0 0.0
    %2896 = vmatpush1.msra.mxu0 0.0
    %2897 = vmatprep.subr.mxu0 0.0
    %2898 = vmatpush1.msra.mxu0 0.0
    %2899 = vmatprep.subr.mxu0 0.0
    %2900 = vmatpush1.msra.mxu0 0.0
    %2901 = vmatprep.subr.mxu0 0.0
    %2902 = vmatpush1.msra.mxu0 0.0
    %2903 = vmatprep.subr.mxu0 0.0
    %2904 = vmatpush1.msra.mxu0 0.0
    %2905 = vmatprep.subr.mxu0 0.0
    %2906 = vmatpush1.msra.mxu0 0.0
    %2907 = vmatprep.subr.mxu0 0.0
    %2908 = vmatpush1.msra.mxu0 0.0
    %2909 = vmatprep.mubr.f32.mxu0 0.0
    %2910 = vmatmul.mubr.f32.gmra.mrb[0].mxu0 %v2840
    %v2911 = vpop.f32.mrb[0].mxu0
    %v2912 = vadd.f32 0.0, %v2911
    %v2913 = vpop.f32.mrb[0].mxu0
    %2914 = vmatprep.mubr.f32.mxu0 0.0
    %2915 = vmatmul.mubr.f32.gmra.mrb[0].mxu0 %v2843
    %v2916 = vpop.f32.mrb[0].mxu0
    %v2917 = vadd.f32 0.0, %v2916
    %v2918 = vpop.f32.mrb[0].mxu0
    %2919 = vdwg.mxu0
    %v2921 = vsel %vm329, %v2464, 0
    %v2924 = vsel %vm329, %v2469, 0
    %2926 = vmatprep.subr.mxu0 0.0
    %2927 = vmatpush1.msra.mxu0 %v315
    %2928 = vmatprep.subr.mxu0 0.0
    %2929 = vmatpush1.msra.mxu0 0.0
    %2930 = vmatprep.subr.mxu0 0.0
    %2931 = vmatpush1.msra.mxu0 0.0
    %2932 = vmatprep.subr.mxu0 0.0
    %2933 = vmatpush1.msra.mxu0 0.0
    %2934 = vmatprep.subr.mxu0 0.0
    %2935 = vmatpush1.msra.mxu0 0.0
    %2936 = vmatprep.subr.mxu0 0.0
    %2937 = vmatpush1.msra.mxu0 0.0
    %2938 = vmatprep.subr.mxu0 0.0
    %2939 = vmatpush1.msra.mxu0 0.0
    %2940 = vmatprep.subr.mxu0 0.0
    %2941 = vmatpush1.msra.mxu0 0.0
    %2942 = vmatprep.subr.mxu0 0.0
    %2943 = vmatpush1.msra.mxu0 0.0
    %2944 = vmatprep.subr.mxu0 0.0
    %2945 = vmatpush1.msra.mxu0 0.0
    %2946 = vmatprep.subr.mxu0 0.0
    %2947 = vmatpush1.msra.mxu0 0.0
    %2948 = vmatprep.subr.mxu0 0.0
    %2949 = vmatpush1.msra.mxu0 0.0
    %2950 = vmatprep.subr.mxu0 0.0
    %2951 = vmatpush1.msra.mxu0 0.0
    %2952 = vmatprep.subr.mxu0 0.0
    %2953 = vmatpush1.msra.mxu0 0.0
    %2954 = vmatprep.subr.mxu0 0.0
    %2955 = vmatpush1.msra.mxu0 0.0
    %2956 = vmatprep.subr.mxu0 0.0
    %2957 = vmatpush1.msra.mxu0 0.0
    %2958 = vmatprep.subr.mxu0 0.0
    %2959 = vmatpush1.msra.mxu0 0.0
    %2960 = vmatprep.subr.mxu0 0.0
    %2961 = vmatpush1.msra.mxu0 0.0
    %2962 = vmatprep.subr.mxu0 0.0
    %2963 = vmatpush1.msra.mxu0 0.0
    %2964 = vmatprep.subr.mxu0 0.0
    %2965 = vmatpush1.msra.mxu0 0.0
    %2966 = vmatprep.subr.mxu0 0.0
    %2967 = vmatpush1.msra.mxu0 0.0
    %2968 = vmatprep.subr.mxu0 0.0
    %2969 = vmatpush1.msra.mxu0 0.0
    %2970 = vmatprep.subr.mxu0 0.0
    %2971 = vmatpush1.msra.mxu0 0.0
    %2972 = vmatprep.subr.mxu0 0.0
    %2973 = vmatpush1.msra.mxu0 0.0
    %2974 = vmatprep.subr.mxu0 0.0
    %2975 = vmatpush1.msra.mxu0 0.0
    %2976 = vmatprep.subr.mxu0 0.0
    %2977 = vmatpush1.msra.mxu0 0.0
    %2978 = vmatprep.subr.mxu0 0.0
    %2979 = vmatpush1.msra.mxu0 0.0
    %2980 = vmatprep.subr.mxu0 0.0
    %2981 = vmatpush1.msra.mxu0 0.0
    %2982 = vmatprep.subr.mxu0 0.0
    %2983 = vmatpush1.msra.mxu0 0.0
    %2984 = vmatprep.subr.mxu0 0.0
    %2985 = vmatpush1.msra.mxu0 0.0
    %2986 = vmatprep.subr.mxu0 0.0
    %2987 = vmatpush1.msra.mxu0 0.0
    %2988 = vmatprep.subr.mxu0 0.0
    %2989 = vmatpush1.msra.mxu0 0.0
    %2990 = vmatprep.mubr.f32.mxu0 0.0
    %2991 = vmatmul.mubr.f32.gmra.mrb[0].mxu0 %v2921
    %v2992 = vpop.f32.mrb[0].mxu0
    %v2993 = vadd.f32 %v2912, %v2992
    %v2994 = vpop.f32.mrb[0].mxu0
    %2995 = vmatprep.mubr.f32.mxu0 0.0
    %2996 = vmatmul.mubr.f32.gmra.mrb[0].mxu0 %v2924
    %v2997 = vpop.f32.mrb[0].mxu0
    %v2998 = vadd.f32 %v2917, %v2997
    %v2999 = vpop.f32.mrb[0].mxu0
    %3000 = vdwg.mxu0
    %3001 = vrot.lane.b32.xlu0 %v214, 112
    %v3002 = vpop.permute.xlu0 %3001
    %3003 = vrot.lane.b32.xlu0 %v219, 112
    %v3004 = vpop.permute.xlu0 %3003
    %v3005 = vsel %vm329, %v3002, 0
    %v3007 = vsel %vm329, %v3004, 0
    %3009 = vmatprep.subr.mxu0 0.0
    %3010 = vmatpush1.xpose.msra.mxu0 %v3005
    %3011 = vmatprep.subr.mxu0 0.0
    %3012 = vmatpush1.xpose.msra.mxu0 %v3007
    %3013 = vmatprep.subr.mxu0 0.0
    %3014 = vmatpush1.xpose.msra.mxu0 0.0
    %3015 = vmatprep.subr.mxu0 0.0
    %3016 = vmatpush1.xpose.msra.mxu0 0.0
    %3017 = vmatprep.subr.mxu0 0.0
    %3018 = vmatpush1.xpose.msra.mxu0 0.0
    %3019 = vmatprep.subr.mxu0 0.0
    %3020 = vmatpush1.xpose.msra.mxu0 0.0
    %3021 = vmatprep.subr.mxu0 0.0
    %3022 = vmatpush1.xpose.msra.mxu0 0.0
    %3023 = vmatprep.subr.mxu0 0.0
    %3024 = vmatpush1.xpose.msra.mxu0 0.0
    %3025 = vmatprep.subr.mxu0 0.0
    %3026 = vmatpush1.xpose.msra.mxu0 0.0
    %3027 = vmatprep.subr.mxu0 0.0
    %3028 = vmatpush1.xpose.msra.mxu0 0.0
    %3029 = vmatprep.subr.mxu0 0.0
    %3030 = vmatpush1.xpose.msra.mxu0 0.0
    %3031 = vmatprep.subr.mxu0 0.0
    %3032 = vmatpush1.xpose.msra.mxu0 0.0
    %3033 = vmatprep.subr.mxu0 0.0
    %3034 = vmatpush1.xpose.msra.mxu0 0.0
    %3035 = vmatprep.subr.mxu0 0.0
    %3036 = vmatpush1.xpose.msra.mxu0 0.0
    %3037 = vmatprep.subr.mxu0 0.0
    %3038 = vmatpush1.xpose.msra.mxu0 0.0
    %3039 = vmatprep.subr.mxu0 0.0
    %3040 = vmatpush1.xpose.msra.mxu0 0.0
    %3041 = vmatprep.subr.mxu0 0.0
    %3042 = vmatpush1.xpose.msra.mxu0 0.0
    %3043 = vmatprep.subr.mxu0 0.0
    %3044 = vmatpush1.xpose.msra.mxu0 0.0
    %3045 = vmatprep.subr.mxu0 0.0
    %3046 = vmatpush1.xpose.msra.mxu0 0.0
    %3047 = vmatprep.subr.mxu0 0.0
    %3048 = vmatpush1.xpose.msra.mxu0 0.0
    %3049 = vmatprep.subr.mxu0 0.0
    %3050 = vmatpush1.xpose.msra.mxu0 0.0
    %3051 = vmatprep.subr.mxu0 0.0
    %3052 = vmatpush1.xpose.msra.mxu0 0.0
    %3053 = vmatprep.subr.mxu0 0.0
    %3054 = vmatpush1.xpose.msra.mxu0 0.0
    %3055 = vmatprep.subr.mxu0 0.0
    %3056 = vmatpush1.xpose.msra.mxu0 0.0
    %3057 = vmatprep.subr.mxu0 0.0
    %3058 = vmatpush1.xpose.msra.mxu0 0.0
    %3059 = vmatprep.subr.mxu0 0.0
    %3060 = vmatpush1.xpose.msra.mxu0 0.0
    %3061 = vmatprep.subr.mxu0 0.0
    %3062 = vmatpush1.xpose.msra.mxu0 0.0
    %3063 = vmatprep.subr.mxu0 0.0
    %3064 = vmatpush1.xpose.msra.mxu0 0.0
    %3065 = vmatprep.subr.mxu0 0.0
    %3066 = vmatpush1.xpose.msra.mxu0 0.0
    %3067 = vmatprep.subr.mxu0 0.0
    %3068 = vmatpush1.xpose.msra.mxu0 0.0
    %3069 = vmatprep.subr.mxu0 0.0
    %3070 = vmatpush1.xpose.msra.mxu0 0.0
    %3071 = vmatprep.subr.mxu0 0.0
    %3072 = vmatpush1.xpose.msra.mxu0 0.0
    %3073 = vmatprep.mubr.f32.mxu0 0.0
    %3074 = vmatmul.mubr.f32.gmra.mrb[0].mxu0 %v1220
    %v3075 = vpop.f32.mrb[0].mxu0
    %v3076 = vadd.f32 0.0, %v3075
    %v3077 = vpop.f32.mrb[0].mxu0
    %3078 = vdwg.mxu0
    %v3079 = vmul.f32 %v3076, 0.35355338
    %v3080 = vsel %vm410, %v3079, -inf
    %3081 = vmax.xlane.f32.xlu0 %v3080
    %v3082 = vpop.xlane.xlu0 %3081
    %v3083 = vsub.f32 %v3079, %v3082
    %v3084 = vmul.f32 %v3083, 1.442695
    %v3085 = vpow.pop %v3084
    %v3086 = vsel %vm410, %v3085, 0.0
    %3087 = vadd.xlane.f32.xlu0 %v3086
    %v3088 = vpop.xlane.xlu0 %3087
    %v3089 = vrcp.pop %v3088
    %v3090 = vmul.f32 %v3085, %v3089
    %3091 = vrot.lane.b32.xlu0 %v303, 112
    %v3092 = vpop.permute.xlu0 %3091
    %3093 = vrot.lane.b32.xlu0 %v308, 112
    %v3094 = vpop.permute.xlu0 %3093
    %v3098 = vsel %vm410, %v3090, 0
    %3100 = vmatprep.subr.mxu0 0.0
    %3101 = vmatpush1.msra.mxu0 %v3092
    %3102 = vmatprep.subr.mxu0 0.0
    %3103 = vmatpush1.msra.mxu0 %v3094
    %3104 = vmatprep.subr.mxu0 0.0
    %3105 = vmatpush1.msra.mxu0 0.0
    %3106 = vmatprep.subr.mxu0 0.0
    %3107 = vmatpush1.msra.mxu0 0.0
    %3108 = vmatprep.subr.mxu0 0.0
    %3109 = vmatpush1.msra.mxu0 0.0
    %3110 = vmatprep.subr.mxu0 0.0
    %3111 = vmatpush1.msra.mxu0 0.0
    %3112 = vmatprep.subr.mxu0 0.0
    %3113 = vmatpush1.msra.mxu0 0.0
    %3114 = vmatprep.subr.mxu0 0.0
    %3115 = vmatpush1.msra.mxu0 0.0
    %3116 = vmatprep.subr.mxu0 0.0
    %3117 = vmatpush1.msra.mxu0 0.0
    %3118 = vmatprep.subr.mxu0 0.0
    %3119 = vmatpush1.msra.mxu0 0.0
    %3120 = vmatprep.subr.mxu0 0.0
    %3121 = vmatpush1.msra.mxu0 0.0
    %3122 = vmatprep.subr.mxu0 0.0
    %3123 = vmatpush1.msra.mxu0 0.0
    %3124 = vmatprep.subr.mxu0 0.0
    %3125 = vmatpush1.msra.mxu0 0.0
    %3126 = vmatprep.subr.mxu0 0.0
    %3127 = vmatpush1.msra.mxu0 0.0
    %3128 = vmatprep.subr.mxu0 0.0
    %3129 = vmatpush1.msra.mxu0 0.0
    %3130 = vmatprep.subr.mxu0 0.0
    %3131 = vmatpush1.msra.mxu0 0.0
    %3132 = vmatprep.subr.mxu0 0.0
    %3133 = vmatpush1.msra.mxu0 0.0
    %3134 = vmatprep.subr.mxu0 0.0
    %3135 = vmatpush1.msra.mxu0 0.0
    %3136 = vmatprep.subr.mxu0 0.0
    %3137 = vmatpush1.msra.mxu0 0.0
    %3138 = vmatprep.subr.mxu0 0.0
    %3139 = vmatpush1.msra.mxu0 0.0
    %3140 = vmatprep.subr.mxu0 0.0
    %3141 = vmatpush1.msra.mxu0 0.0
    %3142 = vmatprep.subr.mxu0 0.0
    %3143 = vmatpush1.msra.mxu0 0.0
    %3144 = vmatprep.subr.mxu0 0.0
    %3145 = vmatpush1.msra.mxu0 0.0
    %3146 = vmatprep.subr.mxu0 0.0
    %3147 = vmatpush1.msra.mxu0 0.0
    %3148 = vmatprep.subr.mxu0 0.0
    %3149 = vmatpush1.msra.mxu0 0.0
    %3150 = vmatprep.subr.mxu0 0.0
    %3151 = vmatpush1.msra.mxu0 0.0
    %3152 = vmatprep.subr.mxu0 0.0
    %3153 = vmatpush1.msra.mxu0 0.0
    %3154 = vmatprep.subr.mxu0 0.0
    %3155 = vmatpush1.msra.mxu0 0.0
    %3156 = vmatprep.subr.mxu0 0.0
    %3157 = vmatpush1.msra.mxu0 0.0
    %3158 = vmatprep.subr.mxu0 0.0
    %3159 = vmatpush1.msra.mxu0 0.0
    %3160 = vmatprep.subr.mxu0 0.0
    %3161 = vmatpush1.msra.mxu0 0.0
    %3162 = vmatprep.subr.mxu0 0.0
    %3163 = vmatpush1.msra.mxu0 0.0
    %3164 = vmatprep.mubr.f32.mxu0 0.0
    %3165 = vmatmul.mubr.f32.gmra.mrb[0].mxu0 %v3098
    %v3166 = vpop.f32.mrb[0].mxu0
    %v3167 = vadd.f32 0.0, %v3166
    %v3168 = vpop.f32.mrb[0].mxu0
    %3169 = vdwg.mxu0
    %3170 = vrot.lane.b32.xlu0 %v125, 112
    %v3171 = vpop.permute.xlu0 %3170
    %3172 = vrot.lane.b32.xlu0 %v130, 112
    %v3173 = vpop.permute.xlu0 %3172
    %v3174 = vsel %vm329, %v3171, 0
    %v3176 = vsel %vm329, %v3173, 0
    %3178 = vmatprep.subr.mxu0 0.0
    %3179 = vmatpush1.xpose.msra.mxu0 %v1220
    %3180 = vmatprep.subr.mxu0 0.0
    %3181 = vmatpush1.xpose.msra.mxu0 0.0
    %3182 = vmatprep.subr.mxu0 0.0
    %3183 = vmatpush1.xpose.msra.mxu0 0.0
    %3184 = vmatprep.subr.mxu0 0.0
    %3185 = vmatpush1.xpose.msra.mxu0 0.0
    %3186 = vmatprep.subr.mxu0 0.0
    %3187 = vmatpush1.xpose.msra.mxu0 0.0
    %3188 = vmatprep.subr.mxu0 0.0
    %3189 = vmatpush1.xpose.msra.mxu0 0.0
    %3190 = vmatprep.subr.mxu0 0.0
    %3191 = vmatpush1.xpose.msra.mxu0 0.0
    %3192 = vmatprep.subr.mxu0 0.0
    %3193 = vmatpush1.xpose.msra.mxu0 0.0
    %3194 = vmatprep.subr.mxu0 0.0
    %3195 = vmatpush1.xpose.msra.mxu0 0.0
    %3196 = vmatprep.subr.mxu0 0.0
    %3197 = vmatpush1.xpose.msra.mxu0 0.0
    %3198 = vmatprep.subr.mxu0 0.0
    %3199 = vmatpush1.xpose.msra.mxu0 0.0
    %3200 = vmatprep.subr.mxu0 0.0
    %3201 = vmatpush1.xpose.msra.mxu0 0.0
    %3202 = vmatprep.subr.mxu0 0.0
    %3203 = vmatpush1.xpose.msra.mxu0 0.0
    %3204 = vmatprep.subr.mxu0 0.0
    %3205 = vmatpush1.xpose.msra.mxu0 0.0
    %3206 = vmatprep.subr.mxu0 0.0
    %3207 = vmatpush1.xpose.msra.mxu0 0.0
    %3208 = vmatprep.subr.mxu0 0.0
    %3209 = vmatpush1.xpose.msra.mxu0 0.0
    %3210 = vmatprep.subr.mxu0 0.0
    %3211 = vmatpush1.xpose.msra.mxu0 0.0
    %3212 = vmatprep.subr.mxu0 0.0
    %3213 = vmatpush1.xpose.msra.mxu0 0.0
    %3214 = vmatprep.subr.mxu0 0.0
    %3215 = vmatpush1.xpose.msra.mxu0 0.0
    %3216 = vmatprep.subr.mxu0 0.0
    %3217 = vmatpush1.xpose.msra.mxu0 0.0
    %3218 = vmatprep.subr.mxu0 0.0
    %3219 = vmatpush1.xpose.msra.mxu0 0.0
    %3220 = vmatprep.subr.mxu0 0.0
    %3221 = vmatpush1.xpose.msra.mxu0 0.0
    %3222 = vmatprep.subr.mxu0 0.0
    %3223 = vmatpush1.xpose.msra.mxu0 0.0
    %3224 = vmatprep.subr.mxu0 0.0
    %3225 = vmatpush1.xpose.msra.mxu0 0.0
    %3226 = vmatprep.subr.mxu0 0.0
    %3227 = vmatpush1.xpose.msra.mxu0 0.0
    %3228 = vmatprep.subr.mxu0 0.0
    %3229 = vmatpush1.xpose.msra.mxu0 0.0
    %3230 = vmatprep.subr.mxu0 0.0
    %3231 = vmatpush1.xpose.msra.mxu0 0.0
    %3232 = vmatprep.subr.mxu0 0.0
    %3233 = vmatpush1.xpose.msra.mxu0 0.0
    %3234 = vmatprep.subr.mxu0 0.0
    %3235 = vmatpush1.xpose.msra.mxu0 0.0
    %3236 = vmatprep.subr.mxu0 0.0
    %3237 = vmatpush1.xpose.msra.mxu0 0.0
    %3238 = vmatprep.subr.mxu0 0.0
    %3239 = vmatpush1.xpose.msra.mxu0 0.0
    %3240 = vmatprep.subr.mxu0 0.0
    %3241 = vmatpush1.xpose.msra.mxu0 0.0
    %3242 = vmatprep.mubr.f32.mxu0 0.0
    %3243 = vmatmul.mubr.f32.gmra.mrb[0].mxu0 %v3174
    %v3244 = vpop.f32.mrb[0].mxu0
    %v3245 = vadd.f32 0.0, %v3244
    %v3246 = vpop.f32.mrb[0].mxu0
    %3247 = vmatprep.mubr.f32.mxu0 0.0
    %3248 = vmatmul.mubr.f32.gmra.mrb[0].mxu0 %v3176
    %v3249 = vpop.f32.mrb[0].mxu0
    %v3250 = vadd.f32 0.0, %v3249
    %v3251 = vpop.f32.mrb[0].mxu0
    %3252 = vdwg.mxu0
    %v3253 = vmul.f32 %v3245, 0.35355338
    %v3254 = vmul.f32 %v3250, 0.35355338
    %v3255 = vsel %vm329, %v3253, -inf
    %3256 = vmax.xlane.f32.xlu0 %v3255
    %v3257 = vpop.xlane.xlu0 %3256
    %v3258 = vsel %vm329, %v3254, -inf
    %3259 = vmax.xlane.f32.xlu0 %v3258
    %v3260 = vpop.xlane.xlu0 %3259
    %v3261 = vsub.f32 %v3253, %v3257
    %v3262 = vsub.f32 %v3254, %v3260
    %v3263 = vmul.f32 %v3261, 1.442695
    %v3264 = vpow.pop %v3263
    %v3265 = vmul.f32 %v3262, 1.442695
    %v3266 = vpow.pop %v3265
    %v3267 = vsel %vm329, %v3264, 0.0
    %3268 = vadd.xlane.f32.xlu0 %v3267
    %v3269 = vpop.xlane.xlu0 %3268
    %v3270 = vsel %vm329, %v3266, 0.0
    %3271 = vadd.xlane.f32.xlu0 %v3270
    %v3272 = vpop.xlane.xlu0 %3271
    %v3273 = vrcp.pop %v3269
    %v3274 = vrcp.pop %v3272
    %v3275 = vmul.f32 %v3264, %v3273
    %v3276 = vmul.f32 %v3266, %v3274
    %3277 = vrot.lane.b32.xlu0 %v2389, 112
    %v3278 = vpop.permute.xlu0 %3277
    %3279 = vrot.lane.b32.xlu0 %v2390, 112
    %v3280 = vpop.permute.xlu0 %3279
    %v3284 = vsel %vm329, %v3275, 0
    %v3287 = vsel %vm329, %v3276, 0
    %3289 = vmatprep.subr.mxu0 0.0
    %3290 = vmatpush1.msra.mxu0 %v3167
    %3291 = vmatprep.subr.mxu0 0.0
    %3292 = vmatpush1.msra.mxu0 0.0
    %3293 = vmatprep.subr.mxu0 0.0
    %3294 = vmatpush1.msra.mxu0 0.0
    %3295 = vmatprep.subr.mxu0 0.0
    %3296 = vmatpush1.msra.mxu0 0.0
    %3297 = vmatprep.subr.mxu0 0.0
    %3298 = vmatpush1.msra.mxu0 0.0
    %3299 = vmatprep.subr.mxu0 0.0
    %3300 = vmatpush1.msra.mxu0 0.0
    %3301 = vmatprep.subr.mxu0 0.0
    %3302 = vmatpush1.msra.mxu0 0.0
    %3303 = vmatprep.subr.mxu0 0.0
    %3304 = vmatpush1.msra.mxu0 0.0
    %3305 = vmatprep.subr.mxu0 0.0
    %3306 = vmatpush1.msra.mxu0 0.0
    %3307 = vmatprep.subr.mxu0 0.0
    %3308 = vmatpush1.msra.mxu0 0.0
    %3309 = vmatprep.subr.mxu0 0.0
    %3310 = vmatpush1.msra.mxu0 0.0
    %3311 = vmatprep.subr.mxu0 0.0
    %3312 = vmatpush1.msra.mxu0 0.0
    %3313 = vmatprep.subr.mxu0 0.0
    %3314 = vmatpush1.msra.mxu0 0.0
    %3315 = vmatprep.subr.mxu0 0.0
    %3316 = vmatpush1.msra.mxu0 0.0
    %3317 = vmatprep.subr.mxu0 0.0
    %3318 = vmatpush1.msra.mxu0 0.0
    %3319 = vmatprep.subr.mxu0 0.0
    %3320 = vmatpush1.msra.mxu0 0.0
    %3321 = vmatprep.subr.mxu0 0.0
    %3322 = vmatpush1.msra.mxu0 0.0
    %3323 = vmatprep.subr.mxu0 0.0
    %3324 = vmatpush1.msra.mxu0 0.0
    %3325 = vmatprep.subr.mxu0 0.0
    %3326 = vmatpush1.msra.mxu0 0.0
    %3327 = vmatprep.subr.mxu0 0.0
    %3328 = vmatpush1.msra.mxu0 0.0
    %3329 = vmatprep.subr.mxu0 0.0
    %3330 = vmatpush1.msra.mxu0 0.0
    %3331 = vmatprep.subr.mxu0 0.0
    %3332 = vmatpush1.msra.mxu0 0.0
    %3333 = vmatprep.subr.mxu0 0.0
    %3334 = vmatpush1.msra.mxu0 0.0
    %3335 = vmatprep.subr.mxu0 0.0
    %3336 = vmatpush1.msra.mxu0 0.0
    %3337 = vmatprep.subr.mxu0 0.0
    %3338 = vmatpush1.msra.mxu0 0.0
    %3339 = vmatprep.subr.mxu0 0.0
    %3340 = vmatpush1.msra.mxu0 0.0
    %3341 = vmatprep.subr.mxu0 0.0
    %3342 = vmatpush1.msra.mxu0 0.0
    %3343 = vmatprep.subr.mxu0 0.0
    %3344 = vmatpush1.msra.mxu0 0.0
    %3345 = vmatprep.subr.mxu0 0.0
    %3346 = vmatpush1.msra.mxu0 0.0
    %3347 = vmatprep.subr.mxu0 0.0
    %3348 = vmatpush1.msra.mxu0 0.0
    %3349 = vmatprep.subr.mxu0 0.0
    %3350 = vmatpush1.msra.mxu0 0.0
    %3351 = vmatprep.subr.mxu0 0.0
    %3352 = vmatpush1.msra.mxu0 0.0
    %3353 = vmatprep.mubr.f32.mxu0 0.0
    %3354 = vmatmul.mubr.f32.gmra.mrb[0].mxu0 %v3284
    %v3355 = vpop.f32.mrb[0].mxu0
    %v3356 = vadd.f32 %v3278, %v3355
    %v3357 = vpop.f32.mrb[0].mxu0
    %3358 = vmatprep.mubr.f32.mxu0 0.0
    %3359 = vmatmul.mubr.f32.gmra.mrb[0].mxu0 %v3287
    %v3360 = vpop.f32.mrb[0].mxu0
    %v3361 = vadd.f32 %v3280, %v3360
    %v3362 = vpop.f32.mrb[0].mxu0
    %3363 = vdwg.mxu0
    %v3365 = vsel %vm329, %v3356, 0
    %v3368 = vsel %vm329, %v3361, 0
    %3370 = vmatprep.subr.mxu0 0.0
    %3371 = vmatpush1.msra.mxu0 %v317
    %3372 = vmatprep.subr.mxu0 0.0
    %3373 = vmatpush1.msra.mxu0 0.0
    %3374 = vmatprep.subr.mxu0 0.0
    %3375 = vmatpush1.msra.mxu0 0.0
    %3376 = vmatprep.subr.mxu0 0.0
    %3377 = vmatpush1.msra.mxu0 0.0
    %3378 = vmatprep.subr.mxu0 0.0
    %3379 = vmatpush1.msra.mxu0 0.0
    %3380 = vmatprep.subr.mxu0 0.0
    %3381 = vmatpush1.msra.mxu0 0.0
    %3382 = vmatprep.subr.mxu0 0.0
    %3383 = vmatpush1.msra.mxu0 0.0
    %3384 = vmatprep.subr.mxu0 0.0
    %3385 = vmatpush1.msra.mxu0 0.0
    %3386 = vmatprep.subr.mxu0 0.0
    %3387 = vmatpush1.msra.mxu0 0.0
    %3388 = vmatprep.subr.mxu0 0.0
    %3389 = vmatpush1.msra.mxu0 0.0
    %3390 = vmatprep.subr.mxu0 0.0
    %3391 = vmatpush1.msra.mxu0 0.0
    %3392 = vmatprep.subr.mxu0 0.0
    %3393 = vmatpush1.msra.mxu0 0.0
    %3394 = vmatprep.subr.mxu0 0.0
    %3395 = vmatpush1.msra.mxu0 0.0
    %3396 = vmatprep.subr.mxu0 0.0
    %3397 = vmatpush1.msra.mxu0 0.0
    %3398 = vmatprep.subr.mxu0 0.0
    %3399 = vmatpush1.msra.mxu0 0.0
    %3400 = vmatprep.subr.mxu0 0.0
    %3401 = vmatpush1.msra.mxu0 0.0
    %3402 = vmatprep.subr.mxu0 0.0
    %3403 = vmatpush1.msra.mxu0 0.0
    %3404 = vmatprep.subr.mxu0 0.0
    %3405 = vmatpush1.msra.mxu0 0.0
    %3406 = vmatprep.subr.mxu0 0.0
    %3407 = vmatpush1.msra.mxu0 0.0
    %3408 = vmatprep.subr.mxu0 0.0
    %3409 = vmatpush1.msra.mxu0 0.0
    %3410 = vmatprep.subr.mxu0 0.0
    %3411 = vmatpush1.msra.mxu0 0.0
    %3412 = vmatprep.subr.mxu0 0.0
    %3413 = vmatpush1.msra.mxu0 0.0
    %3414 = vmatprep.subr.mxu0 0.0
    %3415 = vmatpush1.msra.mxu0 0.0
    %3416 = vmatprep.subr.mxu0 0.0
    %3417 = vmatpush1.msra.mxu0 0.0
    %3418 = vmatprep.subr.mxu0 0.0
    %3419 = vmatpush1.msra.mxu0 0.0
    %3420 = vmatprep.subr.mxu0 0.0
    %3421 = vmatpush1.msra.mxu0 0.0
    %3422 = vmatprep.subr.mxu0 0.0
    %3423 = vmatpush1.msra.mxu0 0.0
    %3424 = vmatprep.subr.mxu0 0.0
    %3425 = vmatpush1.msra.mxu0 0.0
    %3426 = vmatprep.subr.mxu0 0.0
    %3427 = vmatpush1.msra.mxu0 0.0
    %3428 = vmatprep.subr.mxu0 0.0
    %3429 = vmatpush1.msra.mxu0 0.0
    %3430 = vmatprep.subr.mxu0 0.0
    %3431 = vmatpush1.msra.mxu0 0.0
    %3432 = vmatprep.subr.mxu0 0.0
    %3433 = vmatpush1.msra.mxu0 0.0
    %3434 = vmatprep.mubr.f32.mxu0 0.0
    %3435 = vmatmul.mubr.f32.gmra.mrb[0].mxu0 %v3365
    %v3436 = vpop.f32.mrb[0].mxu0
    %v3437 = vadd.f32 0.0, %v3436
    %v3438 = vpop.f32.mrb[0].mxu0
    %3439 = vmatprep.mubr.f32.mxu0 0.0
    %3440 = vmatmul.mubr.f32.gmra.mrb[0].mxu0 %v3368
    %v3441 = vpop.f32.mrb[0].mxu0
    %v3442 = vadd.f32 0.0, %v3441
    %v3443 = vpop.f32.mrb[0].mxu0
    %3444 = vdwg.mxu0
    %v3445 = vadd.f32 %v2993, %v3437
    %v3446 = vadd.f32 %v2998, %v3442
    %3447 = vrot.lane.b32.xlu0 %v214, 104
    %v3448 = vpop.permute.xlu0 %3447
    %3449 = vrot.lane.b32.xlu0 %v219, 104
    %v3450 = vpop.permute.xlu0 %3449
    %v3451 = vsel %vm329, %v3448, 0
    %v3453 = vsel %vm329, %v3450, 0
    %3455 = vmatprep.subr.mxu0 0.0
    %3456 = vmatpush1.xpose.msra.mxu0 %v3451
    %3457 = vmatprep.subr.mxu0 0.0
    %3458 = vmatpush1.xpose.msra.mxu0 %v3453
    %3459 = vmatprep.subr.mxu0 0.0
    %3460 = vmatpush1.xpose.msra.mxu0 0.0
    %3461 = vmatprep.subr.mxu0 0.0
    %3462 = vmatpush1.xpose.msra.mxu0 0.0
    %3463 = vmatprep.subr.mxu0 0.0
    %3464 = vmatpush1.xpose.msra.mxu0 0.0
    %3465 = vmatprep.subr.mxu0 0.0
    %3466 = vmatpush1.xpose.msra.mxu0 0.0
    %3467 = vmatprep.subr.mxu0 0.0
    %3468 = vmatpush1.xpose.msra.mxu0 0.0
    %3469 = vmatprep.subr.mxu0 0.0
    %3470 = vmatpush1.xpose.msra.mxu0 0.0
    %3471 = vmatprep.subr.mxu0 0.0
    %3472 = vmatpush1.xpose.msra.mxu0 0.0
    %3473 = vmatprep.subr.mxu0 0.0
    %3474 = vmatpush1.xpose.msra.mxu0 0.0
    %3475 = vmatprep.subr.mxu0 0.0
    %3476 = vmatpush1.xpose.msra.mxu0 0.0
    %3477 = vmatprep.subr.mxu0 0.0
    %3478 = vmatpush1.xpose.msra.mxu0 0.0
    %3479 = vmatprep.subr.mxu0 0.0
    %3480 = vmatpush1.xpose.msra.mxu0 0.0
    %3481 = vmatprep.subr.mxu0 0.0
    %3482 = vmatpush1.xpose.msra.mxu0 0.0
    %3483 = vmatprep.subr.mxu0 0.0
    %3484 = vmatpush1.xpose.msra.mxu0 0.0
    %3485 = vmatprep.subr.mxu0 0.0
    %3486 = vmatpush1.xpose.msra.mxu0 0.0
    %3487 = vmatprep.subr.mxu0 0.0
    %3488 = vmatpush1.xpose.msra.mxu0 0.0
    %3489 = vmatprep.subr.mxu0 0.0
    %3490 = vmatpush1.xpose.msra.mxu0 0.0
    %3491 = vmatprep.subr.mxu0 0.0
    %3492 = vmatpush1.xpose.msra.mxu0 0.0
    %3493 = vmatprep.subr.mxu0 0.0
    %3494 = vmatpush1.xpose.msra.mxu0 0.0
    %3495 = vmatprep.subr.mxu0 0.0
    %3496 = vmatpush1.xpose.msra.mxu0 0.0
    %3497 = vmatprep.subr.mxu0 0.0
    %3498 = vmatpush1.xpose.msra.mxu0 0.0
    %3499 = vmatprep.subr.mxu0 0.0
    %3500 = vmatpush1.xpose.msra.mxu0 0.0
    %3501 = vmatprep.subr.mxu0 0.0
    %3502 = vmatpush1.xpose.msra.mxu0 0.0
    %3503 = vmatprep.subr.mxu0 0.0
    %3504 = vmatpush1.xpose.msra.mxu0 0.0
    %3505 = vmatprep.subr.mxu0 0.0
    %3506 = vmatpush1.xpose.msra.mxu0 0.0
    %3507 = vmatprep.subr.mxu0 0.0
    %3508 = vmatpush1.xpose.msra.mxu0 0.0
    %3509 = vmatprep.subr.mxu0 0.0
    %3510 = vmatpush1.xpose.msra.mxu0 0.0
    %3511 = vmatprep.subr.mxu0 0.0
    %3512 = vmatpush1.xpose.msra.mxu0 0.0
    %3513 = vmatprep.subr.mxu0 0.0
    %3514 = vmatpush1.xpose.msra.mxu0 0.0
    %3515 = vmatprep.subr.mxu0 0.0
    %3516 = vmatpush1.xpose.msra.mxu0 0.0
    %3517 = vmatprep.subr.mxu0 0.0
    %3518 = vmatpush1.xpose.msra.mxu0 0.0
    %3519 = vmatprep.mubr.f32.mxu0 0.0
    %3520 = vmatmul.mubr.f32.gmra.mrb[0].mxu0 %v1669
    %v3521 = vpop.f32.mrb[0].mxu0
    %v3522 = vadd.f32 0.0, %v3521
    %v3523 = vpop.f32.mrb[0].mxu0
    %3524 = vdwg.mxu0
    %v3525 = vmul.f32 %v3522, 0.35355338
    %v3526 = vsel %vm410, %v3525, -inf
    %3527 = vmax.xlane.f32.xlu0 %v3526
    %v3528 = vpop.xlane.xlu0 %3527
    %v3529 = vsub.f32 %v3525, %v3528
    %v3530 = vmul.f32 %v3529, 1.442695
    %v3531 = vpow.pop %v3530
    %v3532 = vsel %vm410, %v3531, 0.0
    %3533 = vadd.xlane.f32.xlu0 %v3532
    %v3534 = vpop.xlane.xlu0 %3533
    %v3535 = vrcp.pop %v3534
    %v3536 = vmul.f32 %v3531, %v3535
    %3537 = vrot.lane.b32.xlu0 %v303, 104
    %v3538 = vpop.permute.xlu0 %3537
    %3539 = vrot.lane.b32.xlu0 %v308, 104
    %v3540 = vpop.permute.xlu0 %3539
    %v3544 = vsel %vm410, %v3536, 0
    %3546 = vmatprep.subr.mxu0 0.0
    %3547 = vmatpush1.msra.mxu0 %v3538
    %3548 = vmatprep.subr.mxu0 0.0
    %3549 = vmatpush1.msra.mxu0 %v3540
    %3550 = vmatprep.subr.mxu0 0.0
    %3551 = vmatpush1.msra.mxu0 0.0
    %3552 = vmatprep.subr.mxu0 0.0
    %3553 = vmatpush1.msra.mxu0 0.0
    %3554 = vmatprep.subr.mxu0 0.0
    %3555 = vmatpush1.msra.mxu0 0.0
    %3556 = vmatprep.subr.mxu0 0.0
    %3557 = vmatpush1.msra.mxu0 0.0
    %3558 = vmatprep.subr.mxu0 0.0
    %3559 = vmatpush1.msra.mxu0 0.0
    %3560 = vmatprep.subr.mxu0 0.0
    %3561 = vmatpush1.msra.mxu0 0.0
    %3562 = vmatprep.subr.mxu0 0.0
    %3563 = vmatpush1.msra.mxu0 0.0
    %3564 = vmatprep.subr.mxu0 0.0
    %3565 = vmatpush1.msra.mxu0 0.0
    %3566 = vmatprep.subr.mxu0 0.0
    %3567 = vmatpush1.msra.mxu0 0.0
    %3568 = vmatprep.subr.mxu0 0.0
    %3569 = vmatpush1.msra.mxu0 0.0
    %3570 = vmatprep.subr.mxu0 0.0
    %3571 = vmatpush1.msra.mxu0 0.0
    %3572 = vmatprep.subr.mxu0 0.0
    %3573 = vmatpush1.msra.mxu0 0.0
    %3574 = vmatprep.subr.mxu0 0.0
    %3575 = vmatpush1.msra.mxu0 0.0
    %3576 = vmatprep.subr.mxu0 0.0
    %3577 = vmatpush1.msra.mxu0 0.0
    %3578 = vmatprep.subr.mxu0 0.0
    %3579 = vmatpush1.msra.mxu0 0.0
    %3580 = vmatprep.subr.mxu0 0.0
    %3581 = vmatpush1.msra.mxu0 0.0
    %3582 = vmatprep.subr.mxu0 0.0
    %3583 = vmatpush1.msra.mxu0 0.0
    %3584 = vmatprep.subr.mxu0 0.0
    %3585 = vmatpush1.msra.mxu0 0.0
    %3586 = vmatprep.subr.mxu0 0.0
    %3587 = vmatpush1.msra.mxu0 0.0
    %3588 = vmatprep.subr.mxu0 0.0
    %3589 = vmatpush1.msra.mxu0 0.0
    %3590 = vmatprep.subr.mxu0 0.0
    %3591 = vmatpush1.msra.mxu0 0.0
    %3592 = vmatprep.subr.mxu0 0.0
    %3593 = vmatpush1.msra.mxu0 0.0
    %3594 = vmatprep.subr.mxu0 0.0
    %3595 = vmatpush1.msra.mxu0 0.0
    %3596 = vmatprep.subr.mxu0 0.0
    %3597 = vmatpush1.msra.mxu0 0.0
    %3598 = vmatprep.subr.mxu0 0.0
    %3599 = vmatpush1.msra.mxu0 0.0
    %3600 = vmatprep.subr.mxu0 0.0
    %3601 = vmatpush1.msra.mxu0 0.0
    %3602 = vmatprep.subr.mxu0 0.0
    %3603 = vmatpush1.msra.mxu0 0.0
    %3604 = vmatprep.subr.mxu0 0.0
    %3605 = vmatpush1.msra.mxu0 0.0
    %3606 = vmatprep.subr.mxu0 0.0
    %3607 = vmatpush1.msra.mxu0 0.0
    %3608 = vmatprep.subr.mxu0 0.0
    %3609 = vmatpush1.msra.mxu0 0.0
    %3610 = vmatprep.mubr.f32.mxu0 0.0
    %3611 = vmatmul.mubr.f32.gmra.mrb[0].mxu0 %v3544
    %v3612 = vpop.f32.mrb[0].mxu0
    %v3613 = vadd.f32 0.0, %v3612
    %v3614 = vpop.f32.mrb[0].mxu0
    %3615 = vdwg.mxu0
    %3616 = vrot.lane.b32.xlu0 %v125, 104
    %v3617 = vpop.permute.xlu0 %3616
    %3618 = vrot.lane.b32.xlu0 %v130, 104
    %v3619 = vpop.permute.xlu0 %3618
    %v3620 = vsel %vm329, %v3617, 0
    %v3622 = vsel %vm329, %v3619, 0
    %3624 = vmatprep.subr.mxu0 0.0
    %3625 = vmatpush1.xpose.msra.mxu0 %v1669
    %3626 = vmatprep.subr.mxu0 0.0
    %3627 = vmatpush1.xpose.msra.mxu0 0.0
    %3628 = vmatprep.subr.mxu0 0.0
    %3629 = vmatpush1.xpose.msra.mxu0 0.0
    %3630 = vmatprep.subr.mxu0 0.0
    %3631 = vmatpush1.xpose.msra.mxu0 0.0
    %3632 = vmatprep.subr.mxu0 0.0
    %3633 = vmatpush1.xpose.msra.mxu0 0.0
    %3634 = vmatprep.subr.mxu0 0.0
    %3635 = vmatpush1.xpose.msra.mxu0 0.0
    %3636 = vmatprep.subr.mxu0 0.0
    %3637 = vmatpush1.xpose.msra.mxu0 0.0
    %3638 = vmatprep.subr.mxu0 0.0
    %3639 = vmatpush1.xpose.msra.mxu0 0.0
    %3640 = vmatprep.subr.mxu0 0.0
    %3641 = vmatpush1.xpose.msra.mxu0 0.0
    %3642 = vmatprep.subr.mxu0 0.0
    %3643 = vmatpush1.xpose.msra.mxu0 0.0
    %3644 = vmatprep.subr.mxu0 0.0
    %3645 = vmatpush1.xpose.msra.mxu0 0.0
    %3646 = vmatprep.subr.mxu0 0.0
    %3647 = vmatpush1.xpose.msra.mxu0 0.0
    %3648 = vmatprep.subr.mxu0 0.0
    %3649 = vmatpush1.xpose.msra.mxu0 0.0
    %3650 = vmatprep.subr.mxu0 0.0
    %3651 = vmatpush1.xpose.msra.mxu0 0.0
    %3652 = vmatprep.subr.mxu0 0.0
    %3653 = vmatpush1.xpose.msra.mxu0 0.0
    %3654 = vmatprep.subr.mxu0 0.0
    %3655 = vmatpush1.xpose.msra.mxu0 0.0
    %3656 = vmatprep.subr.mxu0 0.0
    %3657 = vmatpush1.xpose.msra.mxu0 0.0
    %3658 = vmatprep.subr.mxu0 0.0
    %3659 = vmatpush1.xpose.msra.mxu0 0.0
    %3660 = vmatprep.subr.mxu0 0.0
    %3661 = vmatpush1.xpose.msra.mxu0 0.0
    %3662 = vmatprep.subr.mxu0 0.0
    %3663 = vmatpush1.xpose.msra.mxu0 0.0
    %3664 = vmatprep.subr.mxu0 0.0
    %3665 = vmatpush1.xpose.msra.mxu0 0.0
    %3666 = vmatprep.subr.mxu0 0.0
    %3667 = vmatpush1.xpose.msra.mxu0 0.0
    %3668 = vmatprep.subr.mxu0 0.0
    %3669 = vmatpush1.xpose.msra.mxu0 0.0
    %3670 = vmatprep.subr.mxu0 0.0
    %3671 = vmatpush1.xpose.msra.mxu0 0.0
    %3672 = vmatprep.subr.mxu0 0.0
    %3673 = vmatpush1.xpose.msra.mxu0 0.0
    %3674 = vmatprep.subr.mxu0 0.0
    %3675 = vmatpush1.xpose.msra.mxu0 0.0
    %3676 = vmatprep.subr.mxu0 0.0
    %3677 = vmatpush1.xpose.msra.mxu0 0.0
    %3678 = vmatprep.subr.mxu0 0.0
    %3679 = vmatpush1.xpose.msra.mxu0 0.0
    %3680 = vmatprep.subr.mxu0 0.0
    %3681 = vmatpush1.xpose.msra.mxu0 0.0
    %3682 = vmatprep.subr.mxu0 0.0
    %3683 = vmatpush1.xpose.msra.mxu0 0.0
    %3684 = vmatprep.subr.mxu0 0.0
    %3685 = vmatpush1.xpose.msra.mxu0 0.0
    %3686 = vmatprep.subr.mxu0 0.0
    %3687 = vmatpush1.xpose.msra.mxu0 0.0
    %3688 = vmatprep.mubr.f32.mxu0 0.0
    %3689 = vmatmul.mubr.f32.gmra.mrb[0].mxu0 %v3620
    %v3690 = vpop.f32.mrb[0].mxu0
    %v3691 = vadd.f32 0.0, %v3690
    %v3692 = vpop.f32.mrb[0].mxu0
    %3693 = vmatprep.mubr.f32.mxu0 0.0
    %3694 = vmatmul.mubr.f32.gmra.mrb[0].mxu0 %v3622
    %v3695 = vpop.f32.mrb[0].mxu0
    %v3696 = vadd.f32 0.0, %v3695
    %v3697 = vpop.f32.mrb[0].mxu0
    %3698 = vdwg.mxu0
    %v3699 = vmul.f32 %v3691, 0.35355338
    %v3700 = vmul.f32 %v3696, 0.35355338
    %v3701 = vsel %vm329, %v3699, -inf
    %3702 = vmax.xlane.f32.xlu0 %v3701
    %v3703 = vpop.xlane.xlu0 %3702
    %v3704 = vsel %vm329, %v3700, -inf
    %3705 = vmax.xlane.f32.xlu0 %v3704
    %v3706 = vpop.xlane.xlu0 %3705
    %v3707 = vsub.f32 %v3699, %v3703
    %v3708 = vsub.f32 %v3700, %v3706
    %v3709 = vmul.f32 %v3707, 1.442695
    %v3710 = vpow.pop %v3709
    %v3711 = vmul.f32 %v3708, 1.442695
    %v3712 = vpow.pop %v3711
    %v3713 = vsel %vm329, %v3710, 0.0
    %3714 = vadd.xlane.f32.xlu0 %v3713
    %v3715 = vpop.xlane.xlu0 %3714
    %v3716 = vsel %vm329, %v3712, 0.0
    %3717 = vadd.xlane.f32.xlu0 %v3716
    %v3718 = vpop.xlane.xlu0 %3717
    %v3719 = vrcp.pop %v3715
    %v3720 = vrcp.pop %v3718
    %v3721 = vmul.f32 %v3710, %v3719
    %v3722 = vmul.f32 %v3712, %v3720
    %3723 = vrot.lane.b32.xlu0 %v2389, 104
    %v3724 = vpop.permute.xlu0 %3723
    %3725 = vrot.lane.b32.xlu0 %v2390, 104
    %v3726 = vpop.permute.xlu0 %3725
    %v3730 = vsel %vm329, %v3721, 0
    %v3733 = vsel %vm329, %v3722, 0
    %3735 = vmatprep.subr.mxu0 0.0
    %3736 = vmatpush1.msra.mxu0 %v3613
    %3737 = vmatprep.subr.mxu0 0.0
    %3738 = vmatpush1.msra.mxu0 0.0
    %3739 = vmatprep.subr.mxu0 0.0
    %3740 = vmatpush1.msra.mxu0 0.0
    %3741 = vmatprep.subr.mxu0 0.0
    %3742 = vmatpush1.msra.mxu0 0.0
    %3743 = vmatprep.subr.mxu0 0.0
    %3744 = vmatpush1.msra.mxu0 0.0
    %3745 = vmatprep.subr.mxu0 0.0
    %3746 = vmatpush1.msra.mxu0 0.0
    %3747 = vmatprep.subr.mxu0 0.0
    %3748 = vmatpush1.msra.mxu0 0.0
    %3749 = vmatprep.subr.mxu0 0.0
    %3750 = vmatpush1.msra.mxu0 0.0
    %3751 = vmatprep.subr.mxu0 0.0
    %3752 = vmatpush1.msra.mxu0 0.0
    %3753 = vmatprep.subr.mxu0 0.0
    %3754 = vmatpush1.msra.mxu0 0.0
    %3755 = vmatprep.subr.mxu0 0.0
    %3756 = vmatpush1.msra.mxu0 0.0
    %3757 = vmatprep.subr.mxu0 0.0
    %3758 = vmatpush1.msra.mxu0 0.0
    %3759 = vmatprep.subr.mxu0 0.0
    %3760 = vmatpush1.msra.mxu0 0.0
    %3761 = vmatprep.subr.mxu0 0.0
    %3762 = vmatpush1.msra.mxu0 0.0
    %3763 = vmatprep.subr.mxu0 0.0
    %3764 = vmatpush1.msra.mxu0 0.0
    %3765 = vmatprep.subr.mxu0 0.0
    %3766 = vmatpush1.msra.mxu0 0.0
    %3767 = vmatprep.subr.mxu0 0.0
    %3768 = vmatpush1.msra.mxu0 0.0
    %3769 = vmatprep.subr.mxu0 0.0
    %3770 = vmatpush1.msra.mxu0 0.0
    %3771 = vmatprep.subr.mxu0 0.0
    %3772 = vmatpush1.msra.mxu0 0.0
    %3773 = vmatprep.subr.mxu0 0.0
    %3774 = vmatpush1.msra.mxu0 0.0
    %3775 = vmatprep.subr.mxu0 0.0
    %3776 = vmatpush1.msra.mxu0 0.0
    %3777 = vmatprep.subr.mxu0 0.0
    %3778 = vmatpush1.msra.mxu0 0.0
    %3779 = vmatprep.subr.mxu0 0.0
    %3780 = vmatpush1.msra.mxu0 0.0
    %3781 = vmatprep.subr.mxu0 0.0
    %3782 = vmatpush1.msra.mxu0 0.0
    %3783 = vmatprep.subr.mxu0 0.0
    %3784 = vmatpush1.msra.mxu0 0.0
    %3785 = vmatprep.subr.mxu0 0.0
    %3786 = vmatpush1.msra.mxu0 0.0
    %3787 = vmatprep.subr.mxu0 0.0
    %3788 = vmatpush1.msra.mxu0 0.0
    %3789 = vmatprep.subr.mxu0 0.0
    %3790 = vmatpush1.msra.mxu0 0.0
    %3791 = vmatprep.subr.mxu0 0.0
    %3792 = vmatpush1.msra.mxu0 0.0
    %3793 = vmatprep.subr.mxu0 0.0
    %3794 = vmatpush1.msra.mxu0 0.0
    %3795 = vmatprep.subr.mxu0 0.0
    %3796 = vmatpush1.msra.mxu0 0.0
    %3797 = vmatprep.subr.mxu0 0.0
    %3798 = vmatpush1.msra.mxu0 0.0
    %3799 = vmatprep.mubr.f32.mxu0 0.0
    %3800 = vmatmul.mubr.f32.gmra.mrb[0].mxu0 %v3730
    %v3801 = vpop.f32.mrb[0].mxu0
    %v3802 = vadd.f32 %v3724, %v3801
    %v3803 = vpop.f32.mrb[0].mxu0
    %3804 = vmatprep.mubr.f32.mxu0 0.0
    %3805 = vmatmul.mubr.f32.gmra.mrb[0].mxu0 %v3733
    %v3806 = vpop.f32.mrb[0].mxu0
    %v3807 = vadd.f32 %v3726, %v3806
    %v3808 = vpop.f32.mrb[0].mxu0
    %3809 = vdwg.mxu0
    %v3811 = vsel %vm329, %v3802, 0
    %v3814 = vsel %vm329, %v3807, 0
    %3816 = vmatprep.subr.mxu0 0.0
    %3817 = vmatpush1.msra.mxu0 %v318
    %3818 = vmatprep.subr.mxu0 0.0
    %3819 = vmatpush1.msra.mxu0 0.0
    %3820 = vmatprep.subr.mxu0 0.0
    %3821 = vmatpush1.msra.mxu0 0.0
    %3822 = vmatprep.subr.mxu0 0.0
    %3823 = vmatpush1.msra.mxu0 0.0
    %3824 = vmatprep.subr.mxu0 0.0
    %3825 = vmatpush1.msra.mxu0 0.0
    %3826 = vmatprep.subr.mxu0 0.0
    %3827 = vmatpush1.msra.mxu0 0.0
    %3828 = vmatprep.subr.mxu0 0.0
    %3829 = vmatpush1.msra.mxu0 0.0
    %3830 = vmatprep.subr.mxu0 0.0
    %3831 = vmatpush1.msra.mxu0 0.0
    %3832 = vmatprep.subr.mxu0 0.0
    %3833 = vmatpush1.msra.mxu0 0.0
    %3834 = vmatprep.subr.mxu0 0.0
    %3835 = vmatpush1.msra.mxu0 0.0
    %3836 = vmatprep.subr.mxu0 0.0
    %3837 = vmatpush1.msra.mxu0 0.0
    %3838 = vmatprep.subr.mxu0 0.0
    %3839 = vmatpush1.msra.mxu0 0.0
    %3840 = vmatprep.subr.mxu0 0.0
    %3841 = vmatpush1.msra.mxu0 0.0
    %3842 = vmatprep.subr.mxu0 0.0
    %3843 = vmatpush1.msra.mxu0 0.0
    %3844 = vmatprep.subr.mxu0 0.0
    %3845 = vmatpush1.msra.mxu0 0.0
    %3846 = vmatprep.subr.mxu0 0.0
    %3847 = vmatpush1.msra.mxu0 0.0
    %3848 = vmatprep.subr.mxu0 0.0
    %3849 = vmatpush1.msra.mxu0 0.0
    %3850 = vmatprep.subr.mxu0 0.0
    %3851 = vmatpush1.msra.mxu0 0.0
    %3852 = vmatprep.subr.mxu0 0.0
    %3853 = vmatpush1.msra.mxu0 0.0
    %3854 = vmatprep.subr.mxu0 0.0
    %3855 = vmatpush1.msra.mxu0 0.0
    %3856 = vmatprep.subr.mxu0 0.0
    %3857 = vmatpush1.msra.mxu0 0.0
    %3858 = vmatprep.subr.mxu0 0.0
    %3859 = vmatpush1.msra.mxu0 0.0
    %3860 = vmatprep.subr.mxu0 0.0
    %3861 = vmatpush1.msra.mxu0 0.0
    %3862 = vmatprep.subr.mxu0 0.0
    %3863 = vmatpush1.msra.mxu0 0.0
    %3864 = vmatprep.subr.mxu0 0.0
    %3865 = vmatpush1.msra.mxu0 0.0
    %3866 = vmatprep.subr.mxu0 0.0
    %3867 = vmatpush1.msra.mxu0 0.0
    %3868 = vmatprep.subr.mxu0 0.0
    %3869 = vmatpush1.msra.mxu0 0.0
    %3870 = vmatprep.subr.mxu0 0.0
    %3871 = vmatpush1.msra.mxu0 0.0
    %3872 = vmatprep.subr.mxu0 0.0
    %3873 = vmatpush1.msra.mxu0 0.0
    %3874 = vmatprep.subr.mxu0 0.0
    %3875 = vmatpush1.msra.mxu0 0.0
    %3876 = vmatprep.subr.mxu0 0.0
    %3877 = vmatpush1.msra.mxu0 0.0
    %3878 = vmatprep.subr.mxu0 0.0
    %3879 = vmatpush1.msra.mxu0 0.0
    %3880 = vmatprep.mubr.f32.mxu0 0.0
    %3881 = vmatmul.mubr.f32.gmra.mrb[0].mxu0 %v3811
    %v3882 = vpop.f32.mrb[0].mxu0
    %v3883 = vadd.f32 0.0, %v3882
    %v3884 = vpop.f32.mrb[0].mxu0
    %3885 = vmatprep.mubr.f32.mxu0 0.0
    %3886 = vmatmul.mubr.f32.gmra.mrb[0].mxu0 %v3814
    %v3887 = vpop.f32.mrb[0].mxu0
    %v3888 = vadd.f32 0.0, %v3887
    %v3889 = vpop.f32.mrb[0].mxu0
    %3890 = vdwg.mxu0
    %v3891 = vadd.f32 %v3445, %v3883
    %v3892 = vadd.f32 %v3446, %v3888
    %v3893 = vadd.f32 %v3891, %v2117
    %v3894 = vadd.f32 %v3892, %v2117
    %3895 = vst.msk [vmem:[#allocation2 + $0x10] sm:$0xff] %vm35, %v3893
    %3896 = vst.msk [vmem:[#allocation2 + $0x18] sm:$0xff] %vm35, %v3894
    // Predicated region
    $region30: #{agent_attention_forward.1} parent=1 // pred_check
      _
    $region31: #{agent_attention_forward.1} parent=1 // pred_check_branch
      %3898 = sbr.rel (0) target = $region33
    $region32: #{agent_attention_forward.1} parent=1 // pred_region
      %s3900 = ssub.s32 512, 512
      %3901 = vsyncadd [#allocation3], %s3900
      %s3902 = sshll.u32 [#allocation2], 4
      %s3903 = int_to_ptr.vmem [resolvable:$true] %s3902
      %3908 = dma.vmem_to_hbm [thread:$0]  %s3903, 512, %s7, [#allocation3], 128, 128, 8
    $region33: #{agent_attention_forward.1} parent=1 // pred_fallthru
      _
    // Predicated region
    $region34: #{agent_attention_forward.1} parent=1 // pred_check
      _
    $region35: #{agent_attention_forward.1} parent=1 // pred_check_branch
      %3910 = sbr.rel (0) target = $region37
    $region36: #{agent_attention_forward.1} parent=1 // pred_region
      %3911 = dma.done [#allocation3], 512
    $region37: #{agent_attention_forward.1} parent=1 // pred_fallthru
      _
    %3912 = vsyncpa [#allocation3], 1

</llo_original>
